<compile_context>
chip_gen: v7x
topology: tpu7x:2x2x1
jax: 0.10.0
libtpu: 0.0.40
codegen_flags: <defaults>
</compile_context>

<pallas_src>
import functools

import jax
import jax.numpy as jnp
from jax.experimental import pallas as pl
from jax.experimental.pallas import tpu as pltpu


# ---------------------------------------------------------------------------
# Fused Pallas kernel
# ---------------------------------------------------------------------------
def make_fused_bigru_kernel(num_layers, seq_len, hidden, embed, total_tag,
                            out_size):
    """Build the fused kernel for static (L, S, H, E, T, O)."""
    L, S, H, E, T, O = num_layers, seq_len, hidden, embed, total_tag, out_size
    H2, H4, H6 = 2 * H, 4 * H, 6 * H
    f32 = jnp.float32

    def kernel(ids_ref, emb_ref, wslab_ref, bslab_ref, out_ref, ao_ref):
        # ---- in-kernel embedding gather: exact one-hot @ table (MXU) -------
        lane_iota = jax.lax.broadcasted_iota(jnp.int32, (1, T), 1)
        onehot = jnp.concatenate(
            [(lane_iota == ids_ref[t]).astype(f32) for t in range(S)], axis=0)
        a = jnp.dot(onehot, emb_ref[...], preferred_element_type=f32)  # (S, E)

        for l in range(L):
            in_dim = E if l == 0 else H2
            last = (l == L - 1)

            wf = wslab_ref[2 * l][:in_dim, :]            # (in_dim, 6H) fwd cols
            wb = wslab_ref[2 * l + 1][:in_dim, :]        # (in_dim, 6H) bwd cols
            whh = wslab_ref[2 * L + l][:H2, :]           # (2H, 6H) block-diag
            bx = bslab_ref[l:l + 1, :]                   # (1, 6H) folded biases
            bhn = bslab_ref[L + l:L + l + 1, 0:H2]       # (1, 2H) b_hh of n gate

            # batched input projections for both directions (gate-major packed)
            xpf = jnp.dot(a, wf, preferred_element_type=f32) + bx   # (S, 6H)
            xpb = jnp.dot(a, wb, preferred_element_type=f32)        # (S, 6H)

            # both recurrent chains packed in one state: h = [h_fwd | h_bwd]
            h = jnp.zeros((1, H2), f32)
            # TODO(synk): switch to lax.fori_loop(..., unroll=k) carrying h if
            #             S ever grows; at S=8 the static unroll is fine.
            for t in range(S):
                tb = S - 1 - t
                hg = jnp.dot(h, whh, preferred_element_type=f32)    # (1, 6H)
                xg = xpf[t:t + 1, :] + xpb[tb:tb + 1, :]            # (1, 6H)
                rz = jax.nn.sigmoid(xg[:, 0:H4] + hg[:, 0:H4])
                r = rz[:, 0:H2]
                z = rz[:, H2:H4]
                n = jnp.tanh(xg[:, H4:H6] + r * (hg[:, H4:H6] + bhn))
                h = (1.0 - z) * n + z * h
                # layer output in time order: fwd half at row t, bwd at S-1-t
                if (not last) or t == S - 1:
                    ao_ref[t:t + 1, 0:H] = h[:, 0:H]
                if (not last) or t == 0:
                    ao_ref[tb:tb + 1, H:H2] = h[:, H:H2]

            if not last:
                a = ao_ref[...]                           # (S, 2H), time order

        # ---- final linear + sigmoid on gru_res[-1] = scratch row S-1 -------
        final_in = ao_ref[S - 1:S, :]                     # (1, 2H)
        wlin = wslab_ref[3 * L][:H2, :]                   # (2H, 6H) cols 0:O valid
        blin = bslab_ref[2 * L:2 * L + 1, 0:O]            # (1, O)
        logits = jnp.dot(final_in, wlin,
                         preferred_element_type=f32)[:, 0:O] + blin
        out_ref[...] = jax.nn.sigmoid(logits)

    return kernel


# ---------------------------------------------------------------------------
# Parameter init (PyTorch layout) and one-time repack into kernel layout
# ---------------------------------------------------------------------------
def init_params(key, total_tag, embedding_size, gru_hidden, gru_layer,
                output_size):
    params = {}
    k = key

    def nrm(k, shape):
        return 0.1 * jax.random.normal(k, shape, dtype=jnp.float32)

    k, sub = jax.random.split(k)
    params["embedding"] = nrm(sub, (total_tag, embedding_size))

    H = gru_hidden
    for l in range(gru_layer):
        in_size = embedding_size if l == 0 else 2 * H
        for d in ("fwd", "bwd"):
            k, k1, k2, k3, k4 = jax.random.split(k, 5)
            params[f"w_ih_l{l}_{d}"] = nrm(k1, (3 * H, in_size))
            params[f"w_hh_l{l}_{d}"] = nrm(k2, (3 * H, H))
            params[f"b_ih_l{l}_{d}"] = nrm(k3, (3 * H,))
            params[f"b_hh_l{l}_{d}"] = nrm(k4, (3 * H,))

    k, k1, k2 = jax.random.split(k, 3)
    params["w_lin"] = nrm(k1, (output_size, 2 * H))
    params["b_lin"] = nrm(k2, (output_size,))
    return params


def prepare_fused_params(params, gru_layer):
    """Repack PyTorch-layout weights into two lane-dense slabs (done once).

    wslab (3L+1, Ipad, 6H):
      [2l+d] : input weights, layer l, dir d, per-gate transposed, placed in
               that direction's columns of the gate-major
               [r_f r_b | z_f z_b | n_f n_b] layout (extra rows are zero).
      [2L+l] : block-diagonal recurrent weights: rows 0:H act on h_fwd,
               rows H:2H on h_bwd, each writing only its own columns.
      [3L]   : final linear weight (2H, O), left-justified in the columns.
    bslab (2L+1, 6H):
      row l   : b_ih+b_hh folded for r,z ; b_ih only for n (both directions)
      row L+l : b_hh of the n gate [fwd | bwd] in cols 0:2H
      row 2L  : final linear bias in cols 0:O
    """
    H = params["w_hh_l0_fwd"].shape[1]
    L = gru_layer
    E = params["embedding"].shape[1]
    O = params["w_lin"].shape[0]
    H2, H6 = 2 * H, 6 * H
    Ipad = max(E, H2)
    f32 = jnp.float32

    wslab = jnp.zeros((3 * L + 1, Ipad, H6), f32)
    bslab = jnp.zeros((2 * L + 1, H6), f32)

    for l in range(L):
        in_dim = E if l == 0 else H2
        for d, name in enumerate(("fwd", "bwd")):
            w_ih = params[f"w_ih_l{l}_{name}"].astype(f32)   # (3H, in_dim)
            w_hh = params[f"w_hh_l{l}_{name}"].astype(f32)   # (3H, H)
            b_ih = params[f"b_ih_l{l}_{name}"].astype(f32)   # (3H,)
            b_hh = params[f"b_hh_l{l}_{name}"].astype(f32)   # (3H,)
            for g in range(3):                               # gates r, z, n
                c0 = 2 * g * H + d * H
                wslab = wslab.at[2 * l + d, :in_dim, c0:c0 + H].set(
                    w_ih[g * H:(g + 1) * H, :].T)
                wslab = wslab.at[2 * L + l, d * H:(d + 1) * H, c0:c0 + H].set(
                    w_hh[g * H:(g + 1) * H, :].T)
                if g < 2:     # r, z: fold b_ih + b_hh into the input proj
                    bcol = b_ih[g * H:(g + 1) * H] + b_hh[g * H:(g + 1) * H]
                else:         # n: only b_ih folds; b_hh(n) stays on h path
                    bcol = b_ih[2 * H:3 * H]
                bslab = bslab.at[l, c0:c0 + H].set(bcol)
            bslab = bslab.at[L + l, d * H:(d + 1) * H].set(b_hh[2 * H:3 * H])

    wslab = wslab.at[3 * L, :H2, :O].set(params["w_lin"].T.astype(f32))
    bslab = bslab.at[2 * L, :O].set(params["b_lin"].astype(f32))

    return {"embedding": params["embedding"].astype(f32),
            "wslab": wslab, "bslab": bslab}


# ---------------------------------------------------------------------------
# Forward pass (one pallas_call, embedding gather fused in-kernel)
# ---------------------------------------------------------------------------
def bi_gru_forward_fused(prepped, input_ids, gru_layer, output_size):
    emb = prepped["embedding"]
    wslab = prepped["wslab"]
    bslab = prepped["bslab"]
    T, E = emb.shape
    H = wslab.shape[2] // 6
    S = int(input_ids.shape[0])
    L = gru_layer
    O = output_size

    kernel = make_fused_bigru_kernel(L, S, H, E, T, O)

    grid_spec = pltpu.PrefetchScalarGridSpec(
        num_scalar_prefetch=1,                       # input_ids -> SMEM
        grid=(1,),
        in_specs=[
            pl.BlockSpec(emb.shape, lambda i, ids: (0, 0)),        # embedding
            pl.BlockSpec(wslab.shape, lambda i, ids: (0, 0, 0)),   # weight slab
            pl.BlockSpec(bslab.shape, lambda i, ids: (0, 0)),      # bias slab
        ],
        out_specs=pl.BlockSpec((1, O), lambda i, ids: (0, 0)),
        scratch_shapes=[pltpu.VMEM((S, 2 * H), jnp.float32)],      # layer outs
    )

    return pl.pallas_call(
        kernel,
        out_shape=jax.ShapeDtypeStruct((1, O), jnp.float32),
        grid_spec=grid_spec,
        compiler_params=pltpu.CompilerParams(
            dimension_semantics=("arbitrary",)),
    )(input_ids.astype(jnp.int32), emb, wslab, bslab)


# ---------------------------------------------------------------------------
# Pure-JAX reference (PyTorch-layout params) for correctness
# ---------------------------------------------------------------------------
def _ref_gru_dir(x, w_ih, w_hh, b_ih, b_hh):
    H = w_hh.shape[1]
    h = jnp.zeros((H,), jnp.float32)
    outs = []
    for t in range(x.shape[0]):
        gi = x[t] @ w_ih.T + b_ih
        gh = h @ w_hh.T + b_hh
        r = jax.nn.sigmoid(gi[:H] + gh[:H])
        z = jax.nn.sigmoid(gi[H:2 * H] + gh[H:2 * H])
        n = jnp.tanh(gi[2 * H:] + r * gh[2 * H:])
        h = (1.0 - z) * n + z * h
        outs.append(h)
    return jnp.stack(outs)


def ref_forward(params, input_ids, gru_layer):
    x = params["embedding"][input_ids]
    for l in range(gru_layer):
        fwd = _ref_gru_dir(x, params[f"w_ih_l{l}_fwd"], params[f"w_hh_l{l}_fwd"],
                           params[f"b_ih_l{l}_fwd"], params[f"b_hh_l{l}_fwd"])
        bwd = _ref_gru_dir(jnp.flip(x, 0), params[f"w_ih_l{l}_bwd"],
                           params[f"w_hh_l{l}_bwd"], params[f"b_ih_l{l}_bwd"],
                           params[f"b_hh_l{l}_bwd"])
        x = jnp.concatenate([fwd, jnp.flip(bwd, 0)], axis=-1)
    return jax.nn.sigmoid(x[-1:] @ params["w_lin"].T + params["b_lin"])


# ---------------------------------------------------------------------------
if __name__ == "__main__":
    TOTAL_TAG = 50
    EMBED = 16
    HIDDEN = 32
    LAYERS = 2
    OUT = 4
    SEQ = 8

    key = jax.random.PRNGKey(0)
    k_params, k_input = jax.random.split(key)
    params = init_params(k_params, TOTAL_TAG, EMBED, HIDDEN, LAYERS, OUT)
    input_ids = jax.random.randint(k_input, (SEQ,), 0, TOTAL_TAG, dtype=jnp.int32)

    prepped = prepare_fused_params(params, LAYERS)       # one-time weight prep

    fwd_fn = jax.jit(functools.partial(bi_gru_forward_fused,
                                       gru_layer=LAYERS, output_size=OUT))
    out = fwd_fn(prepped, input_ids)
    out = jax.block_until_ready(out)

    ref = ref_forward(params, input_ids, LAYERS)
    assert out.shape == (1, OUT), out.shape
    assert jnp.allclose(out, ref, atol=5e-4, rtol=5e-4), (out, ref)

    print("KERNEL_OK")
</pallas_src>

<mosaic_0001>
module attributes {stable_mosaic.version = 11 : i64} {
  func.func @kernel(%arg0: i32, %arg1: memref<8xi32, #tpu.memory_space<smem>>, %arg2: memref<50x16xf32, #tpu.memory_space<vmem>>, %arg3: memref<7x64x192xf32, #tpu.memory_space<vmem>>, %arg4: memref<5x192xf32, #tpu.memory_space<vmem>>, %arg5: memref<1x4xf32, #tpu.memory_space<vmem>>, %arg6: memref<8x64xf32, #tpu.memory_space<vmem>>) attributes {dimension_semantics = [#tpu.dimension_semantics<arbitrary>], iteration_bounds = array<i64: 1>, scalar_prefetch = 1 : i64, scratch_operands = 1 : i64, tpu.core_type = #tpu.core_type<tc>, window_params = [{pipeline_mode = #tpu.pipeline_mode<synchronous>, transform_indices = @transform_0, window_bounds = array<i64: 50, 16>}, {pipeline_mode = #tpu.pipeline_mode<synchronous>, transform_indices = @transform_1, window_bounds = array<i64: 7, 64, 192>}, {pipeline_mode = #tpu.pipeline_mode<synchronous>, transform_indices = @transform_2, window_bounds = array<i64: 5, 192>}, {pipeline_mode = #tpu.pipeline_mode<synchronous>, transform_indices = @transform_3, window_bounds = array<i64: 1, 4>}]} {
    %0 = tpu.iota {dimensions = array<i32: 1>} : vector<1x50xi32>
    %c0 = arith.constant 0 : index
    %1 = memref.load %arg1[%c0] : memref<8xi32, #tpu.memory_space<smem>>
    %2 = vector.broadcast %1 : i32 to vector<1x50xi32>
    %3 = arith.cmpi eq, %0, %2 : vector<1x50xi32>
    %4 = arith.extui %3 : vector<1x50xi1> to vector<1x50xi32>
    %5 = arith.sitofp %4 : vector<1x50xi32> to vector<1x50xf32>
    %c1 = arith.constant 1 : index
    %6 = memref.load %arg1[%c1] : memref<8xi32, #tpu.memory_space<smem>>
    %7 = vector.broadcast %6 : i32 to vector<1x50xi32>
    %8 = arith.cmpi eq, %0, %7 : vector<1x50xi32>
    %9 = arith.extui %8 : vector<1x50xi1> to vector<1x50xi32>
    %10 = arith.sitofp %9 : vector<1x50xi32> to vector<1x50xf32>
    %c2 = arith.constant 2 : index
    %11 = memref.load %arg1[%c2] : memref<8xi32, #tpu.memory_space<smem>>
    %12 = vector.broadcast %11 : i32 to vector<1x50xi32>
    %13 = arith.cmpi eq, %0, %12 : vector<1x50xi32>
    %14 = arith.extui %13 : vector<1x50xi1> to vector<1x50xi32>
    %15 = arith.sitofp %14 : vector<1x50xi32> to vector<1x50xf32>
    %c3 = arith.constant 3 : index
    %16 = memref.load %arg1[%c3] : memref<8xi32, #tpu.memory_space<smem>>
    %17 = vector.broadcast %16 : i32 to vector<1x50xi32>
    %18 = arith.cmpi eq, %0, %17 : vector<1x50xi32>
    %19 = arith.extui %18 : vector<1x50xi1> to vector<1x50xi32>
    %20 = arith.sitofp %19 : vector<1x50xi32> to vector<1x50xf32>
    %c4 = arith.constant 4 : index
    %21 = memref.load %arg1[%c4] : memref<8xi32, #tpu.memory_space<smem>>
    %22 = vector.broadcast %21 : i32 to vector<1x50xi32>
    %23 = arith.cmpi eq, %0, %22 : vector<1x50xi32>
    %24 = arith.extui %23 : vector<1x50xi1> to vector<1x50xi32>
    %25 = arith.sitofp %24 : vector<1x50xi32> to vector<1x50xf32>
    %c5 = arith.constant 5 : index
    %26 = memref.load %arg1[%c5] : memref<8xi32, #tpu.memory_space<smem>>
    %27 = vector.broadcast %26 : i32 to vector<1x50xi32>
    %28 = arith.cmpi eq, %0, %27 : vector<1x50xi32>
    %29 = arith.extui %28 : vector<1x50xi1> to vector<1x50xi32>
    %30 = arith.sitofp %29 : vector<1x50xi32> to vector<1x50xf32>
    %c6 = arith.constant 6 : index
    %31 = memref.load %arg1[%c6] : memref<8xi32, #tpu.memory_space<smem>>
    %32 = vector.broadcast %31 : i32 to vector<1x50xi32>
    %33 = arith.cmpi eq, %0, %32 : vector<1x50xi32>
    %34 = arith.extui %33 : vector<1x50xi1> to vector<1x50xi32>
    %35 = arith.sitofp %34 : vector<1x50xi32> to vector<1x50xf32>
    %c7 = arith.constant 7 : index
    %36 = memref.load %arg1[%c7] : memref<8xi32, #tpu.memory_space<smem>>
    %37 = vector.broadcast %36 : i32 to vector<1x50xi32>
    %38 = arith.cmpi eq, %0, %37 : vector<1x50xi32>
    %39 = arith.extui %38 : vector<1x50xi1> to vector<1x50xi32>
    %40 = arith.sitofp %39 : vector<1x50xi32> to vector<1x50xf32>
    %41 = tpu.concatenate %5, %10, %15, %20, %25, %30, %35, %40 in 0 : vector<1x50xf32>, vector<1x50xf32>, vector<1x50xf32>, vector<1x50xf32>, vector<1x50xf32>, vector<1x50xf32>, vector<1x50xf32>, vector<1x50xf32> -> vector<8x50xf32>
    %c0_0 = arith.constant 0 : index
    %c0_1 = arith.constant 0 : index
    %42 = vector.load %arg2[%c0_0, %c0_1] : memref<50x16xf32, #tpu.memory_space<vmem>>, vector<50x16xf32>
    %cst = arith.constant dense<0.000000e+00> : vector<8x16xf32>
    %43 = tpu.matmul %41, %42, %cst {dimension_numbers = #tpu.dot_dimension_numbers<[1], [0], [0], [1], [0, 0, 1, 1], [], []>} : vector<8x50xf32>, vector<50x16xf32>, vector<8x16xf32> -> vector<8x16xf32>
    %c0_2 = arith.constant 0 : index
    %c0_3 = arith.constant 0 : index
    %c0_4 = arith.constant 0 : index
    %44 = vector.load %arg3[%c0_2, %c0_3, %c0_4] : memref<7x64x192xf32, #tpu.memory_space<vmem>>, vector<1x64x192xf32>
    %45 = vector.shape_cast %44 : vector<1x64x192xf32> to vector<64x192xf32>
    %46 = vector.extract_strided_slice %45 {offsets = [0, 0], sizes = [16, 192], strides = [1, 1]} : vector<64x192xf32> to vector<16x192xf32>
    %c1_5 = arith.constant 1 : index
    %c0_6 = arith.constant 0 : index
    %c0_7 = arith.constant 0 : index
    %47 = vector.load %arg3[%c1_5, %c0_6, %c0_7] : memref<7x64x192xf32, #tpu.memory_space<vmem>>, vector<1x64x192xf32>
    %48 = vector.shape_cast %47 : vector<1x64x192xf32> to vector<64x192xf32>
    %49 = vector.extract_strided_slice %48 {offsets = [0, 0], sizes = [16, 192], strides = [1, 1]} : vector<64x192xf32> to vector<16x192xf32>
    %c4_8 = arith.constant 4 : index
    %c0_9 = arith.constant 0 : index
    %c0_10 = arith.constant 0 : index
    %50 = vector.load %arg3[%c4_8, %c0_9, %c0_10] : memref<7x64x192xf32, #tpu.memory_space<vmem>>, vector<1x64x192xf32>
    %51 = vector.shape_cast %50 : vector<1x64x192xf32> to vector<64x192xf32>
    %c0_11 = arith.constant 0 : index
    %c0_12 = arith.constant 0 : index
    %52 = vector.load %arg4[%c0_11, %c0_12] : memref<5x192xf32, #tpu.memory_space<vmem>>, vector<1x192xf32>
    %c2_13 = arith.constant 2 : index
    %c0_14 = arith.constant 0 : index
    %53 = vector.load %arg4[%c2_13, %c0_14] : memref<5x192xf32, #tpu.memory_space<vmem>>, vector<1x64xf32>
    %cst_15 = arith.constant dense<0.000000e+00> : vector<8x192xf32>
    %54 = tpu.matmul %43, %46, %cst_15 {dimension_numbers = #tpu.dot_dimension_numbers<[1], [0], [0], [1], [0, 0, 1, 1], [], []>} : vector<8x16xf32>, vector<16x192xf32>, vector<8x192xf32> -> vector<8x192xf32>
    %55 = vector.broadcast %52 : vector<1x192xf32> to vector<8x192xf32>
    %56 = arith.addf %54, %55 : vector<8x192xf32>
    %cst_16 = arith.constant dense<0.000000e+00> : vector<8x192xf32>
    %57 = tpu.matmul %43, %49, %cst_16 {dimension_numbers = #tpu.dot_dimension_numbers<[1], [0], [0], [1], [0, 0, 1, 1], [], []>} : vector<8x16xf32>, vector<16x192xf32>, vector<8x192xf32> -> vector<8x192xf32>
    %cst_17 = arith.constant 0.000000e+00 : f32
    %58 = vector.broadcast %cst_17 : f32 to vector<1x64xf32>
    %cst_18 = arith.constant dense<0.000000e+00> : vector<1x192xf32>
    %59 = tpu.matmul %58, %51, %cst_18 {dimension_numbers = #tpu.dot_dimension_numbers<[1], [0], [0], [1], [0, 0, 1, 1], [], []>} : vector<1x64xf32>, vector<64x192xf32>, vector<1x192xf32> -> vector<1x192xf32>
    %60 = vector.extract_strided_slice %56 {offsets = [0, 0], sizes = [1, 192], strides = [1, 1]} : vector<8x192xf32> to vector<1x192xf32>
    %61 = vector.extract_strided_slice %57 {offsets = [7, 0], sizes = [1, 192], strides = [1, 1]} : vector<8x192xf32> to vector<1x192xf32>
    %62 = arith.addf %60, %61 : vector<1x192xf32>
    %63 = vector.extract_strided_slice %62 {offsets = [0, 0], sizes = [1, 128], strides = [1, 1]} : vector<1x192xf32> to vector<1x128xf32>
    %64 = vector.extract_strided_slice %59 {offsets = [0, 0], sizes = [1, 128], strides = [1, 1]} : vector<1x192xf32> to vector<1x128xf32>
    %65 = arith.addf %63, %64 : vector<1x128xf32>
    %66 = arith.negf %65 : vector<1x128xf32>
    %67 = math.exp %66 : vector<1x128xf32>
    %cst_19 = arith.constant 1.000000e+00 : f32
    %68 = vector.broadcast %cst_19 : f32 to vector<1x128xf32>
    %69 = arith.addf %68, %67 : vector<1x128xf32>
    %70 = arith.divf %68, %69 : vector<1x128xf32>
    %71 = vector.extract_strided_slice %70 {offsets = [0, 0], sizes = [1, 64], strides = [1, 1]} : vector<1x128xf32> to vector<1x64xf32>
    %72 = vector.extract_strided_slice %70 {offsets = [0, 64], sizes = [1, 64], strides = [1, 1]} : vector<1x128xf32> to vector<1x64xf32>
    %73 = vector.extract_strided_slice %62 {offsets = [0, 128], sizes = [1, 64], strides = [1, 1]} : vector<1x192xf32> to vector<1x64xf32>
    %74 = vector.extract_strided_slice %59 {offsets = [0, 128], sizes = [1, 64], strides = [1, 1]} : vector<1x192xf32> to vector<1x64xf32>
    %75 = arith.addf %74, %53 : vector<1x64xf32>
    %76 = arith.mulf %71, %75 : vector<1x64xf32>
    %77 = arith.addf %73, %76 : vector<1x64xf32>
    %78 = math.tanh %77 : vector<1x64xf32>
    %cst_20 = arith.constant 1.000000e+00 : f32
    %79 = vector.broadcast %cst_20 : f32 to vector<1x64xf32>
    %80 = arith.subf %79, %72 : vector<1x64xf32>
    %81 = arith.mulf %80, %78 : vector<1x64xf32>
    %82 = arith.mulf %72, %58 : vector<1x64xf32>
    %83 = arith.addf %81, %82 : vector<1x64xf32>
    %84 = vector.extract_strided_slice %83 {offsets = [0, 0], sizes = [1, 32], strides = [1, 1]} : vector<1x64xf32> to vector<1x32xf32>
    %c0_21 = arith.constant 0 : index
    %c0_22 = arith.constant 0 : index
    %85 = vector.load %arg6[%c0_21, %c0_22] : memref<8x64xf32, #tpu.memory_space<vmem>>, vector<1x32xf32>
    tpu.vector_store %arg6[%c0_21, %c0_22], %84 {strides = array<i32>} : memref<8x64xf32, #tpu.memory_space<vmem>>, vector<1x32xf32>,
    %86 = vector.extract_strided_slice %83 {offsets = [0, 32], sizes = [1, 32], strides = [1, 1]} : vector<1x64xf32> to vector<1x32xf32>
    %c7_23 = arith.constant 7 : index
    %c32 = arith.constant 32 : index
    %87 = vector.load %arg6[%c7_23, %c32] : memref<8x64xf32, #tpu.memory_space<vmem>>, vector<1x32xf32>
    tpu.vector_store %arg6[%c7_23, %c32], %86 {strides = array<i32>} : memref<8x64xf32, #tpu.memory_space<vmem>>, vector<1x32xf32>,
    %cst_24 = arith.constant dense<0.000000e+00> : vector<1x192xf32>
    %88 = tpu.matmul %83, %51, %cst_24 {dimension_numbers = #tpu.dot_dimension_numbers<[1], [0], [0], [1], [0, 0, 1, 1], [], []>} : vector<1x64xf32>, vector<64x192xf32>, vector<1x192xf32> -> vector<1x192xf32>
    %89 = vector.extract_strided_slice %56 {offsets = [1, 0], sizes = [1, 192], strides = [1, 1]} : vector<8x192xf32> to vector<1x192xf32>
    %90 = vector.extract_strided_slice %57 {offsets = [6, 0], sizes = [1, 192], strides = [1, 1]} : vector<8x192xf32> to vector<1x192xf32>
    %91 = arith.addf %89, %90 : vector<1x192xf32>
    %92 = vector.extract_strided_slice %91 {offsets = [0, 0], sizes = [1, 128], strides = [1, 1]} : vector<1x192xf32> to vector<1x128xf32>
    %93 = vector.extract_strided_slice %88 {offsets = [0, 0], sizes = [1, 128], strides = [1, 1]} : vector<1x192xf32> to vector<1x128xf32>
    %94 = arith.addf %92, %93 : vector<1x128xf32>
    %95 = arith.negf %94 : vector<1x128xf32>
    %96 = math.exp %95 : vector<1x128xf32>
    %cst_25 = arith.constant 1.000000e+00 : f32
    %97 = vector.broadcast %cst_25 : f32 to vector<1x128xf32>
    %98 = arith.addf %97, %96 : vector<1x128xf32>
    %99 = arith.divf %97, %98 : vector<1x128xf32>
    %100 = vector.extract_strided_slice %99 {offsets = [0, 0], sizes = [1, 64], strides = [1, 1]} : vector<1x128xf32> to vector<1x64xf32>
    %101 = vector.extract_strided_slice %99 {offsets = [0, 64], sizes = [1, 64], strides = [1, 1]} : vector<1x128xf32> to vector<1x64xf32>
    %102 = vector.extract_strided_slice %91 {offsets = [0, 128], sizes = [1, 64], strides = [1, 1]} : vector<1x192xf32> to vector<1x64xf32>
    %103 = vector.extract_strided_slice %88 {offsets = [0, 128], sizes = [1, 64], strides = [1, 1]} : vector<1x192xf32> to vector<1x64xf32>
    %104 = arith.addf %103, %53 : vector<1x64xf32>
    %105 = arith.mulf %100, %104 : vector<1x64xf32>
    %106 = arith.addf %102, %105 : vector<1x64xf32>
    %107 = math.tanh %106 : vector<1x64xf32>
    %cst_26 = arith.constant 1.000000e+00 : f32
    %108 = vector.broadcast %cst_26 : f32 to vector<1x64xf32>
    %109 = arith.subf %108, %101 : vector<1x64xf32>
    %110 = arith.mulf %109, %107 : vector<1x64xf32>
    %111 = arith.mulf %101, %83 : vector<1x64xf32>
    %112 = arith.addf %110, %111 : vector<1x64xf32>
    %113 = vector.extract_strided_slice %112 {offsets = [0, 0], sizes = [1, 32], strides = [1, 1]} : vector<1x64xf32> to vector<1x32xf32>
    %c1_27 = arith.constant 1 : index
    %c0_28 = arith.constant 0 : index
    %114 = vector.load %arg6[%c1_27, %c0_28] : memref<8x64xf32, #tpu.memory_space<vmem>>, vector<1x32xf32>
    tpu.vector_store %arg6[%c1_27, %c0_28], %113 {strides = array<i32>} : memref<8x64xf32, #tpu.memory_space<vmem>>, vector<1x32xf32>,
    %115 = vector.extract_strided_slice %112 {offsets = [0, 32], sizes = [1, 32], strides = [1, 1]} : vector<1x64xf32> to vector<1x32xf32>
    %c6_29 = arith.constant 6 : index
    %c32_30 = arith.constant 32 : index
    %116 = vector.load %arg6[%c6_29, %c32_30] : memref<8x64xf32, #tpu.memory_space<vmem>>, vector<1x32xf32>
    tpu.vector_store %arg6[%c6_29, %c32_30], %115 {strides = array<i32>} : memref<8x64xf32, #tpu.memory_space<vmem>>, vector<1x32xf32>,
    %cst_31 = arith.constant dense<0.000000e+00> : vector<1x192xf32>
    %117 = tpu.matmul %112, %51, %cst_31 {dimension_numbers = #tpu.dot_dimension_numbers<[1], [0], [0], [1], [0, 0, 1, 1], [], []>} : vector<1x64xf32>, vector<64x192xf32>, vector<1x192xf32> -> vector<1x192xf32>
    %118 = vector.extract_strided_slice %56 {offsets = [2, 0], sizes = [1, 192], strides = [1, 1]} : vector<8x192xf32> to vector<1x192xf32>
    %119 = vector.extract_strided_slice %57 {offsets = [5, 0], sizes = [1, 192], strides = [1, 1]} : vector<8x192xf32> to vector<1x192xf32>
    %120 = arith.addf %118, %119 : vector<1x192xf32>
    %121 = vector.extract_strided_slice %120 {offsets = [0, 0], sizes = [1, 128], strides = [1, 1]} : vector<1x192xf32> to vector<1x128xf32>
    %122 = vector.extract_strided_slice %117 {offsets = [0, 0], sizes = [1, 128], strides = [1, 1]} : vector<1x192xf32> to vector<1x128xf32>
    %123 = arith.addf %121, %122 : vector<1x128xf32>
    %124 = arith.negf %123 : vector<1x128xf32>
    %125 = math.exp %124 : vector<1x128xf32>
    %cst_32 = arith.constant 1.000000e+00 : f32
    %126 = vector.broadcast %cst_32 : f32 to vector<1x128xf32>
    %127 = arith.addf %126, %125 : vector<1x128xf32>
    %128 = arith.divf %126, %127 : vector<1x128xf32>
    %129 = vector.extract_strided_slice %128 {offsets = [0, 0], sizes = [1, 64], strides = [1, 1]} : vector<1x128xf32> to vector<1x64xf32>
    %130 = vector.extract_strided_slice %128 {offsets = [0, 64], sizes = [1, 64], strides = [1, 1]} : vector<1x128xf32> to vector<1x64xf32>
    %131 = vector.extract_strided_slice %120 {offsets = [0, 128], sizes = [1, 64], strides = [1, 1]} : vector<1x192xf32> to vector<1x64xf32>
    %132 = vector.extract_strided_slice %117 {offsets = [0, 128], sizes = [1, 64], strides = [1, 1]} : vector<1x192xf32> to vector<1x64xf32>
    %133 = arith.addf %132, %53 : vector<1x64xf32>
    %134 = arith.mulf %129, %133 : vector<1x64xf32>
    %135 = arith.addf %131, %134 : vector<1x64xf32>
    %136 = math.tanh %135 : vector<1x64xf32>
    %cst_33 = arith.constant 1.000000e+00 : f32
    %137 = vector.broadcast %cst_33 : f32 to vector<1x64xf32>
    %138 = arith.subf %137, %130 : vector<1x64xf32>
    %139 = arith.mulf %138, %136 : vector<1x64xf32>
    %140 = arith.mulf %130, %112 : vector<1x64xf32>
    %141 = arith.addf %139, %140 : vector<1x64xf32>
    %142 = vector.extract_strided_slice %141 {offsets = [0, 0], sizes = [1, 32], strides = [1, 1]} : vector<1x64xf32> to vector<1x32xf32>
    %c2_34 = arith.constant 2 : index
    %c0_35 = arith.constant 0 : index
    %143 = vector.load %arg6[%c2_34, %c0_35] : memref<8x64xf32, #tpu.memory_space<vmem>>, vector<1x32xf32>
    tpu.vector_store %arg6[%c2_34, %c0_35], %142 {strides = array<i32>} : memref<8x64xf32, #tpu.memory_space<vmem>>, vector<1x32xf32>,
    %144 = vector.extract_strided_slice %141 {offsets = [0, 32], sizes = [1, 32], strides = [1, 1]} : vector<1x64xf32> to vector<1x32xf32>
    %c5_36 = arith.constant 5 : index
    %c32_37 = arith.constant 32 : index
    %145 = vector.load %arg6[%c5_36, %c32_37] : memref<8x64xf32, #tpu.memory_space<vmem>>, vector<1x32xf32>
    tpu.vector_store %arg6[%c5_36, %c32_37], %144 {strides = array<i32>} : memref<8x64xf32, #tpu.memory_space<vmem>>, vector<1x32xf32>,
    %cst_38 = arith.constant dense<0.000000e+00> : vector<1x192xf32>
    %146 = tpu.matmul %141, %51, %cst_38 {dimension_numbers = #tpu.dot_dimension_numbers<[1], [0], [0], [1], [0, 0, 1, 1], [], []>} : vector<1x64xf32>, vector<64x192xf32>, vector<1x192xf32> -> vector<1x192xf32>
    %147 = vector.extract_strided_slice %56 {offsets = [3, 0], sizes = [1, 192], strides = [1, 1]} : vector<8x192xf32> to vector<1x192xf32>
    %148 = vector.extract_strided_slice %57 {offsets = [4, 0], sizes = [1, 192], strides = [1, 1]} : vector<8x192xf32> to vector<1x192xf32>
    %149 = arith.addf %147, %148 : vector<1x192xf32>
    %150 = vector.extract_strided_slice %149 {offsets = [0, 0], sizes = [1, 128], strides = [1, 1]} : vector<1x192xf32> to vector<1x128xf32>
    %151 = vector.extract_strided_slice %146 {offsets = [0, 0], sizes = [1, 128], strides = [1, 1]} : vector<1x192xf32> to vector<1x128xf32>
    %152 = arith.addf %150, %151 : vector<1x128xf32>
    %153 = arith.negf %152 : vector<1x128xf32>
    %154 = math.exp %153 : vector<1x128xf32>
    %cst_39 = arith.constant 1.000000e+00 : f32
    %155 = vector.broadcast %cst_39 : f32 to vector<1x128xf32>
    %156 = arith.addf %155, %154 : vector<1x128xf32>
    %157 = arith.divf %155, %156 : vector<1x128xf32>
    %158 = vector.extract_strided_slice %157 {offsets = [0, 0], sizes = [1, 64], strides = [1, 1]} : vector<1x128xf32> to vector<1x64xf32>
    %159 = vector.extract_strided_slice %157 {offsets = [0, 64], sizes = [1, 64], strides = [1, 1]} : vector<1x128xf32> to vector<1x64xf32>
    %160 = vector.extract_strided_slice %149 {offsets = [0, 128], sizes = [1, 64], strides = [1, 1]} : vector<1x192xf32> to vector<1x64xf32>
    %161 = vector.extract_strided_slice %146 {offsets = [0, 128], sizes = [1, 64], strides = [1, 1]} : vector<1x192xf32> to vector<1x64xf32>
    %162 = arith.addf %161, %53 : vector<1x64xf32>
    %163 = arith.mulf %158, %162 : vector<1x64xf32>
    %164 = arith.addf %160, %163 : vector<1x64xf32>
    %165 = math.tanh %164 : vector<1x64xf32>
    %cst_40 = arith.constant 1.000000e+00 : f32
    %166 = vector.broadcast %cst_40 : f32 to vector<1x64xf32>
    %167 = arith.subf %166, %159 : vector<1x64xf32>
    %168 = arith.mulf %167, %165 : vector<1x64xf32>
    %169 = arith.mulf %159, %141 : vector<1x64xf32>
    %170 = arith.addf %168, %169 : vector<1x64xf32>
    %171 = vector.extract_strided_slice %170 {offsets = [0, 0], sizes = [1, 32], strides = [1, 1]} : vector<1x64xf32> to vector<1x32xf32>
    %c3_41 = arith.constant 3 : index
    %c0_42 = arith.constant 0 : index
    %172 = vector.load %arg6[%c3_41, %c0_42] : memref<8x64xf32, #tpu.memory_space<vmem>>, vector<1x32xf32>
    tpu.vector_store %arg6[%c3_41, %c0_42], %171 {strides = array<i32>} : memref<8x64xf32, #tpu.memory_space<vmem>>, vector<1x32xf32>,
    %173 = vector.extract_strided_slice %170 {offsets = [0, 32], sizes = [1, 32], strides = [1, 1]} : vector<1x64xf32> to vector<1x32xf32>
    %c4_43 = arith.constant 4 : index
    %c32_44 = arith.constant 32 : index
    %174 = vector.load %arg6[%c4_43, %c32_44] : memref<8x64xf32, #tpu.memory_space<vmem>>, vector<1x32xf32>
    tpu.vector_store %arg6[%c4_43, %c32_44], %173 {strides = array<i32>} : memref<8x64xf32, #tpu.memory_space<vmem>>, vector<1x32xf32>,
    %cst_45 = arith.constant dense<0.000000e+00> : vector<1x192xf32>
    %175 = tpu.matmul %170, %51, %cst_45 {dimension_numbers = #tpu.dot_dimension_numbers<[1], [0], [0], [1], [0, 0, 1, 1], [], []>} : vector<1x64xf32>, vector<64x192xf32>, vector<1x192xf32> -> vector<1x192xf32>
    %176 = vector.extract_strided_slice %56 {offsets = [4, 0], sizes = [1, 192], strides = [1, 1]} : vector<8x192xf32> to vector<1x192xf32>
    %177 = vector.extract_strided_slice %57 {offsets = [3, 0], sizes = [1, 192], strides = [1, 1]} : vector<8x192xf32> to vector<1x192xf32>
    %178 = arith.addf %176, %177 : vector<1x192xf32>
    %179 = vector.extract_strided_slice %178 {offsets = [0, 0], sizes = [1, 128], strides = [1, 1]} : vector<1x192xf32> to vector<1x128xf32>
    %180 = vector.extract_strided_slice %175 {offsets = [0, 0], sizes = [1, 128], strides = [1, 1]} : vector<1x192xf32> to vector<1x128xf32>
    %181 = arith.addf %179, %180 : vector<1x128xf32>
    %182 = arith.negf %181 : vector<1x128xf32>
    %183 = math.exp %182 : vector<1x128xf32>
    %cst_46 = arith.constant 1.000000e+00 : f32
    %184 = vector.broadcast %cst_46 : f32 to vector<1x128xf32>
    %185 = arith.addf %184, %183 : vector<1x128xf32>
    %186 = arith.divf %184, %185 : vector<1x128xf32>
    %187 = vector.extract_strided_slice %186 {offsets = [0, 0], sizes = [1, 64], strides = [1, 1]} : vector<1x128xf32> to vector<1x64xf32>
    %188 = vector.extract_strided_slice %186 {offsets = [0, 64], sizes = [1, 64], strides = [1, 1]} : vector<1x128xf32> to vector<1x64xf32>
    %189 = vector.extract_strided_slice %178 {offsets = [0, 128], sizes = [1, 64], strides = [1, 1]} : vector<1x192xf32> to vector<1x64xf32>
    %190 = vector.extract_strided_slice %175 {offsets = [0, 128], sizes = [1, 64], strides = [1, 1]} : vector<1x192xf32> to vector<1x64xf32>
    %191 = arith.addf %190, %53 : vector<1x64xf32>
    %192 = arith.mulf %187, %191 : vector<1x64xf32>
    %193 = arith.addf %189, %192 : vector<1x64xf32>
    %194 = math.tanh %193 : vector<1x64xf32>
    %cst_47 = arith.constant 1.000000e+00 : f32
    %195 = vector.broadcast %cst_47 : f32 to vector<1x64xf32>
    %196 = arith.subf %195, %188 : vector<1x64xf32>
    %197 = arith.mulf %196, %194 : vector<1x64xf32>
    %198 = arith.mulf %188, %170 : vector<1x64xf32>
    %199 = arith.addf %197, %198 : vector<1x64xf32>
    %200 = vector.extract_strided_slice %199 {offsets = [0, 0], sizes = [1, 32], strides = [1, 1]} : vector<1x64xf32> to vector<1x32xf32>
    %c4_48 = arith.constant 4 : index
    %c0_49 = arith.constant 0 : index
    %201 = vector.load %arg6[%c4_48, %c0_49] : memref<8x64xf32, #tpu.memory_space<vmem>>, vector<1x32xf32>
    tpu.vector_store %arg6[%c4_48, %c0_49], %200 {strides = array<i32>} : memref<8x64xf32, #tpu.memory_space<vmem>>, vector<1x32xf32>,
    %202 = vector.extract_strided_slice %199 {offsets = [0, 32], sizes = [1, 32], strides = [1, 1]} : vector<1x64xf32> to vector<1x32xf32>
    %c3_50 = arith.constant 3 : index
    %c32_51 = arith.constant 32 : index
    %203 = vector.load %arg6[%c3_50, %c32_51] : memref<8x64xf32, #tpu.memory_space<vmem>>, vector<1x32xf32>
    tpu.vector_store %arg6[%c3_50, %c32_51], %202 {strides = array<i32>} : memref<8x64xf32, #tpu.memory_space<vmem>>, vector<1x32xf32>,
    %cst_52 = arith.constant dense<0.000000e+00> : vector<1x192xf32>
    %204 = tpu.matmul %199, %51, %cst_52 {dimension_numbers = #tpu.dot_dimension_numbers<[1], [0], [0], [1], [0, 0, 1, 1], [], []>} : vector<1x64xf32>, vector<64x192xf32>, vector<1x192xf32> -> vector<1x192xf32>
    %205 = vector.extract_strided_slice %56 {offsets = [5, 0], sizes = [1, 192], strides = [1, 1]} : vector<8x192xf32> to vector<1x192xf32>
    %206 = vector.extract_strided_slice %57 {offsets = [2, 0], sizes = [1, 192], strides = [1, 1]} : vector<8x192xf32> to vector<1x192xf32>
    %207 = arith.addf %205, %206 : vector<1x192xf32>
    %208 = vector.extract_strided_slice %207 {offsets = [0, 0], sizes = [1, 128], strides = [1, 1]} : vector<1x192xf32> to vector<1x128xf32>
    %209 = vector.extract_strided_slice %204 {offsets = [0, 0], sizes = [1, 128], strides = [1, 1]} : vector<1x192xf32> to vector<1x128xf32>
    %210 = arith.addf %208, %209 : vector<1x128xf32>
    %211 = arith.negf %210 : vector<1x128xf32>
    %212 = math.exp %211 : vector<1x128xf32>
    %cst_53 = arith.constant 1.000000e+00 : f32
    %213 = vector.broadcast %cst_53 : f32 to vector<1x128xf32>
    %214 = arith.addf %213, %212 : vector<1x128xf32>
    %215 = arith.divf %213, %214 : vector<1x128xf32>
    %216 = vector.extract_strided_slice %215 {offsets = [0, 0], sizes = [1, 64], strides = [1, 1]} : vector<1x128xf32> to vector<1x64xf32>
    %217 = vector.extract_strided_slice %215 {offsets = [0, 64], sizes = [1, 64], strides = [1, 1]} : vector<1x128xf32> to vector<1x64xf32>
    %218 = vector.extract_strided_slice %207 {offsets = [0, 128], sizes = [1, 64], strides = [1, 1]} : vector<1x192xf32> to vector<1x64xf32>
    %219 = vector.extract_strided_slice %204 {offsets = [0, 128], sizes = [1, 64], strides = [1, 1]} : vector<1x192xf32> to vector<1x64xf32>
    %220 = arith.addf %219, %53 : vector<1x64xf32>
    %221 = arith.mulf %216, %220 : vector<1x64xf32>
    %222 = arith.addf %218, %221 : vector<1x64xf32>
    %223 = math.tanh %222 : vector<1x64xf32>
    %cst_54 = arith.constant 1.000000e+00 : f32
    %224 = vector.broadcast %cst_54 : f32 to vector<1x64xf32>
    %225 = arith.subf %224, %217 : vector<1x64xf32>
    %226 = arith.mulf %225, %223 : vector<1x64xf32>
    %227 = arith.mulf %217, %199 : vector<1x64xf32>
    %228 = arith.addf %226, %227 : vector<1x64xf32>
    %229 = vector.extract_strided_slice %228 {offsets = [0, 0], sizes = [1, 32], strides = [1, 1]} : vector<1x64xf32> to vector<1x32xf32>
    %c5_55 = arith.constant 5 : index
    %c0_56 = arith.constant 0 : index
    %230 = vector.load %arg6[%c5_55, %c0_56] : memref<8x64xf32, #tpu.memory_space<vmem>>, vector<1x32xf32>
    tpu.vector_store %arg6[%c5_55, %c0_56], %229 {strides = array<i32>} : memref<8x64xf32, #tpu.memory_space<vmem>>, vector<1x32xf32>,
    %231 = vector.extract_strided_slice %228 {offsets = [0, 32], sizes = [1, 32], strides = [1, 1]} : vector<1x64xf32> to vector<1x32xf32>
    %c2_57 = arith.constant 2 : index
    %c32_58 = arith.constant 32 : index
    %232 = vector.load %arg6[%c2_57, %c32_58] : memref<8x64xf32, #tpu.memory_space<vmem>>, vector<1x32xf32>
    tpu.vector_store %arg6[%c2_57, %c32_58], %231 {strides = array<i32>} : memref<8x64xf32, #tpu.memory_space<vmem>>, vector<1x32xf32>,
    %cst_59 = arith.constant dense<0.000000e+00> : vector<1x192xf32>
    %233 = tpu.matmul %228, %51, %cst_59 {dimension_numbers = #tpu.dot_dimension_numbers<[1], [0], [0], [1], [0, 0, 1, 1], [], []>} : vector<1x64xf32>, vector<64x192xf32>, vector<1x192xf32> -> vector<1x192xf32>
    %234 = vector.extract_strided_slice %56 {offsets = [6, 0], sizes = [1, 192], strides = [1, 1]} : vector<8x192xf32> to vector<1x192xf32>
    %235 = vector.extract_strided_slice %57 {offsets = [1, 0], sizes = [1, 192], strides = [1, 1]} : vector<8x192xf32> to vector<1x192xf32>
    %236 = arith.addf %234, %235 : vector<1x192xf32>
    %237 = vector.extract_strided_slice %236 {offsets = [0, 0], sizes = [1, 128], strides = [1, 1]} : vector<1x192xf32> to vector<1x128xf32>
    %238 = vector.extract_strided_slice %233 {offsets = [0, 0], sizes = [1, 128], strides = [1, 1]} : vector<1x192xf32> to vector<1x128xf32>
    %239 = arith.addf %237, %238 : vector<1x128xf32>
    %240 = arith.negf %239 : vector<1x128xf32>
    %241 = math.exp %240 : vector<1x128xf32>
    %cst_60 = arith.constant 1.000000e+00 : f32
    %242 = vector.broadcast %cst_60 : f32 to vector<1x128xf32>
    %243 = arith.addf %242, %241 : vector<1x128xf32>
    %244 = arith.divf %242, %243 : vector<1x128xf32>
    %245 = vector.extract_strided_slice %244 {offsets = [0, 0], sizes = [1, 64], strides = [1, 1]} : vector<1x128xf32> to vector<1x64xf32>
    %246 = vector.extract_strided_slice %244 {offsets = [0, 64], sizes = [1, 64], strides = [1, 1]} : vector<1x128xf32> to vector<1x64xf32>
    %247 = vector.extract_strided_slice %236 {offsets = [0, 128], sizes = [1, 64], strides = [1, 1]} : vector<1x192xf32> to vector<1x64xf32>
    %248 = vector.extract_strided_slice %233 {offsets = [0, 128], sizes = [1, 64], strides = [1, 1]} : vector<1x192xf32> to vector<1x64xf32>
    %249 = arith.addf %248, %53 : vector<1x64xf32>
    %250 = arith.mulf %245, %249 : vector<1x64xf32>
    %251 = arith.addf %247, %250 : vector<1x64xf32>
    %252 = math.tanh %251 : vector<1x64xf32>
    %cst_61 = arith.constant 1.000000e+00 : f32
    %253 = vector.broadcast %cst_61 : f32 to vector<1x64xf32>
    %254 = arith.subf %253, %246 : vector<1x64xf32>
    %255 = arith.mulf %254, %252 : vector<1x64xf32>
    %256 = arith.mulf %246, %228 : vector<1x64xf32>
    %257 = arith.addf %255, %256 : vector<1x64xf32>
    %258 = vector.extract_strided_slice %257 {offsets = [0, 0], sizes = [1, 32], strides = [1, 1]} : vector<1x64xf32> to vector<1x32xf32>
    %c6_62 = arith.constant 6 : index
    %c0_63 = arith.constant 0 : index
    %259 = vector.load %arg6[%c6_62, %c0_63] : memref<8x64xf32, #tpu.memory_space<vmem>>, vector<1x32xf32>
    tpu.vector_store %arg6[%c6_62, %c0_63], %258 {strides = array<i32>} : memref<8x64xf32, #tpu.memory_space<vmem>>, vector<1x32xf32>,
    %260 = vector.extract_strided_slice %257 {offsets = [0, 32], sizes = [1, 32], strides = [1, 1]} : vector<1x64xf32> to vector<1x32xf32>
    %c1_64 = arith.constant 1 : index
    %c32_65 = arith.constant 32 : index
    %261 = vector.load %arg6[%c1_64, %c32_65] : memref<8x64xf32, #tpu.memory_space<vmem>>, vector<1x32xf32>
    tpu.vector_store %arg6[%c1_64, %c32_65], %260 {strides = array<i32>} : memref<8x64xf32, #tpu.memory_space<vmem>>, vector<1x32xf32>,
    %cst_66 = arith.constant dense<0.000000e+00> : vector<1x192xf32>
    %262 = tpu.matmul %257, %51, %cst_66 {dimension_numbers = #tpu.dot_dimension_numbers<[1], [0], [0], [1], [0, 0, 1, 1], [], []>} : vector<1x64xf32>, vector<64x192xf32>, vector<1x192xf32> -> vector<1x192xf32>
    %263 = vector.extract_strided_slice %56 {offsets = [7, 0], sizes = [1, 192], strides = [1, 1]} : vector<8x192xf32> to vector<1x192xf32>
    %264 = vector.extract_strided_slice %57 {offsets = [0, 0], sizes = [1, 192], strides = [1, 1]} : vector<8x192xf32> to vector<1x192xf32>
    %265 = arith.addf %263, %264 : vector<1x192xf32>
    %266 = vector.extract_strided_slice %265 {offsets = [0, 0], sizes = [1, 128], strides = [1, 1]} : vector<1x192xf32> to vector<1x128xf32>
    %267 = vector.extract_strided_slice %262 {offsets = [0, 0], sizes = [1, 128], strides = [1, 1]} : vector<1x192xf32> to vector<1x128xf32>
    %268 = arith.addf %266, %267 : vector<1x128xf32>
    %269 = arith.negf %268 : vector<1x128xf32>
    %270 = math.exp %269 : vector<1x128xf32>
    %cst_67 = arith.constant 1.000000e+00 : f32
    %271 = vector.broadcast %cst_67 : f32 to vector<1x128xf32>
    %272 = arith.addf %271, %270 : vector<1x128xf32>
    %273 = arith.divf %271, %272 : vector<1x128xf32>
    %274 = vector.extract_strided_slice %273 {offsets = [0, 0], sizes = [1, 64], strides = [1, 1]} : vector<1x128xf32> to vector<1x64xf32>
    %275 = vector.extract_strided_slice %273 {offsets = [0, 64], sizes = [1, 64], strides = [1, 1]} : vector<1x128xf32> to vector<1x64xf32>
    %276 = vector.extract_strided_slice %265 {offsets = [0, 128], sizes = [1, 64], strides = [1, 1]} : vector<1x192xf32> to vector<1x64xf32>
    %277 = vector.extract_strided_slice %262 {offsets = [0, 128], sizes = [1, 64], strides = [1, 1]} : vector<1x192xf32> to vector<1x64xf32>
    %278 = arith.addf %277, %53 : vector<1x64xf32>
    %279 = arith.mulf %274, %278 : vector<1x64xf32>
    %280 = arith.addf %276, %279 : vector<1x64xf32>
    %281 = math.tanh %280 : vector<1x64xf32>
    %cst_68 = arith.constant 1.000000e+00 : f32
    %282 = vector.broadcast %cst_68 : f32 to vector<1x64xf32>
    %283 = arith.subf %282, %275 : vector<1x64xf32>
    %284 = arith.mulf %283, %281 : vector<1x64xf32>
    %285 = arith.mulf %275, %257 : vector<1x64xf32>
    %286 = arith.addf %284, %285 : vector<1x64xf32>
    %287 = vector.extract_strided_slice %286 {offsets = [0, 0], sizes = [1, 32], strides = [1, 1]} : vector<1x64xf32> to vector<1x32xf32>
    %c7_69 = arith.constant 7 : index
    %c0_70 = arith.constant 0 : index
    %288 = vector.load %arg6[%c7_69, %c0_70] : memref<8x64xf32, #tpu.memory_space<vmem>>, vector<1x32xf32>
    tpu.vector_store %arg6[%c7_69, %c0_70], %287 {strides = array<i32>} : memref<8x64xf32, #tpu.memory_space<vmem>>, vector<1x32xf32>,
    %289 = vector.extract_strided_slice %286 {offsets = [0, 32], sizes = [1, 32], strides = [1, 1]} : vector<1x64xf32> to vector<1x32xf32>
    %c0_71 = arith.constant 0 : index
    %c32_72 = arith.constant 32 : index
    %290 = vector.load %arg6[%c0_71, %c32_72] : memref<8x64xf32, #tpu.memory_space<vmem>>, vector<1x32xf32>
    tpu.vector_store %arg6[%c0_71, %c32_72], %289 {strides = array<i32>} : memref<8x64xf32, #tpu.memory_space<vmem>>, vector<1x32xf32>,
    %c0_73 = arith.constant 0 : index
    %c0_74 = arith.constant 0 : index
    %291 = vector.load %arg6[%c0_73, %c0_74] : memref<8x64xf32, #tpu.memory_space<vmem>>, vector<8x64xf32>
    %c2_75 = arith.constant 2 : index
    %c0_76 = arith.constant 0 : index
    %c0_77 = arith.constant 0 : index
    %292 = vector.load %arg3[%c2_75, %c0_76, %c0_77] : memref<7x64x192xf32, #tpu.memory_space<vmem>>, vector<1x64x192xf32>
    %293 = vector.shape_cast %292 : vector<1x64x192xf32> to vector<64x192xf32>
    %c3_78 = arith.constant 3 : index
    %c0_79 = arith.constant 0 : index
    %c0_80 = arith.constant 0 : index
    %294 = vector.load %arg3[%c3_78, %c0_79, %c0_80] : memref<7x64x192xf32, #tpu.memory_space<vmem>>, vector<1x64x192xf32>
    %295 = vector.shape_cast %294 : vector<1x64x192xf32> to vector<64x192xf32>
    %c5_81 = arith.constant 5 : index
    %c0_82 = arith.constant 0 : index
    %c0_83 = arith.constant 0 : index
    %296 = vector.load %arg3[%c5_81, %c0_82, %c0_83] : memref<7x64x192xf32, #tpu.memory_space<vmem>>, vector<1x64x192xf32>
    %297 = vector.shape_cast %296 : vector<1x64x192xf32> to vector<64x192xf32>
    %c1_84 = arith.constant 1 : index
    %c0_85 = arith.constant 0 : index
    %298 = vector.load %arg4[%c1_84, %c0_85] : memref<5x192xf32, #tpu.memory_space<vmem>>, vector<1x192xf32>
    %c3_86 = arith.constant 3 : index
    %c0_87 = arith.constant 0 : index
    %299 = vector.load %arg4[%c3_86, %c0_87] : memref<5x192xf32, #tpu.memory_space<vmem>>, vector<1x64xf32>
    %cst_88 = arith.constant dense<0.000000e+00> : vector<8x192xf32>
    %300 = tpu.matmul %291, %293, %cst_88 {dimension_numbers = #tpu.dot_dimension_numbers<[1], [0], [0], [1], [0, 0, 1, 1], [], []>} : vector<8x64xf32>, vector<64x192xf32>, vector<8x192xf32> -> vector<8x192xf32>
    %301 = vector.broadcast %298 : vector<1x192xf32> to vector<8x192xf32>
    %302 = arith.addf %300, %301 : vector<8x192xf32>
    %cst_89 = arith.constant dense<0.000000e+00> : vector<8x192xf32>
    %303 = tpu.matmul %291, %295, %cst_89 {dimension_numbers = #tpu.dot_dimension_numbers<[1], [0], [0], [1], [0, 0, 1, 1], [], []>} : vector<8x64xf32>, vector<64x192xf32>, vector<8x192xf32> -> vector<8x192xf32>
    %cst_90 = arith.constant 0.000000e+00 : f32
    %304 = vector.broadcast %cst_90 : f32 to vector<1x64xf32>
    %cst_91 = arith.constant dense<0.000000e+00> : vector<1x192xf32>
    %305 = tpu.matmul %304, %297, %cst_91 {dimension_numbers = #tpu.dot_dimension_numbers<[1], [0], [0], [1], [0, 0, 1, 1], [], []>} : vector<1x64xf32>, vector<64x192xf32>, vector<1x192xf32> -> vector<1x192xf32>
    %306 = vector.extract_strided_slice %302 {offsets = [0, 0], sizes = [1, 192], strides = [1, 1]} : vector<8x192xf32> to vector<1x192xf32>
    %307 = vector.extract_strided_slice %303 {offsets = [7, 0], sizes = [1, 192], strides = [1, 1]} : vector<8x192xf32> to vector<1x192xf32>
    %308 = arith.addf %306, %307 : vector<1x192xf32>
    %309 = vector.extract_strided_slice %308 {offsets = [0, 0], sizes = [1, 128], strides = [1, 1]} : vector<1x192xf32> to vector<1x128xf32>
    %310 = vector.extract_strided_slice %305 {offsets = [0, 0], sizes = [1, 128], strides = [1, 1]} : vector<1x192xf32> to vector<1x128xf32>
    %311 = arith.addf %309, %310 : vector<1x128xf32>
    %312 = arith.negf %311 : vector<1x128xf32>
    %313 = math.exp %312 : vector<1x128xf32>
    %cst_92 = arith.constant 1.000000e+00 : f32
    %314 = vector.broadcast %cst_92 : f32 to vector<1x128xf32>
    %315 = arith.addf %314, %313 : vector<1x128xf32>
    %316 = arith.divf %314, %315 : vector<1x128xf32>
    %317 = vector.extract_strided_slice %316 {offsets = [0, 0], sizes = [1, 64], strides = [1, 1]} : vector<1x128xf32> to vector<1x64xf32>
    %318 = vector.extract_strided_slice %316 {offsets = [0, 64], sizes = [1, 64], strides = [1, 1]} : vector<1x128xf32> to vector<1x64xf32>
    %319 = vector.extract_strided_slice %308 {offsets = [0, 128], sizes = [1, 64], strides = [1, 1]} : vector<1x192xf32> to vector<1x64xf32>
    %320 = vector.extract_strided_slice %305 {offsets = [0, 128], sizes = [1, 64], strides = [1, 1]} : vector<1x192xf32> to vector<1x64xf32>
    %321 = arith.addf %320, %299 : vector<1x64xf32>
    %322 = arith.mulf %317, %321 : vector<1x64xf32>
    %323 = arith.addf %319, %322 : vector<1x64xf32>
    %324 = math.tanh %323 : vector<1x64xf32>
    %cst_93 = arith.constant 1.000000e+00 : f32
    %325 = vector.broadcast %cst_93 : f32 to vector<1x64xf32>
    %326 = arith.subf %325, %318 : vector<1x64xf32>
    %327 = arith.mulf %326, %324 : vector<1x64xf32>
    %328 = arith.mulf %318, %304 : vector<1x64xf32>
    %329 = arith.addf %327, %328 : vector<1x64xf32>
    %330 = vector.extract_strided_slice %329 {offsets = [0, 32], sizes = [1, 32], strides = [1, 1]} : vector<1x64xf32> to vector<1x32xf32>
    %c7_94 = arith.constant 7 : index
    %c32_95 = arith.constant 32 : index
    %331 = vector.load %arg6[%c7_94, %c32_95] : memref<8x64xf32, #tpu.memory_space<vmem>>, vector<1x32xf32>
    tpu.vector_store %arg6[%c7_94, %c32_95], %330 {strides = array<i32>} : memref<8x64xf32, #tpu.memory_space<vmem>>, vector<1x32xf32>,
    %cst_96 = arith.constant dense<0.000000e+00> : vector<1x192xf32>
    %332 = tpu.matmul %329, %297, %cst_96 {dimension_numbers = #tpu.dot_dimension_numbers<[1], [0], [0], [1], [0, 0, 1, 1], [], []>} : vector<1x64xf32>, vector<64x192xf32>, vector<1x192xf32> -> vector<1x192xf32>
    %333 = vector.extract_strided_slice %302 {offsets = [1, 0], sizes = [1, 192], strides = [1, 1]} : vector<8x192xf32> to vector<1x192xf32>
    %334 = vector.extract_strided_slice %303 {offsets = [6, 0], sizes = [1, 192], strides = [1, 1]} : vector<8x192xf32> to vector<1x192xf32>
    %335 = arith.addf %333, %334 : vector<1x192xf32>
    %336 = vector.extract_strided_slice %335 {offsets = [0, 0], sizes = [1, 128], strides = [1, 1]} : vector<1x192xf32> to vector<1x128xf32>
    %337 = vector.extract_strided_slice %332 {offsets = [0, 0], sizes = [1, 128], strides = [1, 1]} : vector<1x192xf32> to vector<1x128xf32>
    %338 = arith.addf %336, %337 : vector<1x128xf32>
    %339 = arith.negf %338 : vector<1x128xf32>
    %340 = math.exp %339 : vector<1x128xf32>
    %cst_97 = arith.constant 1.000000e+00 : f32
    %341 = vector.broadcast %cst_97 : f32 to vector<1x128xf32>
    %342 = arith.addf %341, %340 : vector<1x128xf32>
    %343 = arith.divf %341, %342 : vector<1x128xf32>
    %344 = vector.extract_strided_slice %343 {offsets = [0, 0], sizes = [1, 64], strides = [1, 1]} : vector<1x128xf32> to vector<1x64xf32>
    %345 = vector.extract_strided_slice %343 {offsets = [0, 64], sizes = [1, 64], strides = [1, 1]} : vector<1x128xf32> to vector<1x64xf32>
    %346 = vector.extract_strided_slice %335 {offsets = [0, 128], sizes = [1, 64], strides = [1, 1]} : vector<1x192xf32> to vector<1x64xf32>
    %347 = vector.extract_strided_slice %332 {offsets = [0, 128], sizes = [1, 64], strides = [1, 1]} : vector<1x192xf32> to vector<1x64xf32>
    %348 = arith.addf %347, %299 : vector<1x64xf32>
    %349 = arith.mulf %344, %348 : vector<1x64xf32>
    %350 = arith.addf %346, %349 : vector<1x64xf32>
    %351 = math.tanh %350 : vector<1x64xf32>
    %cst_98 = arith.constant 1.000000e+00 : f32
    %352 = vector.broadcast %cst_98 : f32 to vector<1x64xf32>
    %353 = arith.subf %352, %345 : vector<1x64xf32>
    %354 = arith.mulf %353, %351 : vector<1x64xf32>
    %355 = arith.mulf %345, %329 : vector<1x64xf32>
    %356 = arith.addf %354, %355 : vector<1x64xf32>
    %cst_99 = arith.constant dense<0.000000e+00> : vector<1x192xf32>
    %357 = tpu.matmul %356, %297, %cst_99 {dimension_numbers = #tpu.dot_dimension_numbers<[1], [0], [0], [1], [0, 0, 1, 1], [], []>} : vector<1x64xf32>, vector<64x192xf32>, vector<1x192xf32> -> vector<1x192xf32>
    %358 = vector.extract_strided_slice %302 {offsets = [2, 0], sizes = [1, 192], strides = [1, 1]} : vector<8x192xf32> to vector<1x192xf32>
    %359 = vector.extract_strided_slice %303 {offsets = [5, 0], sizes = [1, 192], strides = [1, 1]} : vector<8x192xf32> to vector<1x192xf32>
    %360 = arith.addf %358, %359 : vector<1x192xf32>
    %361 = vector.extract_strided_slice %360 {offsets = [0, 0], sizes = [1, 128], strides = [1, 1]} : vector<1x192xf32> to vector<1x128xf32>
    %362 = vector.extract_strided_slice %357 {offsets = [0, 0], sizes = [1, 128], strides = [1, 1]} : vector<1x192xf32> to vector<1x128xf32>
    %363 = arith.addf %361, %362 : vector<1x128xf32>
    %364 = arith.negf %363 : vector<1x128xf32>
    %365 = math.exp %364 : vector<1x128xf32>
    %cst_100 = arith.constant 1.000000e+00 : f32
    %366 = vector.broadcast %cst_100 : f32 to vector<1x128xf32>
    %367 = arith.addf %366, %365 : vector<1x128xf32>
    %368 = arith.divf %366, %367 : vector<1x128xf32>
    %369 = vector.extract_strided_slice %368 {offsets = [0, 0], sizes = [1, 64], strides = [1, 1]} : vector<1x128xf32> to vector<1x64xf32>
    %370 = vector.extract_strided_slice %368 {offsets = [0, 64], sizes = [1, 64], strides = [1, 1]} : vector<1x128xf32> to vector<1x64xf32>
    %371 = vector.extract_strided_slice %360 {offsets = [0, 128], sizes = [1, 64], strides = [1, 1]} : vector<1x192xf32> to vector<1x64xf32>
    %372 = vector.extract_strided_slice %357 {offsets = [0, 128], sizes = [1, 64], strides = [1, 1]} : vector<1x192xf32> to vector<1x64xf32>
    %373 = arith.addf %372, %299 : vector<1x64xf32>
    %374 = arith.mulf %369, %373 : vector<1x64xf32>
    %375 = arith.addf %371, %374 : vector<1x64xf32>
    %376 = math.tanh %375 : vector<1x64xf32>
    %cst_101 = arith.constant 1.000000e+00 : f32
    %377 = vector.broadcast %cst_101 : f32 to vector<1x64xf32>
    %378 = arith.subf %377, %370 : vector<1x64xf32>
    %379 = arith.mulf %378, %376 : vector<1x64xf32>
    %380 = arith.mulf %370, %356 : vector<1x64xf32>
    %381 = arith.addf %379, %380 : vector<1x64xf32>
    %cst_102 = arith.constant dense<0.000000e+00> : vector<1x192xf32>
    %382 = tpu.matmul %381, %297, %cst_102 {dimension_numbers = #tpu.dot_dimension_numbers<[1], [0], [0], [1], [0, 0, 1, 1], [], []>} : vector<1x64xf32>, vector<64x192xf32>, vector<1x192xf32> -> vector<1x192xf32>
    %383 = vector.extract_strided_slice %302 {offsets = [3, 0], sizes = [1, 192], strides = [1, 1]} : vector<8x192xf32> to vector<1x192xf32>
    %384 = vector.extract_strided_slice %303 {offsets = [4, 0], sizes = [1, 192], strides = [1, 1]} : vector<8x192xf32> to vector<1x192xf32>
    %385 = arith.addf %383, %384 : vector<1x192xf32>
    %386 = vector.extract_strided_slice %385 {offsets = [0, 0], sizes = [1, 128], strides = [1, 1]} : vector<1x192xf32> to vector<1x128xf32>
    %387 = vector.extract_strided_slice %382 {offsets = [0, 0], sizes = [1, 128], strides = [1, 1]} : vector<1x192xf32> to vector<1x128xf32>
    %388 = arith.addf %386, %387 : vector<1x128xf32>
    %389 = arith.negf %388 : vector<1x128xf32>
    %390 = math.exp %389 : vector<1x128xf32>
    %cst_103 = arith.constant 1.000000e+00 : f32
    %391 = vector.broadcast %cst_103 : f32 to vector<1x128xf32>
    %392 = arith.addf %391, %390 : vector<1x128xf32>
    %393 = arith.divf %391, %392 : vector<1x128xf32>
    %394 = vector.extract_strided_slice %393 {offsets = [0, 0], sizes = [1, 64], strides = [1, 1]} : vector<1x128xf32> to vector<1x64xf32>
    %395 = vector.extract_strided_slice %393 {offsets = [0, 64], sizes = [1, 64], strides = [1, 1]} : vector<1x128xf32> to vector<1x64xf32>
    %396 = vector.extract_strided_slice %385 {offsets = [0, 128], sizes = [1, 64], strides = [1, 1]} : vector<1x192xf32> to vector<1x64xf32>
    %397 = vector.extract_strided_slice %382 {offsets = [0, 128], sizes = [1, 64], strides = [1, 1]} : vector<1x192xf32> to vector<1x64xf32>
    %398 = arith.addf %397, %299 : vector<1x64xf32>
    %399 = arith.mulf %394, %398 : vector<1x64xf32>
    %400 = arith.addf %396, %399 : vector<1x64xf32>
    %401 = math.tanh %400 : vector<1x64xf32>
    %cst_104 = arith.constant 1.000000e+00 : f32
    %402 = vector.broadcast %cst_104 : f32 to vector<1x64xf32>
    %403 = arith.subf %402, %395 : vector<1x64xf32>
    %404 = arith.mulf %403, %401 : vector<1x64xf32>
    %405 = arith.mulf %395, %381 : vector<1x64xf32>
    %406 = arith.addf %404, %405 : vector<1x64xf32>
    %cst_105 = arith.constant dense<0.000000e+00> : vector<1x192xf32>
    %407 = tpu.matmul %406, %297, %cst_105 {dimension_numbers = #tpu.dot_dimension_numbers<[1], [0], [0], [1], [0, 0, 1, 1], [], []>} : vector<1x64xf32>, vector<64x192xf32>, vector<1x192xf32> -> vector<1x192xf32>
    %408 = vector.extract_strided_slice %302 {offsets = [4, 0], sizes = [1, 192], strides = [1, 1]} : vector<8x192xf32> to vector<1x192xf32>
    %409 = vector.extract_strided_slice %303 {offsets = [3, 0], sizes = [1, 192], strides = [1, 1]} : vector<8x192xf32> to vector<1x192xf32>
    %410 = arith.addf %408, %409 : vector<1x192xf32>
    %411 = vector.extract_strided_slice %410 {offsets = [0, 0], sizes = [1, 128], strides = [1, 1]} : vector<1x192xf32> to vector<1x128xf32>
    %412 = vector.extract_strided_slice %407 {offsets = [0, 0], sizes = [1, 128], strides = [1, 1]} : vector<1x192xf32> to vector<1x128xf32>
    %413 = arith.addf %411, %412 : vector<1x128xf32>
    %414 = arith.negf %413 : vector<1x128xf32>
    %415 = math.exp %414 : vector<1x128xf32>
    %cst_106 = arith.constant 1.000000e+00 : f32
    %416 = vector.broadcast %cst_106 : f32 to vector<1x128xf32>
    %417 = arith.addf %416, %415 : vector<1x128xf32>
    %418 = arith.divf %416, %417 : vector<1x128xf32>
    %419 = vector.extract_strided_slice %418 {offsets = [0, 0], sizes = [1, 64], strides = [1, 1]} : vector<1x128xf32> to vector<1x64xf32>
    %420 = vector.extract_strided_slice %418 {offsets = [0, 64], sizes = [1, 64], strides = [1, 1]} : vector<1x128xf32> to vector<1x64xf32>
    %421 = vector.extract_strided_slice %410 {offsets = [0, 128], sizes = [1, 64], strides = [1, 1]} : vector<1x192xf32> to vector<1x64xf32>
    %422 = vector.extract_strided_slice %407 {offsets = [0, 128], sizes = [1, 64], strides = [1, 1]} : vector<1x192xf32> to vector<1x64xf32>
    %423 = arith.addf %422, %299 : vector<1x64xf32>
    %424 = arith.mulf %419, %423 : vector<1x64xf32>
    %425 = arith.addf %421, %424 : vector<1x64xf32>
    %426 = math.tanh %425 : vector<1x64xf32>
    %cst_107 = arith.constant 1.000000e+00 : f32
    %427 = vector.broadcast %cst_107 : f32 to vector<1x64xf32>
    %428 = arith.subf %427, %420 : vector<1x64xf32>
    %429 = arith.mulf %428, %426 : vector<1x64xf32>
    %430 = arith.mulf %420, %406 : vector<1x64xf32>
    %431 = arith.addf %429, %430 : vector<1x64xf32>
    %cst_108 = arith.constant dense<0.000000e+00> : vector<1x192xf32>
    %432 = tpu.matmul %431, %297, %cst_108 {dimension_numbers = #tpu.dot_dimension_numbers<[1], [0], [0], [1], [0, 0, 1, 1], [], []>} : vector<1x64xf32>, vector<64x192xf32>, vector<1x192xf32> -> vector<1x192xf32>
    %433 = vector.extract_strided_slice %302 {offsets = [5, 0], sizes = [1, 192], strides = [1, 1]} : vector<8x192xf32> to vector<1x192xf32>
    %434 = vector.extract_strided_slice %303 {offsets = [2, 0], sizes = [1, 192], strides = [1, 1]} : vector<8x192xf32> to vector<1x192xf32>
    %435 = arith.addf %433, %434 : vector<1x192xf32>
    %436 = vector.extract_strided_slice %435 {offsets = [0, 0], sizes = [1, 128], strides = [1, 1]} : vector<1x192xf32> to vector<1x128xf32>
    %437 = vector.extract_strided_slice %432 {offsets = [0, 0], sizes = [1, 128], strides = [1, 1]} : vector<1x192xf32> to vector<1x128xf32>
    %438 = arith.addf %436, %437 : vector<1x128xf32>
    %439 = arith.negf %438 : vector<1x128xf32>
    %440 = math.exp %439 : vector<1x128xf32>
    %cst_109 = arith.constant 1.000000e+00 : f32
    %441 = vector.broadcast %cst_109 : f32 to vector<1x128xf32>
    %442 = arith.addf %441, %440 : vector<1x128xf32>
    %443 = arith.divf %441, %442 : vector<1x128xf32>
    %444 = vector.extract_strided_slice %443 {offsets = [0, 0], sizes = [1, 64], strides = [1, 1]} : vector<1x128xf32> to vector<1x64xf32>
    %445 = vector.extract_strided_slice %443 {offsets = [0, 64], sizes = [1, 64], strides = [1, 1]} : vector<1x128xf32> to vector<1x64xf32>
    %446 = vector.extract_strided_slice %435 {offsets = [0, 128], sizes = [1, 64], strides = [1, 1]} : vector<1x192xf32> to vector<1x64xf32>
    %447 = vector.extract_strided_slice %432 {offsets = [0, 128], sizes = [1, 64], strides = [1, 1]} : vector<1x192xf32> to vector<1x64xf32>
    %448 = arith.addf %447, %299 : vector<1x64xf32>
    %449 = arith.mulf %444, %448 : vector<1x64xf32>
    %450 = arith.addf %446, %449 : vector<1x64xf32>
    %451 = math.tanh %450 : vector<1x64xf32>
    %cst_110 = arith.constant 1.000000e+00 : f32
    %452 = vector.broadcast %cst_110 : f32 to vector<1x64xf32>
    %453 = arith.subf %452, %445 : vector<1x64xf32>
    %454 = arith.mulf %453, %451 : vector<1x64xf32>
    %455 = arith.mulf %445, %431 : vector<1x64xf32>
    %456 = arith.addf %454, %455 : vector<1x64xf32>
    %cst_111 = arith.constant dense<0.000000e+00> : vector<1x192xf32>
    %457 = tpu.matmul %456, %297, %cst_111 {dimension_numbers = #tpu.dot_dimension_numbers<[1], [0], [0], [1], [0, 0, 1, 1], [], []>} : vector<1x64xf32>, vector<64x192xf32>, vector<1x192xf32> -> vector<1x192xf32>
    %458 = vector.extract_strided_slice %302 {offsets = [6, 0], sizes = [1, 192], strides = [1, 1]} : vector<8x192xf32> to vector<1x192xf32>
    %459 = vector.extract_strided_slice %303 {offsets = [1, 0], sizes = [1, 192], strides = [1, 1]} : vector<8x192xf32> to vector<1x192xf32>
    %460 = arith.addf %458, %459 : vector<1x192xf32>
    %461 = vector.extract_strided_slice %460 {offsets = [0, 0], sizes = [1, 128], strides = [1, 1]} : vector<1x192xf32> to vector<1x128xf32>
    %462 = vector.extract_strided_slice %457 {offsets = [0, 0], sizes = [1, 128], strides = [1, 1]} : vector<1x192xf32> to vector<1x128xf32>
    %463 = arith.addf %461, %462 : vector<1x128xf32>
    %464 = arith.negf %463 : vector<1x128xf32>
    %465 = math.exp %464 : vector<1x128xf32>
    %cst_112 = arith.constant 1.000000e+00 : f32
    %466 = vector.broadcast %cst_112 : f32 to vector<1x128xf32>
    %467 = arith.addf %466, %465 : vector<1x128xf32>
    %468 = arith.divf %466, %467 : vector<1x128xf32>
    %469 = vector.extract_strided_slice %468 {offsets = [0, 0], sizes = [1, 64], strides = [1, 1]} : vector<1x128xf32> to vector<1x64xf32>
    %470 = vector.extract_strided_slice %468 {offsets = [0, 64], sizes = [1, 64], strides = [1, 1]} : vector<1x128xf32> to vector<1x64xf32>
    %471 = vector.extract_strided_slice %460 {offsets = [0, 128], sizes = [1, 64], strides = [1, 1]} : vector<1x192xf32> to vector<1x64xf32>
    %472 = vector.extract_strided_slice %457 {offsets = [0, 128], sizes = [1, 64], strides = [1, 1]} : vector<1x192xf32> to vector<1x64xf32>
    %473 = arith.addf %472, %299 : vector<1x64xf32>
    %474 = arith.mulf %469, %473 : vector<1x64xf32>
    %475 = arith.addf %471, %474 : vector<1x64xf32>
    %476 = math.tanh %475 : vector<1x64xf32>
    %cst_113 = arith.constant 1.000000e+00 : f32
    %477 = vector.broadcast %cst_113 : f32 to vector<1x64xf32>
    %478 = arith.subf %477, %470 : vector<1x64xf32>
    %479 = arith.mulf %478, %476 : vector<1x64xf32>
    %480 = arith.mulf %470, %456 : vector<1x64xf32>
    %481 = arith.addf %479, %480 : vector<1x64xf32>
    %cst_114 = arith.constant dense<0.000000e+00> : vector<1x192xf32>
    %482 = tpu.matmul %481, %297, %cst_114 {dimension_numbers = #tpu.dot_dimension_numbers<[1], [0], [0], [1], [0, 0, 1, 1], [], []>} : vector<1x64xf32>, vector<64x192xf32>, vector<1x192xf32> -> vector<1x192xf32>
    %483 = vector.extract_strided_slice %302 {offsets = [7, 0], sizes = [1, 192], strides = [1, 1]} : vector<8x192xf32> to vector<1x192xf32>
    %484 = vector.extract_strided_slice %303 {offsets = [0, 0], sizes = [1, 192], strides = [1, 1]} : vector<8x192xf32> to vector<1x192xf32>
    %485 = arith.addf %483, %484 : vector<1x192xf32>
    %486 = vector.extract_strided_slice %485 {offsets = [0, 0], sizes = [1, 128], strides = [1, 1]} : vector<1x192xf32> to vector<1x128xf32>
    %487 = vector.extract_strided_slice %482 {offsets = [0, 0], sizes = [1, 128], strides = [1, 1]} : vector<1x192xf32> to vector<1x128xf32>
    %488 = arith.addf %486, %487 : vector<1x128xf32>
    %489 = arith.negf %488 : vector<1x128xf32>
    %490 = math.exp %489 : vector<1x128xf32>
    %cst_115 = arith.constant 1.000000e+00 : f32
    %491 = vector.broadcast %cst_115 : f32 to vector<1x128xf32>
    %492 = arith.addf %491, %490 : vector<1x128xf32>
    %493 = arith.divf %491, %492 : vector<1x128xf32>
    %494 = vector.extract_strided_slice %493 {offsets = [0, 0], sizes = [1, 64], strides = [1, 1]} : vector<1x128xf32> to vector<1x64xf32>
    %495 = vector.extract_strided_slice %493 {offsets = [0, 64], sizes = [1, 64], strides = [1, 1]} : vector<1x128xf32> to vector<1x64xf32>
    %496 = vector.extract_strided_slice %485 {offsets = [0, 128], sizes = [1, 64], strides = [1, 1]} : vector<1x192xf32> to vector<1x64xf32>
    %497 = vector.extract_strided_slice %482 {offsets = [0, 128], sizes = [1, 64], strides = [1, 1]} : vector<1x192xf32> to vector<1x64xf32>
    %498 = arith.addf %497, %299 : vector<1x64xf32>
    %499 = arith.mulf %494, %498 : vector<1x64xf32>
    %500 = arith.addf %496, %499 : vector<1x64xf32>
    %501 = math.tanh %500 : vector<1x64xf32>
    %cst_116 = arith.constant 1.000000e+00 : f32
    %502 = vector.broadcast %cst_116 : f32 to vector<1x64xf32>
    %503 = arith.subf %502, %495 : vector<1x64xf32>
    %504 = arith.mulf %503, %501 : vector<1x64xf32>
    %505 = arith.mulf %495, %481 : vector<1x64xf32>
    %506 = arith.addf %504, %505 : vector<1x64xf32>
    %507 = vector.extract_strided_slice %506 {offsets = [0, 0], sizes = [1, 32], strides = [1, 1]} : vector<1x64xf32> to vector<1x32xf32>
    %c7_117 = arith.constant 7 : index
    %c0_118 = arith.constant 0 : index
    %508 = vector.load %arg6[%c7_117, %c0_118] : memref<8x64xf32, #tpu.memory_space<vmem>>, vector<1x32xf32>
    tpu.vector_store %arg6[%c7_117, %c0_118], %507 {strides = array<i32>} : memref<8x64xf32, #tpu.memory_space<vmem>>, vector<1x32xf32>,
    %c7_119 = arith.constant 7 : index
    %c0_120 = arith.constant 0 : index
    %509 = vector.load %arg6[%c7_119, %c0_120] : memref<8x64xf32, #tpu.memory_space<vmem>>, vector<1x64xf32>
    %c6_121 = arith.constant 6 : index
    %c0_122 = arith.constant 0 : index
    %c0_123 = arith.constant 0 : index
    %510 = vector.load %arg3[%c6_121, %c0_122, %c0_123] : memref<7x64x192xf32, #tpu.memory_space<vmem>>, vector<1x64x192xf32>
    %511 = vector.shape_cast %510 : vector<1x64x192xf32> to vector<64x192xf32>
    %c4_124 = arith.constant 4 : index
    %c0_125 = arith.constant 0 : index
    %512 = vector.load %arg4[%c4_124, %c0_125] : memref<5x192xf32, #tpu.memory_space<vmem>>, vector<1x4xf32>
    %cst_126 = arith.constant dense<0.000000e+00> : vector<1x192xf32>
    %513 = tpu.matmul %509, %511, %cst_126 {dimension_numbers = #tpu.dot_dimension_numbers<[1], [0], [0], [1], [0, 0, 1, 1], [], []>} : vector<1x64xf32>, vector<64x192xf32>, vector<1x192xf32> -> vector<1x192xf32>
    %514 = vector.extract_strided_slice %513 {offsets = [0, 0], sizes = [1, 4], strides = [1, 1]} : vector<1x192xf32> to vector<1x4xf32>
    %515 = arith.addf %514, %512 : vector<1x4xf32>
    %516 = arith.negf %515 : vector<1x4xf32>
    %517 = math.exp %516 : vector<1x4xf32>
    %cst_127 = arith.constant 1.000000e+00 : f32
    %518 = vector.broadcast %cst_127 : f32 to vector<1x4xf32>
    %519 = arith.addf %518, %517 : vector<1x4xf32>
    %520 = arith.divf %518, %519 : vector<1x4xf32>
    %c0_128 = arith.constant 0 : index
    %c0_129 = arith.constant 0 : index
    %521 = vector.load %arg5[%c0_128, %c0_129] : memref<1x4xf32, #tpu.memory_space<vmem>>, vector<1x4xf32>
    tpu.vector_store %arg5[%c0_128, %c0_129], %520 {strides = array<i32>} : memref<1x4xf32, #tpu.memory_space<vmem>>, vector<1x4xf32>,
    return
  }
  func.func @transform_0(%arg0: i32, %arg1: memref<8xi32, #tpu.memory_space<smem>>) -> (i32, i32) {
    %c0_i32 = arith.constant 0 : i32
    %c0_i32_0 = arith.constant 0 : i32
    %c0_i32_1 = arith.constant 0 : i32
    return %c0_i32, %c0_i32_0 : i32, i32
  }
  func.func @transform_1(%arg0: i32, %arg1: memref<8xi32, #tpu.memory_space<smem>>) -> (i32, i32, i32) {
    %c0_i32 = arith.constant 0 : i32
    %c0_i32_0 = arith.constant 0 : i32
    %c0_i32_1 = arith.constant 0 : i32
    %c0_i32_2 = arith.constant 0 : i32
    return %c0_i32, %c0_i32_0, %c0_i32_1 : i32, i32, i32
  }
  func.func @transform_2(%arg0: i32, %arg1: memref<8xi32, #tpu.memory_space<smem>>) -> (i32, i32) {
    %c0_i32 = arith.constant 0 : i32
    %c0_i32_0 = arith.constant 0 : i32
    %c0_i32_1 = arith.constant 0 : i32
    return %c0_i32, %c0_i32_0 : i32, i32
  }
  func.func @transform_3(%arg0: i32, %arg1: memref<8xi32, #tpu.memory_space<smem>>) -> (i32, i32) {
    %c0_i32 = arith.constant 0 : i32
    %c0_i32_0 = arith.constant 0 : i32
    %c0_i32_1 = arith.constant 0 : i32
    return %c0_i32, %c0_i32_0 : i32, i32
  }
}

</mosaic_0001>

<llo_original>
// kernel: bi_gru_forward_fused.1
$region0: #{bi_gru_forward_fused.1}
  #allocation0 [shape = 'u32[]', space=smem, size = 0x4, offset = 0x4, fixed_abs, tag = 'smem constant byte address 0x4 - core index']
  #allocation1 [shape = 'u32[144,128]{1,0:T(1,128)}', space=vmem, size = 0x12000, scoped, tag = 'internal scratch']
  #allocation2 [shape = 'f32[8,64]{1,0:T(8,128)}', space=vmem, size = 0x1000, scoped, tag = 'scratch operand']
  #allocation3 [shape = 's32[1]{0}', space=sflag, size = 0x4, scoped, tag = 'scoped memory for bi_gru_forward_fused.1']
  #allocation4 [shape = 'u8[512]{0}', space=smem, size = 0x200, scoped, tag = 'prefetched SMEM operand 0']
  %s0 = inlined_call_operand.vmem [shape: s32[8], index: 0, kind: input, shape index: {}]
  %s1 = inlined_call_operand.vmem [shape: f32[50,16], index: 1, kind: input, shape index: {}]
  %s2 = inlined_call_operand.hbm [shape: f32[7,64,192], index: 2, kind: input, shape index: {}]
  %s3 = inlined_call_operand.vmem [shape: f32[5,192], index: 3, kind: input, shape index: {}]
  %s4 = inlined_call_operand.hbm [shape: f32[1,4], index: 4, kind: output, shape index: {}]
  %s5 = sld [smem:[#allocation0]]
  $region26: #{bi_gru_forward_fused.1} parent=0
    _
  %s7 = ssub.s32 1, %s5
  %s8 = scalar_select 0, %s7, %s5
  %s9 = sshll.u32 %s0, 4
  %s10 = int_to_ptr.vmem [resolvable:$true] %s9
  %12 = dma.vmem_to_smem %s10, 16, [#allocation4], [#allocation3]
  %13 = dma.done [#allocation3], 16
  %14 = sfence
  $region1: #{bi_gru_forward_fused.1} parent=0
    #allocation5 [shape = 'u8[458752]{0}', space=vmem, size = 0x70000, scoped, tag = 'input window, operand 2, single buffered']
    #allocation6 [shape = 's32[1]{0}', space=sflag, size = 0x4, scoped, tag = 'scoped memory for bi_gru_forward_fused.1']
    #allocation7 [shape = 's32[1]{0}', space=sflag, size = 0x4, scoped, tag = 'scoped memory for bi_gru_forward_fused.1']
    #allocation8 [shape = 'u8[512]{0}', space=vmem, size = 0x400, scoped, tag = 'output window, operand 0, single buffered']
    %15 = vsyncpa [#allocation6], 0
    %16 = vsyncpa [#allocation7], 0
    // Predicated region
    $region2: #{bi_gru_forward_fused.1} parent=1 // pred_check
      _
    $region3: #{bi_gru_forward_fused.1} parent=1 // pred_check_branch
      %18 = sbr.rel (0) target = $region5
    $region4: #{bi_gru_forward_fused.1} parent=1 // pred_region
      _
    $region5: #{bi_gru_forward_fused.1} parent=1 // pred_fallthru
      _
    // Predicated region
    $region6: #{bi_gru_forward_fused.1} parent=1 // pred_check
      _
    $region7: #{bi_gru_forward_fused.1} parent=1 // pred_check_branch
      %20 = sbr.rel (0) target = $region9
    $region8: #{bi_gru_forward_fused.1} parent=1 // pred_region
      %s22 = ssub.s32 14336, 14336
      %23 = vsyncadd [#allocation6], %s22
      %s24 = sshll.u32 [#allocation5], 4
      %s25 = int_to_ptr.vmem [resolvable:$true] %s24
      %30 = dma.hbm_to_vmem [thread:$0]  %s2, 14336, %s25, [#allocation6], 256, 256, 16
    $region9: #{bi_gru_forward_fused.1} parent=1 // pred_fallthru
      _
    // Predicated region
    $region10: #{bi_gru_forward_fused.1} parent=1 // pred_check
      _
    $region11: #{bi_gru_forward_fused.1} parent=1 // pred_check_branch
      %32 = sbr.rel (0) target = $region13
    $region12: #{bi_gru_forward_fused.1} parent=1 // pred_region
      _
    $region13: #{bi_gru_forward_fused.1} parent=1 // pred_fallthru
      _
    // Predicated region
    $region14: #{bi_gru_forward_fused.1} parent=1 // pred_check
      _
    $region15: #{bi_gru_forward_fused.1} parent=1 // pred_check_branch
      %34 = sbr.rel (0) target = $region17
    $region16: #{bi_gru_forward_fused.1} parent=1 // pred_region
      %35 = dma.done [#allocation6], 14336
    $region17: #{bi_gru_forward_fused.1} parent=1 // pred_fallthru
      _
    %v36 = vlaneseq
    %v37 = vand.u32 %v36, 127
    %s38 = sld [smem:[#allocation4]]
    %v39 = vstv %s38
    %vm40 = vcmp.eq.s32.totalorder %v37, %v39
    %v41 = vsel %vm40, 1, 0
    %v42 = vcvt.s32.f32 %v41
    %s43 = sld [smem:[#allocation4 + $0x1]]
    %v44 = vstv %s43
    %vm45 = vcmp.eq.s32.totalorder %v37, %v44
    %v46 = vsel %vm45, 1, 0
    %v47 = vcvt.s32.f32 %v46
    %s48 = sld [smem:[#allocation4 + $0x2]]
    %v49 = vstv %s48
    %vm50 = vcmp.eq.s32.totalorder %v37, %v49
    %v51 = vsel %vm50, 1, 0
    %v52 = vcvt.s32.f32 %v51
    %s53 = sld [smem:[#allocation4 + $0x3]]
    %v54 = vstv %s53
    %vm55 = vcmp.eq.s32.totalorder %v37, %v54
    %v56 = vsel %vm55, 1, 0
    %v57 = vcvt.s32.f32 %v56
    %s58 = sld [smem:[#allocation4 + $0x4]]
    %v59 = vstv %s58
    %vm60 = vcmp.eq.s32.totalorder %v37, %v59
    %v61 = vsel %vm60, 1, 0
    %v62 = vcvt.s32.f32 %v61
    %s63 = sld [smem:[#allocation4 + $0x5]]
    %v64 = vstv %s63
    %vm65 = vcmp.eq.s32.totalorder %v37, %v64
    %v66 = vsel %vm65, 1, 0
    %v67 = vcvt.s32.f32 %v66
    %s68 = sld [smem:[#allocation4 + $0x6]]
    %v69 = vstv %s68
    %vm70 = vcmp.eq.s32.totalorder %v37, %v69
    %v71 = vsel %vm70, 1, 0
    %v72 = vcvt.s32.f32 %v71
    %s73 = sld [smem:[#allocation4 + $0x7]]
    %v74 = vstv %s73
    %vm75 = vcmp.eq.s32.totalorder %v37, %v74
    %v76 = vsel %vm75, 1, 0
    %v77 = vcvt.s32.f32 %v76
    %vm78 = vcmask 1040384
    %v79 = vsel %vm78, %v42, %v47
    %vm80 = vcmask 1041408
    %v81 = vsel %vm80, %v79, %v52
    %vm82 = vcmask 1042432
    %v83 = vsel %vm82, %v81, %v57
    %vm84 = vcmask 1043456
    %v85 = vsel %vm84, %v83, %v62
    %vm86 = vcmask 1044480
    %v87 = vsel %vm86, %v85, %v67
    %vm88 = vcmask 1045504
    %v89 = vsel %vm88, %v87, %v72
    %vm90 = vcmask 1046528
    %v91 = vsel %vm90, %v89, %v77
    %v92 = vld [vmem:[%s1] sm:$0xff]
    %v93 = vld [vmem:[%s1 + $0x8] sm:$0xff]
    %v94 = vld [vmem:[%s1 + $0x10] sm:$0xff]
    %v95 = vld [vmem:[%s1 + $0x18] sm:$0xff]
    %v96 = vld [vmem:[%s1 + $0x20] sm:$0xff]
    %v97 = vld [vmem:[%s1 + $0x28] sm:$0xff]
    %v98 = vld [vmem:[%s1 + $0x30] sm:$0x3]
    %vm99 = vcmask 408576
    %v101 = vsel %vm99, %v91, 0
    %v104 = vsel %vm80, %v98, 0
    %106 = vmatprep.subr.mxu0 0.0
    %107 = vmatpush1.msra.mxu0 %v92
    %108 = vmatprep.subr.mxu0 0.0
    %109 = vmatpush1.msra.mxu0 %v93
    %110 = vmatprep.subr.mxu0 0.0
    %111 = vmatpush1.msra.mxu0 %v94
    %112 = vmatprep.subr.mxu0 0.0
    %113 = vmatpush1.msra.mxu0 %v95
    %114 = vmatprep.subr.mxu0 0.0
    %115 = vmatpush1.msra.mxu0 %v96
    %116 = vmatprep.subr.mxu0 0.0
    %117 = vmatpush1.msra.mxu0 %v97
    %118 = vmatprep.subr.mxu0 0.0
    %119 = vmatpush1.msra.mxu0 %v104
    %120 = vmatprep.subr.mxu0 0.0
    %121 = vmatpush1.msra.mxu0 0.0
    %122 = vmatprep.subr.mxu0 0.0
    %123 = vmatpush1.msra.mxu0 0.0
    %124 = vmatprep.subr.mxu0 0.0
    %125 = vmatpush1.msra.mxu0 0.0
    %126 = vmatprep.subr.mxu0 0.0
    %127 = vmatpush1.msra.mxu0 0.0
    %128 = vmatprep.subr.mxu0 0.0
    %129 = vmatpush1.msra.mxu0 0.0
    %130 = vmatprep.subr.mxu0 0.0
    %131 = vmatpush1.msra.mxu0 0.0
    %132 = vmatprep.subr.mxu0 0.0
    %133 = vmatpush1.msra.mxu0 0.0
    %134 = vmatprep.subr.mxu0 0.0
    %135 = vmatpush1.msra.mxu0 0.0
    %136 = vmatprep.subr.mxu0 0.0
    %137 = vmatpush1.msra.mxu0 0.0
    %138 = vmatprep.subr.mxu0 0.0
    %139 = vmatpush1.msra.mxu0 0.0
    %140 = vmatprep.subr.mxu0 0.0
    %141 = vmatpush1.msra.mxu0 0.0
    %142 = vmatprep.subr.mxu0 0.0
    %143 = vmatpush1.msra.mxu0 0.0
    %144 = vmatprep.subr.mxu0 0.0
    %145 = vmatpush1.msra.mxu0 0.0
    %146 = vmatprep.subr.mxu0 0.0
    %147 = vmatpush1.msra.mxu0 0.0
    %148 = vmatprep.subr.mxu0 0.0
    %149 = vmatpush1.msra.mxu0 0.0
    %150 = vmatprep.subr.mxu0 0.0
    %151 = vmatpush1.msra.mxu0 0.0
    %152 = vmatprep.subr.mxu0 0.0
    %153 = vmatpush1.msra.mxu0 0.0
    %154 = vmatprep.subr.mxu0 0.0
    %155 = vmatpush1.msra.mxu0 0.0
    %156 = vmatprep.subr.mxu0 0.0
    %157 = vmatpush1.msra.mxu0 0.0
    %158 = vmatprep.subr.mxu0 0.0
    %159 = vmatpush1.msra.mxu0 0.0
    %160 = vmatprep.subr.mxu0 0.0
    %161 = vmatpush1.msra.mxu0 0.0
    %162 = vmatprep.subr.mxu0 0.0
    %163 = vmatpush1.msra.mxu0 0.0
    %164 = vmatprep.subr.mxu0 0.0
    %165 = vmatpush1.msra.mxu0 0.0
    %166 = vmatprep.subr.mxu0 0.0
    %167 = vmatpush1.msra.mxu0 0.0
    %168 = vmatprep.subr.mxu0 0.0
    %169 = vmatpush1.msra.mxu0 0.0
    %170 = vmatprep.mubr.f32.mxu0 0.0
    %171 = vmatmul.mubr.f32.gmra.mrb[0].mxu0 %v101
    %v172 = vpop.f32.mrb[0].mxu0
    %v173 = vadd.f32 0.0, %v172
    %v174 = vpop.f32.mrb[0].mxu0
    %175 = vdwg.mxu0
    %v176 = vld [vmem:[#allocation5] sm:$0xff]
    %v177 = vld [vmem:[#allocation5 + $0x8] sm:$0xff]
    %v178 = vld [vmem:[#allocation5 + $0x10] sm:$0xff]
    %v179 = vld [vmem:[#allocation5 + $0x18] sm:$0xff]
    %s180 = scalar_lea.vmem [#allocation5], 128
    %v181 = vld [vmem:[%s180] sm:$0xff]
    %v182 = vld [vmem:[%s180 + $0x8] sm:$0xff]
    %v183 = vld [vmem:[%s180 + $0x10] sm:$0xff]
    %v184 = vld [vmem:[%s180 + $0x18] sm:$0xff]
    %s185 = scalar_lea.vmem [#allocation5], 512
    %v186 = vld [vmem:[%s185] sm:$0xff]
    %v187 = vld [vmem:[%s185 + $0x8] sm:$0xff]
    %v188 = vld [vmem:[%s185 + $0x10] sm:$0xff]
    %v189 = vld [vmem:[%s185 + $0x18] sm:$0xff]
    %v190 = vld [vmem:[%s185 + $0x20] sm:$0xff]
    %v191 = vld [vmem:[%s185 + $0x28] sm:$0xff]
    %v192 = vld [vmem:[%s185 + $0x30] sm:$0xff]
    %v193 = vld [vmem:[%s185 + $0x38] sm:$0xff]
    %v194 = vld [vmem:[%s185 + $0x40] sm:$0xff]
    %v195 = vld [vmem:[%s185 + $0x48] sm:$0xff]
    %v196 = vld [vmem:[%s185 + $0x50] sm:$0xff]
    %v197 = vld [vmem:[%s185 + $0x58] sm:$0xff]
    %v198 = vld [vmem:[%s185 + $0x60] sm:$0xff]
    %v199 = vld [vmem:[%s185 + $0x68] sm:$0xff]
    %v200 = vld [vmem:[%s185 + $0x70] sm:$0xff]
    %v201 = vld [vmem:[%s185 + $0x78] sm:$0xff]
    %v202 = vld [vmem:[%s3] ss:$8 sm:$0x3]
    %v203 = vld [vmem:[%s3 + $0x2] ss:$0 sm:$0xff]
    %v205 = vlaneseq
    %v206 = vshrl.u32 %v205, 7
    %v207 = vsub.s32 0, %v206
    %v208 = vrot.slane %v202, %v207
    %v209 = vlaneseq
    %v210 = vshrl.u32 %v209, 7
    %v211 = vsub.s32 1, %v210
    %v212 = vrot.slane %v202, %v211
    %vm215 = vcmask 130048
    %v217 = vsel %vm215, %v173, 0
    %219 = vmatprep.subr.mxu0 %v177
    %220 = vmatpush1.msra.mxu0 %v176
    %221 = vmatprep.subr.mxu0 %v179
    %222 = vmatpush1.msra.mxu0 %v178
    %223 = vmatprep.subr.mxu0 0.0
    %224 = vmatpush1.msra.mxu0 0.0
    %225 = vmatprep.subr.mxu0 0.0
    %226 = vmatpush1.msra.mxu0 0.0
    %227 = vmatprep.subr.mxu0 0.0
    %228 = vmatpush1.msra.mxu0 0.0
    %229 = vmatprep.subr.mxu0 0.0
    %230 = vmatpush1.msra.mxu0 0.0
    %231 = vmatprep.subr.mxu0 0.0
    %232 = vmatpush1.msra.mxu0 0.0
    %233 = vmatprep.subr.mxu0 0.0
    %234 = vmatpush1.msra.mxu0 0.0
    %235 = vmatprep.subr.mxu0 0.0
    %236 = vmatpush1.msra.mxu0 0.0
    %237 = vmatprep.subr.mxu0 0.0
    %238 = vmatpush1.msra.mxu0 0.0
    %239 = vmatprep.subr.mxu0 0.0
    %240 = vmatpush1.msra.mxu0 0.0
    %241 = vmatprep.subr.mxu0 0.0
    %242 = vmatpush1.msra.mxu0 0.0
    %243 = vmatprep.subr.mxu0 0.0
    %244 = vmatpush1.msra.mxu0 0.0
    %245 = vmatprep.subr.mxu0 0.0
    %246 = vmatpush1.msra.mxu0 0.0
    %247 = vmatprep.subr.mxu0 0.0
    %248 = vmatpush1.msra.mxu0 0.0
    %249 = vmatprep.subr.mxu0 0.0
    %250 = vmatpush1.msra.mxu0 0.0
    %251 = vmatprep.subr.mxu0 0.0
    %252 = vmatpush1.msra.mxu0 0.0
    %253 = vmatprep.subr.mxu0 0.0
    %254 = vmatpush1.msra.mxu0 0.0
    %255 = vmatprep.subr.mxu0 0.0
    %256 = vmatpush1.msra.mxu0 0.0
    %257 = vmatprep.subr.mxu0 0.0
    %258 = vmatpush1.msra.mxu0 0.0
    %259 = vmatprep.subr.mxu0 0.0
    %260 = vmatpush1.msra.mxu0 0.0
    %261 = vmatprep.subr.mxu0 0.0
    %262 = vmatpush1.msra.mxu0 0.0
    %263 = vmatprep.subr.mxu0 0.0
    %264 = vmatpush1.msra.mxu0 0.0
    %265 = vmatprep.subr.mxu0 0.0
    %266 = vmatpush1.msra.mxu0 0.0
    %267 = vmatprep.subr.mxu0 0.0
    %268 = vmatpush1.msra.mxu0 0.0
    %269 = vmatprep.subr.mxu0 0.0
    %270 = vmatpush1.msra.mxu0 0.0
    %271 = vmatprep.subr.mxu0 0.0
    %272 = vmatpush1.msra.mxu0 0.0
    %273 = vmatprep.subr.mxu0 0.0
    %274 = vmatpush1.msra.mxu0 0.0
    %275 = vmatprep.subr.mxu0 0.0
    %276 = vmatpush1.msra.mxu0 0.0
    %277 = vmatprep.subr.mxu0 0.0
    %278 = vmatpush1.msra.mxu0 0.0
    %279 = vmatprep.subr.mxu0 0.0
    %280 = vmatpush1.msra.mxu0 0.0
    %281 = vmatprep.subr.mxu0 0.0
    %282 = vmatpush1.msra.mxu0 0.0
    %283 = vmatprep.mubr.f32.mxu0 0.0
    %284 = vmatmul.mubr.f32.gmra.mrb[0].mxu0 %v217
    %v285 = vpop.f32.mrb[0].mxu0
    %v286 = vadd.f32 %v208, %v285
    %v287 = vpop.f32.mrb[0].mxu0
    %v288 = vadd.f32 %v212, %v287
    %289 = vdwg.mxu0
    %290 = vmatprep.subr.mxu0 %v182
    %291 = vmatpush1.msra.mxu0 %v181
    %292 = vmatprep.subr.mxu0 %v184
    %293 = vmatpush1.msra.mxu0 %v183
    %294 = vmatprep.subr.mxu0 0.0
    %295 = vmatpush1.msra.mxu0 0.0
    %296 = vmatprep.subr.mxu0 0.0
    %297 = vmatpush1.msra.mxu0 0.0
    %298 = vmatprep.subr.mxu0 0.0
    %299 = vmatpush1.msra.mxu0 0.0
    %300 = vmatprep.subr.mxu0 0.0
    %301 = vmatpush1.msra.mxu0 0.0
    %302 = vmatprep.subr.mxu0 0.0
    %303 = vmatpush1.msra.mxu0 0.0
    %304 = vmatprep.subr.mxu0 0.0
    %305 = vmatpush1.msra.mxu0 0.0
    %306 = vmatprep.subr.mxu0 0.0
    %307 = vmatpush1.msra.mxu0 0.0
    %308 = vmatprep.subr.mxu0 0.0
    %309 = vmatpush1.msra.mxu0 0.0
    %310 = vmatprep.subr.mxu0 0.0
    %311 = vmatpush1.msra.mxu0 0.0
    %312 = vmatprep.subr.mxu0 0.0
    %313 = vmatpush1.msra.mxu0 0.0
    %314 = vmatprep.subr.mxu0 0.0
    %315 = vmatpush1.msra.mxu0 0.0
    %316 = vmatprep.subr.mxu0 0.0
    %317 = vmatpush1.msra.mxu0 0.0
    %318 = vmatprep.subr.mxu0 0.0
    %319 = vmatpush1.msra.mxu0 0.0
    %320 = vmatprep.subr.mxu0 0.0
    %321 = vmatpush1.msra.mxu0 0.0
    %322 = vmatprep.subr.mxu0 0.0
    %323 = vmatpush1.msra.mxu0 0.0
    %324 = vmatprep.subr.mxu0 0.0
    %325 = vmatpush1.msra.mxu0 0.0
    %326 = vmatprep.subr.mxu0 0.0
    %327 = vmatpush1.msra.mxu0 0.0
    %328 = vmatprep.subr.mxu0 0.0
    %329 = vmatpush1.msra.mxu0 0.0
    %330 = vmatprep.subr.mxu0 0.0
    %331 = vmatpush1.msra.mxu0 0.0
    %332 = vmatprep.subr.mxu0 0.0
    %333 = vmatpush1.msra.mxu0 0.0
    %334 = vmatprep.subr.mxu0 0.0
    %335 = vmatpush1.msra.mxu0 0.0
    %336 = vmatprep.subr.mxu0 0.0
    %337 = vmatpush1.msra.mxu0 0.0
    %338 = vmatprep.subr.mxu0 0.0
    %339 = vmatpush1.msra.mxu0 0.0
    %340 = vmatprep.subr.mxu0 0.0
    %341 = vmatpush1.msra.mxu0 0.0
    %342 = vmatprep.subr.mxu0 0.0
    %343 = vmatpush1.msra.mxu0 0.0
    %344 = vmatprep.subr.mxu0 0.0
    %345 = vmatpush1.msra.mxu0 0.0
    %346 = vmatprep.subr.mxu0 0.0
    %347 = vmatpush1.msra.mxu0 0.0
    %348 = vmatprep.subr.mxu0 0.0
    %349 = vmatpush1.msra.mxu0 0.0
    %350 = vmatprep.subr.mxu0 0.0
    %351 = vmatpush1.msra.mxu0 0.0
    %352 = vmatprep.subr.mxu0 0.0
    %353 = vmatpush1.msra.mxu0 0.0
    %354 = vmatprep.mubr.f32.mxu0 0.0
    %355 = vmatmul.mubr.f32.gmra.mrb[0].mxu0 %v217
    %v356 = vpop.f32.mrb[0].mxu0
    %v357 = vadd.f32 0.0, %v356
    %v358 = vpop.f32.mrb[0].mxu0
    %v359 = vadd.f32 0.0, %v358
    %360 = vdwg.mxu0
    %vm361 = vcmask 523264
    %v363 = vsel %vm361, 0.0, 0
    %365 = vmatprep.subr.mxu0 %v187
    %366 = vmatpush1.msra.mxu0 %v186
    %367 = vmatprep.subr.mxu0 %v189
    %368 = vmatpush1.msra.mxu0 %v188
    %369 = vmatprep.subr.mxu0 %v191
    %370 = vmatpush1.msra.mxu0 %v190
    %371 = vmatprep.subr.mxu0 %v193
    %372 = vmatpush1.msra.mxu0 %v192
    %373 = vmatprep.subr.mxu0 %v195
    %374 = vmatpush1.msra.mxu0 %v194
    %375 = vmatprep.subr.mxu0 %v197
    %376 = vmatpush1.msra.mxu0 %v196
    %377 = vmatprep.subr.mxu0 %v199
    %378 = vmatpush1.msra.mxu0 %v198
    %379 = vmatprep.subr.mxu0 %v201
    %380 = vmatpush1.msra.mxu0 %v200
    %381 = vmatprep.subr.mxu0 0.0
    %382 = vmatpush1.msra.mxu0 0.0
    %383 = vmatprep.subr.mxu0 0.0
    %384 = vmatpush1.msra.mxu0 0.0
    %385 = vmatprep.subr.mxu0 0.0
    %386 = vmatpush1.msra.mxu0 0.0
    %387 = vmatprep.subr.mxu0 0.0
    %388 = vmatpush1.msra.mxu0 0.0
    %389 = vmatprep.subr.mxu0 0.0
    %390 = vmatpush1.msra.mxu0 0.0
    %391 = vmatprep.subr.mxu0 0.0
    %392 = vmatpush1.msra.mxu0 0.0
    %393 = vmatprep.subr.mxu0 0.0
    %394 = vmatpush1.msra.mxu0 0.0
    %395 = vmatprep.subr.mxu0 0.0
    %396 = vmatpush1.msra.mxu0 0.0
    %397 = vmatprep.subr.mxu0 0.0
    %398 = vmatpush1.msra.mxu0 0.0
    %399 = vmatprep.subr.mxu0 0.0
    %400 = vmatpush1.msra.mxu0 0.0
    %401 = vmatprep.subr.mxu0 0.0
    %402 = vmatpush1.msra.mxu0 0.0
    %403 = vmatprep.subr.mxu0 0.0
    %404 = vmatpush1.msra.mxu0 0.0
    %405 = vmatprep.subr.mxu0 0.0
    %406 = vmatpush1.msra.mxu0 0.0
    %407 = vmatprep.subr.mxu0 0.0
    %408 = vmatpush1.msra.mxu0 0.0
    %409 = vmatprep.subr.mxu0 0.0
    %410 = vmatpush1.msra.mxu0 0.0
    %411 = vmatprep.subr.mxu0 0.0
    %412 = vmatpush1.msra.mxu0 0.0
    %413 = vmatprep.subr.mxu0 0.0
    %414 = vmatpush1.msra.mxu0 0.0
    %415 = vmatprep.subr.mxu0 0.0
    %416 = vmatpush1.msra.mxu0 0.0
    %417 = vmatprep.subr.mxu0 0.0
    %418 = vmatpush1.msra.mxu0 0.0
    %419 = vmatprep.subr.mxu0 0.0
    %420 = vmatpush1.msra.mxu0 0.0
    %421 = vmatprep.subr.mxu0 0.0
    %422 = vmatpush1.msra.mxu0 0.0
    %423 = vmatprep.subr.mxu0 0.0
    %424 = vmatpush1.msra.mxu0 0.0
    %425 = vmatprep.subr.mxu0 0.0
    %426 = vmatpush1.msra.mxu0 0.0
    %427 = vmatprep.subr.mxu0 0.0
    %428 = vmatpush1.msra.mxu0 0.0
    %429 = vmatprep.mubr.f32.mxu0 0.0
    %430 = vmatmul.mubr.f32.gmra.mrb[0].mxu0 %v363
    %v431 = vpop.f32.mrb[0].mxu0
    %v432 = vadd.f32 0.0, %v431
    %v433 = vpop.f32.mrb[0].mxu0
    %v434 = vadd.f32 0.0, %v433
    %435 = vdwg.mxu0
    %v438 = vrot.slane %v357, 7
    %v439 = vrot.slane %v359, 7
    %v442 = vadd.f32 %v286, %v438
    %v443 = vadd.f32 %v288, %v439
    %v444 = vadd.f32 %v442, %v432
    %v445 = vxor.u32 %v444, 2147483648
    %v446 = vmul.f32 %v445, 1.442695
    %v447 = vpow.pop %v446
    %v448 = vadd.f32 %v447, 1.0
    %v449 = vrcp.pop %v448
    %v450 = vmul.f32 1.0, %v449
    %v451 = vadd.f32 %v434, %v203
    %v452 = vmul.f32 %v450, %v451
    %v453 = vadd.f32 %v443, %v452
    %v454 = vtanh.pop %v453
    %v455 = vsub.f32 1.0, %v450
    %457 = vrot.lane.b32.xlu0 %v454, 64
    %v458 = vpop.permute.xlu0 %457
    %v460 = vmul.f32 %v455, %v458
    %v461 = vmul.f32 %v450, 0.0
    %v462 = vadd.f32 %v460, %v461
    %464 = vrot.lane.b32.xlu0 %v462, 64
    %v465 = vpop.permute.xlu0 %464
    %vm467 = vcmask 253952
    %468 = vst.msk [vmem:[#allocation2] sm:$0x1] %vm467, %v465
    %vm469 = vcmask 516352
    %470 = vst.msk [vmem:[#allocation2 + $0x7] sm:$0x1] %vm469, %v465
    %v471 = vsel %vm361, %v465, 0
    %473 = vmatprep.subr.mxu0 %v187
    %474 = vmatpush1.msra.mxu0 %v186
    %475 = vmatprep.subr.mxu0 %v189
    %476 = vmatpush1.msra.mxu0 %v188
    %477 = vmatprep.subr.mxu0 %v191
    %478 = vmatpush1.msra.mxu0 %v190
    %479 = vmatprep.subr.mxu0 %v193
    %480 = vmatpush1.msra.mxu0 %v192
    %481 = vmatprep.subr.mxu0 %v195
    %482 = vmatpush1.msra.mxu0 %v194
    %483 = vmatprep.subr.mxu0 %v197
    %484 = vmatpush1.msra.mxu0 %v196
    %485 = vmatprep.subr.mxu0 %v199
    %486 = vmatpush1.msra.mxu0 %v198
    %487 = vmatprep.subr.mxu0 %v201
    %488 = vmatpush1.msra.mxu0 %v200
    %489 = vmatprep.subr.mxu0 0.0
    %490 = vmatpush1.msra.mxu0 0.0
    %491 = vmatprep.subr.mxu0 0.0
    %492 = vmatpush1.msra.mxu0 0.0
    %493 = vmatprep.subr.mxu0 0.0
    %494 = vmatpush1.msra.mxu0 0.0
    %495 = vmatprep.subr.mxu0 0.0
    %496 = vmatpush1.msra.mxu0 0.0
    %497 = vmatprep.subr.mxu0 0.0
    %498 = vmatpush1.msra.mxu0 0.0
    %499 = vmatprep.subr.mxu0 0.0
    %500 = vmatpush1.msra.mxu0 0.0
    %501 = vmatprep.subr.mxu0 0.0
    %502 = vmatpush1.msra.mxu0 0.0
    %503 = vmatprep.subr.mxu0 0.0
    %504 = vmatpush1.msra.mxu0 0.0
    %505 = vmatprep.subr.mxu0 0.0
    %506 = vmatpush1.msra.mxu0 0.0
    %507 = vmatprep.subr.mxu0 0.0
    %508 = vmatpush1.msra.mxu0 0.0
    %509 = vmatprep.subr.mxu0 0.0
    %510 = vmatpush1.msra.mxu0 0.0
    %511 = vmatprep.subr.mxu0 0.0
    %512 = vmatpush1.msra.mxu0 0.0
    %513 = vmatprep.subr.mxu0 0.0
    %514 = vmatpush1.msra.mxu0 0.0
    %515 = vmatprep.subr.mxu0 0.0
    %516 = vmatpush1.msra.mxu0 0.0
    %517 = vmatprep.subr.mxu0 0.0
    %518 = vmatpush1.msra.mxu0 0.0
    %519 = vmatprep.subr.mxu0 0.0
    %520 = vmatpush1.msra.mxu0 0.0
    %521 = vmatprep.subr.mxu0 0.0
    %522 = vmatpush1.msra.mxu0 0.0
    %523 = vmatprep.subr.mxu0 0.0
    %524 = vmatpush1.msra.mxu0 0.0
    %525 = vmatprep.subr.mxu0 0.0
    %526 = vmatpush1.msra.mxu0 0.0
    %527 = vmatprep.subr.mxu0 0.0
    %528 = vmatpush1.msra.mxu0 0.0
    %529 = vmatprep.subr.mxu0 0.0
    %530 = vmatpush1.msra.mxu0 0.0
    %531 = vmatprep.subr.mxu0 0.0
    %532 = vmatpush1.msra.mxu0 0.0
    %533 = vmatprep.subr.mxu0 0.0
    %534 = vmatpush1.msra.mxu0 0.0
    %535 = vmatprep.subr.mxu0 0.0
    %536 = vmatpush1.msra.mxu0 0.0
    %537 = vmatprep.mubr.f32.mxu0 0.0
    %538 = vmatmul.mubr.f32.gmra.mrb[0].mxu0 %v471
    %v539 = vpop.f32.mrb[0].mxu0
    %v540 = vadd.f32 0.0, %v539
    %v541 = vpop.f32.mrb[0].mxu0
    %v542 = vadd.f32 0.0, %v541
    %543 = vdwg.mxu0
    %v544 = vrot.slane %v357, 5
    %v545 = vrot.slane %v359, 5
    %v548 = vadd.f32 %v286, %v544
    %v549 = vadd.f32 %v288, %v545
    %v551 = vrot.slane %v540, 7
    %v553 = vadd.f32 %v548, %v551
    %v554 = vxor.u32 %v553, 2147483648
    %v555 = vmul.f32 %v554, 1.442695
    %v556 = vpow.pop %v555
    %v557 = vadd.f32 %v556, 1.0
    %v558 = vrcp.pop %v557
    %v559 = vmul.f32 1.0, %v558
    %v560 = vadd.f32 %v542, %v203
    %v562 = vrot.slane %v560, 7
    %v564 = vmul.f32 %v559, %v562
    %v565 = vadd.f32 %v549, %v564
    %v566 = vtanh.pop %v565
    %v567 = vsub.f32 1.0, %v559
    %569 = vrot.lane.b32.xlu0 %v566, 64
    %v570 = vpop.permute.xlu0 %569
    %v572 = vmul.f32 %v567, %v570
    %v573 = vrot.slane %v462, 7
    %v575 = vmul.f32 %v559, %v573
    %v576 = vadd.f32 %v572, %v575
    %578 = vrot.lane.b32.xlu0 %v576, 64
    %v579 = vpop.permute.xlu0 %578
    %vm581 = vcmask 254977
    %582 = vst.msk [vmem:[#allocation2] sm:$0x2] %vm581, %v579
    %vm583 = vcmask 517377
    %584 = vst.msk [vmem:[#allocation2 + $0x5] sm:$0x2] %vm583, %v579
    %v585 = vrot.slane %v576, 1
    %586 = vrot.lane.b32.xlu0 %v585, 64
    %v587 = vpop.permute.xlu0 %586
    %v588 = vsel %vm361, %v587, 0
    %590 = vmatprep.subr.mxu0 %v187
    %591 = vmatpush1.msra.mxu0 %v186
    %592 = vmatprep.subr.mxu0 %v189
    %593 = vmatpush1.msra.mxu0 %v188
    %594 = vmatprep.subr.mxu0 %v191
    %595 = vmatpush1.msra.mxu0 %v190
    %596 = vmatprep.subr.mxu0 %v193
    %597 = vmatpush1.msra.mxu0 %v192
    %598 = vmatprep.subr.mxu0 %v195
    %599 = vmatpush1.msra.mxu0 %v194
    %600 = vmatprep.subr.mxu0 %v197
    %601 = vmatpush1.msra.mxu0 %v196
    %602 = vmatprep.subr.mxu0 %v199
    %603 = vmatpush1.msra.mxu0 %v198
    %604 = vmatprep.subr.mxu0 %v201
    %605 = vmatpush1.msra.mxu0 %v200
    %606 = vmatprep.subr.mxu0 0.0
    %607 = vmatpush1.msra.mxu0 0.0
    %608 = vmatprep.subr.mxu0 0.0
    %609 = vmatpush1.msra.mxu0 0.0
    %610 = vmatprep.subr.mxu0 0.0
    %611 = vmatpush1.msra.mxu0 0.0
    %612 = vmatprep.subr.mxu0 0.0
    %613 = vmatpush1.msra.mxu0 0.0
    %614 = vmatprep.subr.mxu0 0.0
    %615 = vmatpush1.msra.mxu0 0.0
    %616 = vmatprep.subr.mxu0 0.0
    %617 = vmatpush1.msra.mxu0 0.0
    %618 = vmatprep.subr.mxu0 0.0
    %619 = vmatpush1.msra.mxu0 0.0
    %620 = vmatprep.subr.mxu0 0.0
    %621 = vmatpush1.msra.mxu0 0.0
    %622 = vmatprep.subr.mxu0 0.0
    %623 = vmatpush1.msra.mxu0 0.0
    %624 = vmatprep.subr.mxu0 0.0
    %625 = vmatpush1.msra.mxu0 0.0
    %626 = vmatprep.subr.mxu0 0.0
    %627 = vmatpush1.msra.mxu0 0.0
    %628 = vmatprep.subr.mxu0 0.0
    %629 = vmatpush1.msra.mxu0 0.0
    %630 = vmatprep.subr.mxu0 0.0
    %631 = vmatpush1.msra.mxu0 0.0
    %632 = vmatprep.subr.mxu0 0.0
    %633 = vmatpush1.msra.mxu0 0.0
    %634 = vmatprep.subr.mxu0 0.0
    %635 = vmatpush1.msra.mxu0 0.0
    %636 = vmatprep.subr.mxu0 0.0
    %637 = vmatpush1.msra.mxu0 0.0
    %638 = vmatprep.subr.mxu0 0.0
    %639 = vmatpush1.msra.mxu0 0.0
    %640 = vmatprep.subr.mxu0 0.0
    %641 = vmatpush1.msra.mxu0 0.0
    %642 = vmatprep.subr.mxu0 0.0
    %643 = vmatpush1.msra.mxu0 0.0
    %644 = vmatprep.subr.mxu0 0.0
    %645 = vmatpush1.msra.mxu0 0.0
    %646 = vmatprep.subr.mxu0 0.0
    %647 = vmatpush1.msra.mxu0 0.0
    %648 = vmatprep.subr.mxu0 0.0
    %649 = vmatpush1.msra.mxu0 0.0
    %650 = vmatprep.subr.mxu0 0.0
    %651 = vmatpush1.msra.mxu0 0.0
    %652 = vmatprep.subr.mxu0 0.0
    %653 = vmatpush1.msra.mxu0 0.0
    %654 = vmatprep.mubr.f32.mxu0 0.0
    %655 = vmatmul.mubr.f32.gmra.mrb[0].mxu0 %v588
    %v656 = vpop.f32.mrb[0].mxu0
    %v657 = vadd.f32 0.0, %v656
    %v658 = vpop.f32.mrb[0].mxu0
    %v659 = vadd.f32 0.0, %v658
    %660 = vdwg.mxu0
    %v661 = vrot.slane %v357, 3
    %v662 = vrot.slane %v359, 3
    %v665 = vadd.f32 %v286, %v661
    %v666 = vadd.f32 %v288, %v662
    %v668 = vrot.slane %v657, 6
    %v670 = vadd.f32 %v665, %v668
    %v671 = vxor.u32 %v670, 2147483648
    %v672 = vmul.f32 %v671, 1.442695
    %v673 = vpow.pop %v672
    %v674 = vadd.f32 %v673, 1.0
    %v675 = vrcp.pop %v674
    %v676 = vmul.f32 1.0, %v675
    %v677 = vadd.f32 %v659, %v203
    %v679 = vrot.slane %v677, 6
    %v681 = vmul.f32 %v676, %v679
    %v682 = vadd.f32 %v666, %v681
    %v683 = vtanh.pop %v682
    %v684 = vsub.f32 1.0, %v676
    %686 = vrot.lane.b32.xlu0 %v683, 64
    %v687 = vpop.permute.xlu0 %686
    %v689 = vmul.f32 %v684, %v687
    %v690 = vrot.slane %v576, 7
    %v692 = vmul.f32 %v676, %v690
    %v693 = vadd.f32 %v689, %v692
    %695 = vrot.lane.b32.xlu0 %v693, 64
    %v696 = vpop.permute.xlu0 %695
    %vm698 = vcmask 256002
    %699 = vst.msk [vmem:[#allocation2] sm:$0x4] %vm698, %v696
    %vm700 = vcmask 518402
    %701 = vst.msk [vmem:[#allocation2 + $0x3] sm:$0x4] %vm700, %v696
    %v702 = vrot.slane %v693, 2
    %703 = vrot.lane.b32.xlu0 %v702, 64
    %v704 = vpop.permute.xlu0 %703
    %v705 = vsel %vm361, %v704, 0
    %707 = vmatprep.subr.mxu0 %v187
    %708 = vmatpush1.msra.mxu0 %v186
    %709 = vmatprep.subr.mxu0 %v189
    %710 = vmatpush1.msra.mxu0 %v188
    %711 = vmatprep.subr.mxu0 %v191
    %712 = vmatpush1.msra.mxu0 %v190
    %713 = vmatprep.subr.mxu0 %v193
    %714 = vmatpush1.msra.mxu0 %v192
    %715 = vmatprep.subr.mxu0 %v195
    %716 = vmatpush1.msra.mxu0 %v194
    %717 = vmatprep.subr.mxu0 %v197
    %718 = vmatpush1.msra.mxu0 %v196
    %719 = vmatprep.subr.mxu0 %v199
    %720 = vmatpush1.msra.mxu0 %v198
    %721 = vmatprep.subr.mxu0 %v201
    %722 = vmatpush1.msra.mxu0 %v200
    %723 = vmatprep.subr.mxu0 0.0
    %724 = vmatpush1.msra.mxu0 0.0
    %725 = vmatprep.subr.mxu0 0.0
    %726 = vmatpush1.msra.mxu0 0.0
    %727 = vmatprep.subr.mxu0 0.0
    %728 = vmatpush1.msra.mxu0 0.0
    %729 = vmatprep.subr.mxu0 0.0
    %730 = vmatpush1.msra.mxu0 0.0
    %731 = vmatprep.subr.mxu0 0.0
    %732 = vmatpush1.msra.mxu0 0.0
    %733 = vmatprep.subr.mxu0 0.0
    %734 = vmatpush1.msra.mxu0 0.0
    %735 = vmatprep.subr.mxu0 0.0
    %736 = vmatpush1.msra.mxu0 0.0
    %737 = vmatprep.subr.mxu0 0.0
    %738 = vmatpush1.msra.mxu0 0.0
    %739 = vmatprep.subr.mxu0 0.0
    %740 = vmatpush1.msra.mxu0 0.0
    %741 = vmatprep.subr.mxu0 0.0
    %742 = vmatpush1.msra.mxu0 0.0
    %743 = vmatprep.subr.mxu0 0.0
    %744 = vmatpush1.msra.mxu0 0.0
    %745 = vmatprep.subr.mxu0 0.0
    %746 = vmatpush1.msra.mxu0 0.0
    %747 = vmatprep.subr.mxu0 0.0
    %748 = vmatpush1.msra.mxu0 0.0
    %749 = vmatprep.subr.mxu0 0.0
    %750 = vmatpush1.msra.mxu0 0.0
    %751 = vmatprep.subr.mxu0 0.0
    %752 = vmatpush1.msra.mxu0 0.0
    %753 = vmatprep.subr.mxu0 0.0
    %754 = vmatpush1.msra.mxu0 0.0
    %755 = vmatprep.subr.mxu0 0.0
    %756 = vmatpush1.msra.mxu0 0.0
    %757 = vmatprep.subr.mxu0 0.0
    %758 = vmatpush1.msra.mxu0 0.0
    %759 = vmatprep.subr.mxu0 0.0
    %760 = vmatpush1.msra.mxu0 0.0
    %761 = vmatprep.subr.mxu0 0.0
    %762 = vmatpush1.msra.mxu0 0.0
    %763 = vmatprep.subr.mxu0 0.0
    %764 = vmatpush1.msra.mxu0 0.0
    %765 = vmatprep.subr.mxu0 0.0
    %766 = vmatpush1.msra.mxu0 0.0
    %767 = vmatprep.subr.mxu0 0.0
    %768 = vmatpush1.msra.mxu0 0.0
    %769 = vmatprep.subr.mxu0 0.0
    %770 = vmatpush1.msra.mxu0 0.0
    %771 = vmatprep.mubr.f32.mxu0 0.0
    %772 = vmatmul.mubr.f32.gmra.mrb[0].mxu0 %v705
    %v773 = vpop.f32.mrb[0].mxu0
    %v774 = vadd.f32 0.0, %v773
    %v775 = vpop.f32.mrb[0].mxu0
    %v776 = vadd.f32 0.0, %v775
    %777 = vdwg.mxu0
    %v778 = vrot.slane %v357, 1
    %v779 = vrot.slane %v359, 1
    %v782 = vadd.f32 %v286, %v778
    %v783 = vadd.f32 %v288, %v779
    %v785 = vrot.slane %v774, 5
    %v787 = vadd.f32 %v782, %v785
    %v788 = vxor.u32 %v787, 2147483648
    %v789 = vmul.f32 %v788, 1.442695
    %v790 = vpow.pop %v789
    %v791 = vadd.f32 %v790, 1.0
    %v792 = vrcp.pop %v791
    %v793 = vmul.f32 1.0, %v792
    %v794 = vadd.f32 %v776, %v203
    %v796 = vrot.slane %v794, 5
    %v798 = vmul.f32 %v793, %v796
    %v799 = vadd.f32 %v783, %v798
    %v800 = vtanh.pop %v799
    %v801 = vsub.f32 1.0, %v793
    %803 = vrot.lane.b32.xlu0 %v800, 64
    %v804 = vpop.permute.xlu0 %803
    %v806 = vmul.f32 %v801, %v804
    %v807 = vrot.slane %v693, 7
    %v809 = vmul.f32 %v793, %v807
    %v810 = vadd.f32 %v806, %v809
    %812 = vrot.lane.b32.xlu0 %v810, 64
    %v813 = vpop.permute.xlu0 %812
    %vm815 = vcmask 257027
    %816 = vst.msk [vmem:[#allocation2] sm:$0x8] %vm815, %v813
    %vm817 = vcmask 519427
    %818 = vst.msk [vmem:[#allocation2 + $0x1] sm:$0x8] %vm817, %v813
    %v819 = vrot.slane %v810, 3
    %820 = vrot.lane.b32.xlu0 %v819, 64
    %v821 = vpop.permute.xlu0 %820
    %v822 = vsel %vm361, %v821, 0
    %824 = vmatprep.subr.mxu0 %v187
    %825 = vmatpush1.msra.mxu0 %v186
    %826 = vmatprep.subr.mxu0 %v189
    %827 = vmatpush1.msra.mxu0 %v188
    %828 = vmatprep.subr.mxu0 %v191
    %829 = vmatpush1.msra.mxu0 %v190
    %830 = vmatprep.subr.mxu0 %v193
    %831 = vmatpush1.msra.mxu0 %v192
    %832 = vmatprep.subr.mxu0 %v195
    %833 = vmatpush1.msra.mxu0 %v194
    %834 = vmatprep.subr.mxu0 %v197
    %835 = vmatpush1.msra.mxu0 %v196
    %836 = vmatprep.subr.mxu0 %v199
    %837 = vmatpush1.msra.mxu0 %v198
    %838 = vmatprep.subr.mxu0 %v201
    %839 = vmatpush1.msra.mxu0 %v200
    %840 = vmatprep.subr.mxu0 0.0
    %841 = vmatpush1.msra.mxu0 0.0
    %842 = vmatprep.subr.mxu0 0.0
    %843 = vmatpush1.msra.mxu0 0.0
    %844 = vmatprep.subr.mxu0 0.0
    %845 = vmatpush1.msra.mxu0 0.0
    %846 = vmatprep.subr.mxu0 0.0
    %847 = vmatpush1.msra.mxu0 0.0
    %848 = vmatprep.subr.mxu0 0.0
    %849 = vmatpush1.msra.mxu0 0.0
    %850 = vmatprep.subr.mxu0 0.0
    %851 = vmatpush1.msra.mxu0 0.0
    %852 = vmatprep.subr.mxu0 0.0
    %853 = vmatpush1.msra.mxu0 0.0
    %854 = vmatprep.subr.mxu0 0.0
    %855 = vmatpush1.msra.mxu0 0.0
    %856 = vmatprep.subr.mxu0 0.0
    %857 = vmatpush1.msra.mxu0 0.0
    %858 = vmatprep.subr.mxu0 0.0
    %859 = vmatpush1.msra.mxu0 0.0
    %860 = vmatprep.subr.mxu0 0.0
    %861 = vmatpush1.msra.mxu0 0.0
    %862 = vmatprep.subr.mxu0 0.0
    %863 = vmatpush1.msra.mxu0 0.0
    %864 = vmatprep.subr.mxu0 0.0
    %865 = vmatpush1.msra.mxu0 0.0
    %866 = vmatprep.subr.mxu0 0.0
    %867 = vmatpush1.msra.mxu0 0.0
    %868 = vmatprep.subr.mxu0 0.0
    %869 = vmatpush1.msra.mxu0 0.0
    %870 = vmatprep.subr.mxu0 0.0
    %871 = vmatpush1.msra.mxu0 0.0
    %872 = vmatprep.subr.mxu0 0.0
    %873 = vmatpush1.msra.mxu0 0.0
    %874 = vmatprep.subr.mxu0 0.0
    %875 = vmatpush1.msra.mxu0 0.0
    %876 = vmatprep.subr.mxu0 0.0
    %877 = vmatpush1.msra.mxu0 0.0
    %878 = vmatprep.subr.mxu0 0.0
    %879 = vmatpush1.msra.mxu0 0.0
    %880 = vmatprep.subr.mxu0 0.0
    %881 = vmatpush1.msra.mxu0 0.0
    %882 = vmatprep.subr.mxu0 0.0
    %883 = vmatpush1.msra.mxu0 0.0
    %884 = vmatprep.subr.mxu0 0.0
    %885 = vmatpush1.msra.mxu0 0.0
    %886 = vmatprep.subr.mxu0 0.0
    %887 = vmatpush1.msra.mxu0 0.0
    %888 = vmatprep.mubr.f32.mxu0 0.0
    %889 = vmatmul.mubr.f32.gmra.mrb[0].mxu0 %v822
    %v890 = vpop.f32.mrb[0].mxu0
    %v891 = vadd.f32 0.0, %v890
    %v892 = vpop.f32.mrb[0].mxu0
    %v893 = vadd.f32 0.0, %v892
    %894 = vdwg.mxu0
    %v896 = vrot.slane %v891, 4
    %v898 = vadd.f32 %v442, %v896
    %v899 = vxor.u32 %v898, 2147483648
    %v900 = vmul.f32 %v899, 1.442695
    %v901 = vpow.pop %v900
    %v902 = vadd.f32 %v901, 1.0
    %v903 = vrcp.pop %v902
    %v904 = vmul.f32 1.0, %v903
    %v905 = vadd.f32 %v893, %v203
    %v907 = vrot.slane %v905, 4
    %v909 = vmul.f32 %v904, %v907
    %v910 = vadd.f32 %v443, %v909
    %v911 = vtanh.pop %v910
    %v912 = vsub.f32 1.0, %v904
    %914 = vrot.lane.b32.xlu0 %v911, 64
    %v915 = vpop.permute.xlu0 %914
    %v917 = vmul.f32 %v912, %v915
    %v918 = vrot.slane %v810, 7
    %v920 = vmul.f32 %v904, %v918
    %v921 = vadd.f32 %v917, %v920
    %923 = vrot.lane.b32.xlu0 %v921, 64
    %v924 = vpop.permute.xlu0 %923
    %vm926 = vcmask 258052
    %927 = vst.msk [vmem:[#allocation2] sm:$0x10] %vm926, %v924
    %vm928 = vcmask 520452
    %929 = vst.msk [vmem:[#allocation2 - $0x1] sm:$0x10] %vm928, %v924
    %v930 = vrot.slane %v921, 4
    %931 = vrot.lane.b32.xlu0 %v930, 64
    %v932 = vpop.permute.xlu0 %931
    %v933 = vsel %vm361, %v932, 0
    %935 = vmatprep.subr.mxu0 %v187
    %936 = vmatpush1.msra.mxu0 %v186
    %937 = vmatprep.subr.mxu0 %v189
    %938 = vmatpush1.msra.mxu0 %v188
    %939 = vmatprep.subr.mxu0 %v191
    %940 = vmatpush1.msra.mxu0 %v190
    %941 = vmatprep.subr.mxu0 %v193
    %942 = vmatpush1.msra.mxu0 %v192
    %943 = vmatprep.subr.mxu0 %v195
    %944 = vmatpush1.msra.mxu0 %v194
    %945 = vmatprep.subr.mxu0 %v197
    %946 = vmatpush1.msra.mxu0 %v196
    %947 = vmatprep.subr.mxu0 %v199
    %948 = vmatpush1.msra.mxu0 %v198
    %949 = vmatprep.subr.mxu0 %v201
    %950 = vmatpush1.msra.mxu0 %v200
    %951 = vmatprep.subr.mxu0 0.0
    %952 = vmatpush1.msra.mxu0 0.0
    %953 = vmatprep.subr.mxu0 0.0
    %954 = vmatpush1.msra.mxu0 0.0
    %955 = vmatprep.subr.mxu0 0.0
    %956 = vmatpush1.msra.mxu0 0.0
    %957 = vmatprep.subr.mxu0 0.0
    %958 = vmatpush1.msra.mxu0 0.0
    %959 = vmatprep.subr.mxu0 0.0
    %960 = vmatpush1.msra.mxu0 0.0
    %961 = vmatprep.subr.mxu0 0.0
    %962 = vmatpush1.msra.mxu0 0.0
    %963 = vmatprep.subr.mxu0 0.0
    %964 = vmatpush1.msra.mxu0 0.0
    %965 = vmatprep.subr.mxu0 0.0
    %966 = vmatpush1.msra.mxu0 0.0
    %967 = vmatprep.subr.mxu0 0.0
    %968 = vmatpush1.msra.mxu0 0.0
    %969 = vmatprep.subr.mxu0 0.0
    %970 = vmatpush1.msra.mxu0 0.0
    %971 = vmatprep.subr.mxu0 0.0
    %972 = vmatpush1.msra.mxu0 0.0
    %973 = vmatprep.subr.mxu0 0.0
    %974 = vmatpush1.msra.mxu0 0.0
    %975 = vmatprep.subr.mxu0 0.0
    %976 = vmatpush1.msra.mxu0 0.0
    %977 = vmatprep.subr.mxu0 0.0
    %978 = vmatpush1.msra.mxu0 0.0
    %979 = vmatprep.subr.mxu0 0.0
    %980 = vmatpush1.msra.mxu0 0.0
    %981 = vmatprep.subr.mxu0 0.0
    %982 = vmatpush1.msra.mxu0 0.0
    %983 = vmatprep.subr.mxu0 0.0
    %984 = vmatpush1.msra.mxu0 0.0
    %985 = vmatprep.subr.mxu0 0.0
    %986 = vmatpush1.msra.mxu0 0.0
    %987 = vmatprep.subr.mxu0 0.0
    %988 = vmatpush1.msra.mxu0 0.0
    %989 = vmatprep.subr.mxu0 0.0
    %990 = vmatpush1.msra.mxu0 0.0
    %991 = vmatprep.subr.mxu0 0.0
    %992 = vmatpush1.msra.mxu0 0.0
    %993 = vmatprep.subr.mxu0 0.0
    %994 = vmatpush1.msra.mxu0 0.0
    %995 = vmatprep.subr.mxu0 0.0
    %996 = vmatpush1.msra.mxu0 0.0
    %997 = vmatprep.subr.mxu0 0.0
    %998 = vmatpush1.msra.mxu0 0.0
    %999 = vmatprep.mubr.f32.mxu0 0.0
    %1000 = vmatmul.mubr.f32.gmra.mrb[0].mxu0 %v933
    %v1001 = vpop.f32.mrb[0].mxu0
    %v1002 = vadd.f32 0.0, %v1001
    %v1003 = vpop.f32.mrb[0].mxu0
    %v1004 = vadd.f32 0.0, %v1003
    %1005 = vdwg.mxu0
    %v1007 = vrot.slane %v1002, 3
    %v1009 = vadd.f32 %v548, %v1007
    %v1010 = vxor.u32 %v1009, 2147483648
    %v1011 = vmul.f32 %v1010, 1.442695
    %v1012 = vpow.pop %v1011
    %v1013 = vadd.f32 %v1012, 1.0
    %v1014 = vrcp.pop %v1013
    %v1015 = vmul.f32 1.0, %v1014
    %v1016 = vadd.f32 %v1004, %v203
    %v1018 = vrot.slane %v1016, 3
    %v1020 = vmul.f32 %v1015, %v1018
    %v1021 = vadd.f32 %v549, %v1020
    %v1022 = vtanh.pop %v1021
    %v1023 = vsub.f32 1.0, %v1015
    %1025 = vrot.lane.b32.xlu0 %v1022, 64
    %v1026 = vpop.permute.xlu0 %1025
    %v1028 = vmul.f32 %v1023, %v1026
    %v1029 = vrot.slane %v921, 7
    %v1031 = vmul.f32 %v1015, %v1029
    %v1032 = vadd.f32 %v1028, %v1031
    %1034 = vrot.lane.b32.xlu0 %v1032, 64
    %v1035 = vpop.permute.xlu0 %1034
    %vm1037 = vcmask 259077
    %1038 = vst.msk [vmem:[#allocation2] sm:$0x20] %vm1037, %v1035
    %vm1039 = vcmask 521477
    %1040 = vst.msk [vmem:[#allocation2 - $0x3] sm:$0x20] %vm1039, %v1035
    %v1041 = vrot.slane %v1032, 5
    %1042 = vrot.lane.b32.xlu0 %v1041, 64
    %v1043 = vpop.permute.xlu0 %1042
    %v1044 = vsel %vm361, %v1043, 0
    %1046 = vmatprep.subr.mxu0 %v187
    %1047 = vmatpush1.msra.mxu0 %v186
    %1048 = vmatprep.subr.mxu0 %v189
    %1049 = vmatpush1.msra.mxu0 %v188
    %1050 = vmatprep.subr.mxu0 %v191
    %1051 = vmatpush1.msra.mxu0 %v190
    %1052 = vmatprep.subr.mxu0 %v193
    %1053 = vmatpush1.msra.mxu0 %v192
    %1054 = vmatprep.subr.mxu0 %v195
    %1055 = vmatpush1.msra.mxu0 %v194
    %1056 = vmatprep.subr.mxu0 %v197
    %1057 = vmatpush1.msra.mxu0 %v196
    %1058 = vmatprep.subr.mxu0 %v199
    %1059 = vmatpush1.msra.mxu0 %v198
    %1060 = vmatprep.subr.mxu0 %v201
    %1061 = vmatpush1.msra.mxu0 %v200
    %1062 = vmatprep.subr.mxu0 0.0
    %1063 = vmatpush1.msra.mxu0 0.0
    %1064 = vmatprep.subr.mxu0 0.0
    %1065 = vmatpush1.msra.mxu0 0.0
    %1066 = vmatprep.subr.mxu0 0.0
    %1067 = vmatpush1.msra.mxu0 0.0
    %1068 = vmatprep.subr.mxu0 0.0
    %1069 = vmatpush1.msra.mxu0 0.0
    %1070 = vmatprep.subr.mxu0 0.0
    %1071 = vmatpush1.msra.mxu0 0.0
    %1072 = vmatprep.subr.mxu0 0.0
    %1073 = vmatpush1.msra.mxu0 0.0
    %1074 = vmatprep.subr.mxu0 0.0
    %1075 = vmatpush1.msra.mxu0 0.0
    %1076 = vmatprep.subr.mxu0 0.0
    %1077 = vmatpush1.msra.mxu0 0.0
    %1078 = vmatprep.subr.mxu0 0.0
    %1079 = vmatpush1.msra.mxu0 0.0
    %1080 = vmatprep.subr.mxu0 0.0
    %1081 = vmatpush1.msra.mxu0 0.0
    %1082 = vmatprep.subr.mxu0 0.0
    %1083 = vmatpush1.msra.mxu0 0.0
    %1084 = vmatprep.subr.mxu0 0.0
    %1085 = vmatpush1.msra.mxu0 0.0
    %1086 = vmatprep.subr.mxu0 0.0
    %1087 = vmatpush1.msra.mxu0 0.0
    %1088 = vmatprep.subr.mxu0 0.0
    %1089 = vmatpush1.msra.mxu0 0.0
    %1090 = vmatprep.subr.mxu0 0.0
    %1091 = vmatpush1.msra.mxu0 0.0
    %1092 = vmatprep.subr.mxu0 0.0
    %1093 = vmatpush1.msra.mxu0 0.0
    %1094 = vmatprep.subr.mxu0 0.0
    %1095 = vmatpush1.msra.mxu0 0.0
    %1096 = vmatprep.subr.mxu0 0.0
    %1097 = vmatpush1.msra.mxu0 0.0
    %1098 = vmatprep.subr.mxu0 0.0
    %1099 = vmatpush1.msra.mxu0 0.0
    %1100 = vmatprep.subr.mxu0 0.0
    %1101 = vmatpush1.msra.mxu0 0.0
    %1102 = vmatprep.subr.mxu0 0.0
    %1103 = vmatpush1.msra.mxu0 0.0
    %1104 = vmatprep.subr.mxu0 0.0
    %1105 = vmatpush1.msra.mxu0 0.0
    %1106 = vmatprep.subr.mxu0 0.0
    %1107 = vmatpush1.msra.mxu0 0.0
    %1108 = vmatprep.subr.mxu0 0.0
    %1109 = vmatpush1.msra.mxu0 0.0
    %1110 = vmatprep.mubr.f32.mxu0 0.0
    %1111 = vmatmul.mubr.f32.gmra.mrb[0].mxu0 %v1044
    %v1112 = vpop.f32.mrb[0].mxu0
    %v1113 = vadd.f32 0.0, %v1112
    %v1114 = vpop.f32.mrb[0].mxu0
    %v1115 = vadd.f32 0.0, %v1114
    %1116 = vdwg.mxu0
    %v1118 = vrot.slane %v1113, 2
    %v1120 = vadd.f32 %v665, %v1118
    %v1121 = vxor.u32 %v1120, 2147483648
    %v1122 = vmul.f32 %v1121, 1.442695
    %v1123 = vpow.pop %v1122
    %v1124 = vadd.f32 %v1123, 1.0
    %v1125 = vrcp.pop %v1124
    %v1126 = vmul.f32 1.0, %v1125
    %v1127 = vadd.f32 %v1115, %v203
    %v1129 = vrot.slane %v1127, 2
    %v1131 = vmul.f32 %v1126, %v1129
    %v1132 = vadd.f32 %v666, %v1131
    %v1133 = vtanh.pop %v1132
    %v1134 = vsub.f32 1.0, %v1126
    %1136 = vrot.lane.b32.xlu0 %v1133, 64
    %v1137 = vpop.permute.xlu0 %1136
    %v1139 = vmul.f32 %v1134, %v1137
    %v1140 = vrot.slane %v1032, 7
    %v1142 = vmul.f32 %v1126, %v1140
    %v1143 = vadd.f32 %v1139, %v1142
    %1145 = vrot.lane.b32.xlu0 %v1143, 64
    %v1146 = vpop.permute.xlu0 %1145
    %vm1148 = vcmask 260102
    %1149 = vst.msk [vmem:[#allocation2] sm:$0x40] %vm1148, %v1146
    %vm1150 = vcmask 522502
    %1151 = vst.msk [vmem:[#allocation2 - $0x5] sm:$0x40] %vm1150, %v1146
    %v1152 = vrot.slane %v1143, 6
    %1153 = vrot.lane.b32.xlu0 %v1152, 64
    %v1154 = vpop.permute.xlu0 %1153
    %v1155 = vsel %vm361, %v1154, 0
    %1157 = vmatprep.subr.mxu0 %v187
    %1158 = vmatpush1.msra.mxu0 %v186
    %1159 = vmatprep.subr.mxu0 %v189
    %1160 = vmatpush1.msra.mxu0 %v188
    %1161 = vmatprep.subr.mxu0 %v191
    %1162 = vmatpush1.msra.mxu0 %v190
    %1163 = vmatprep.subr.mxu0 %v193
    %1164 = vmatpush1.msra.mxu0 %v192
    %1165 = vmatprep.subr.mxu0 %v195
    %1166 = vmatpush1.msra.mxu0 %v194
    %1167 = vmatprep.subr.mxu0 %v197
    %1168 = vmatpush1.msra.mxu0 %v196
    %1169 = vmatprep.subr.mxu0 %v199
    %1170 = vmatpush1.msra.mxu0 %v198
    %1171 = vmatprep.subr.mxu0 %v201
    %1172 = vmatpush1.msra.mxu0 %v200
    %1173 = vmatprep.subr.mxu0 0.0
    %1174 = vmatpush1.msra.mxu0 0.0
    %1175 = vmatprep.subr.mxu0 0.0
    %1176 = vmatpush1.msra.mxu0 0.0
    %1177 = vmatprep.subr.mxu0 0.0
    %1178 = vmatpush1.msra.mxu0 0.0
    %1179 = vmatprep.subr.mxu0 0.0
    %1180 = vmatpush1.msra.mxu0 0.0
    %1181 = vmatprep.subr.mxu0 0.0
    %1182 = vmatpush1.msra.mxu0 0.0
    %1183 = vmatprep.subr.mxu0 0.0
    %1184 = vmatpush1.msra.mxu0 0.0
    %1185 = vmatprep.subr.mxu0 0.0
    %1186 = vmatpush1.msra.mxu0 0.0
    %1187 = vmatprep.subr.mxu0 0.0
    %1188 = vmatpush1.msra.mxu0 0.0
    %1189 = vmatprep.subr.mxu0 0.0
    %1190 = vmatpush1.msra.mxu0 0.0
    %1191 = vmatprep.subr.mxu0 0.0
    %1192 = vmatpush1.msra.mxu0 0.0
    %1193 = vmatprep.subr.mxu0 0.0
    %1194 = vmatpush1.msra.mxu0 0.0
    %1195 = vmatprep.subr.mxu0 0.0
    %1196 = vmatpush1.msra.mxu0 0.0
    %1197 = vmatprep.subr.mxu0 0.0
    %1198 = vmatpush1.msra.mxu0 0.0
    %1199 = vmatprep.subr.mxu0 0.0
    %1200 = vmatpush1.msra.mxu0 0.0
    %1201 = vmatprep.subr.mxu0 0.0
    %1202 = vmatpush1.msra.mxu0 0.0
    %1203 = vmatprep.subr.mxu0 0.0
    %1204 = vmatpush1.msra.mxu0 0.0
    %1205 = vmatprep.subr.mxu0 0.0
    %1206 = vmatpush1.msra.mxu0 0.0
    %1207 = vmatprep.subr.mxu0 0.0
    %1208 = vmatpush1.msra.mxu0 0.0
    %1209 = vmatprep.subr.mxu0 0.0
    %1210 = vmatpush1.msra.mxu0 0.0
    %1211 = vmatprep.subr.mxu0 0.0
    %1212 = vmatpush1.msra.mxu0 0.0
    %1213 = vmatprep.subr.mxu0 0.0
    %1214 = vmatpush1.msra.mxu0 0.0
    %1215 = vmatprep.subr.mxu0 0.0
    %1216 = vmatpush1.msra.mxu0 0.0
    %1217 = vmatprep.subr.mxu0 0.0
    %1218 = vmatpush1.msra.mxu0 0.0
    %1219 = vmatprep.subr.mxu0 0.0
    %1220 = vmatpush1.msra.mxu0 0.0
    %1221 = vmatprep.mubr.f32.mxu0 0.0
    %1222 = vmatmul.mubr.f32.gmra.mrb[0].mxu0 %v1155
    %v1223 = vpop.f32.mrb[0].mxu0
    %v1224 = vadd.f32 0.0, %v1223
    %v1225 = vpop.f32.mrb[0].mxu0
    %v1226 = vadd.f32 0.0, %v1225
    %1227 = vdwg.mxu0
    %v1229 = vrot.slane %v1224, 1
    %v1231 = vadd.f32 %v782, %v1229
    %v1232 = vxor.u32 %v1231, 2147483648
    %v1233 = vmul.f32 %v1232, 1.442695
    %v1234 = vpow.pop %v1233
    %v1235 = vadd.f32 %v1234, 1.0
    %v1236 = vrcp.pop %v1235
    %v1237 = vmul.f32 1.0, %v1236
    %v1238 = vadd.f32 %v1226, %v203
    %v1240 = vrot.slane %v1238, 1
    %v1242 = vmul.f32 %v1237, %v1240
    %v1243 = vadd.f32 %v783, %v1242
    %v1244 = vtanh.pop %v1243
    %v1245 = vsub.f32 1.0, %v1237
    %1247 = vrot.lane.b32.xlu0 %v1244, 64
    %v1248 = vpop.permute.xlu0 %1247
    %v1250 = vmul.f32 %v1245, %v1248
    %v1251 = vrot.slane %v1143, 7
    %v1253 = vmul.f32 %v1237, %v1251
    %v1254 = vadd.f32 %v1250, %v1253
    %1256 = vrot.lane.b32.xlu0 %v1254, 64
    %v1257 = vpop.permute.xlu0 %1256
    %vm1259 = vcmask 261127
    %1260 = vst.msk [vmem:[#allocation2] sm:$0x80] %vm1259, %v1257
    %vm1261 = vcmask 523527
    %1262 = vst.msk [vmem:[#allocation2 - $0x7] sm:$0x80] %vm1261, %v1257
    %v1263 = vld [vmem:[#allocation2] sm:$0xff]
    %s1264 = scalar_lea.vmem [#allocation5], 256
    %v1265 = vld [vmem:[%s1264] sm:$0xff]
    %v1266 = vld [vmem:[%s1264 + $0x8] sm:$0xff]
    %v1267 = vld [vmem:[%s1264 + $0x10] sm:$0xff]
    %v1268 = vld [vmem:[%s1264 + $0x18] sm:$0xff]
    %v1269 = vld [vmem:[%s1264 + $0x20] sm:$0xff]
    %v1270 = vld [vmem:[%s1264 + $0x28] sm:$0xff]
    %v1271 = vld [vmem:[%s1264 + $0x30] sm:$0xff]
    %v1272 = vld [vmem:[%s1264 + $0x38] sm:$0xff]
    %v1273 = vld [vmem:[%s1264 + $0x40] sm:$0xff]
    %v1274 = vld [vmem:[%s1264 + $0x48] sm:$0xff]
    %v1275 = vld [vmem:[%s1264 + $0x50] sm:$0xff]
    %v1276 = vld [vmem:[%s1264 + $0x58] sm:$0xff]
    %v1277 = vld [vmem:[%s1264 + $0x60] sm:$0xff]
    %v1278 = vld [vmem:[%s1264 + $0x68] sm:$0xff]
    %v1279 = vld [vmem:[%s1264 + $0x70] sm:$0xff]
    %v1280 = vld [vmem:[%s1264 + $0x78] sm:$0xff]
    %s1281 = scalar_lea.vmem [#allocation5], 384
    %v1282 = vld [vmem:[%s1281] sm:$0xff]
    %v1283 = vld [vmem:[%s1281 + $0x8] sm:$0xff]
    %v1284 = vld [vmem:[%s1281 + $0x10] sm:$0xff]
    %v1285 = vld [vmem:[%s1281 + $0x18] sm:$0xff]
    %v1286 = vld [vmem:[%s1281 + $0x20] sm:$0xff]
    %v1287 = vld [vmem:[%s1281 + $0x28] sm:$0xff]
    %v1288 = vld [vmem:[%s1281 + $0x30] sm:$0xff]
    %v1289 = vld [vmem:[%s1281 + $0x38] sm:$0xff]
    %v1290 = vld [vmem:[%s1281 + $0x40] sm:$0xff]
    %v1291 = vld [vmem:[%s1281 + $0x48] sm:$0xff]
    %v1292 = vld [vmem:[%s1281 + $0x50] sm:$0xff]
    %v1293 = vld [vmem:[%s1281 + $0x58] sm:$0xff]
    %v1294 = vld [vmem:[%s1281 + $0x60] sm:$0xff]
    %v1295 = vld [vmem:[%s1281 + $0x68] sm:$0xff]
    %v1296 = vld [vmem:[%s1281 + $0x70] sm:$0xff]
    %v1297 = vld [vmem:[%s1281 + $0x78] sm:$0xff]
    %s1298 = scalar_lea.vmem [#allocation5], 640
    %v1299 = vld [vmem:[%s1298] sm:$0xff]
    %v1300 = vld [vmem:[%s1298 + $0x8] sm:$0xff]
    %v1301 = vld [vmem:[%s1298 + $0x10] sm:$0xff]
    %v1302 = vld [vmem:[%s1298 + $0x18] sm:$0xff]
    %v1303 = vld [vmem:[%s1298 + $0x20] sm:$0xff]
    %v1304 = vld [vmem:[%s1298 + $0x28] sm:$0xff]
    %v1305 = vld [vmem:[%s1298 + $0x30] sm:$0xff]
    %v1306 = vld [vmem:[%s1298 + $0x38] sm:$0xff]
    %v1307 = vld [vmem:[%s1298 + $0x40] sm:$0xff]
    %v1308 = vld [vmem:[%s1298 + $0x48] sm:$0xff]
    %v1309 = vld [vmem:[%s1298 + $0x50] sm:$0xff]
    %v1310 = vld [vmem:[%s1298 + $0x58] sm:$0xff]
    %v1311 = vld [vmem:[%s1298 + $0x60] sm:$0xff]
    %v1312 = vld [vmem:[%s1298 + $0x68] sm:$0xff]
    %v1313 = vld [vmem:[%s1298 + $0x70] sm:$0xff]
    %v1314 = vld [vmem:[%s1298 + $0x78] sm:$0xff]
    %s1315 = scalar_lea.vmem %s3, 1
    %v1316 = vld [vmem:[%s1315] ss:$8 sm:$0x3]
    %v1317 = vld [vmem:[%s3 + $0x3] ss:$0 sm:$0xff]
    %v1319 = vlaneseq
    %v1320 = vshrl.u32 %v1319, 7
    %v1321 = vsub.s32 0, %v1320
    %v1322 = vrot.slane %v1316, %v1321
    %v1323 = vlaneseq
    %v1324 = vshrl.u32 %v1323, 7
    %v1325 = vsub.s32 1, %v1324
    %v1326 = vrot.slane %v1316, %v1325
    %v1330 = vsel %vm361, %v1263, 0
    %1332 = vmatprep.subr.mxu0 %v1266
    %1333 = vmatpush1.msra.mxu0 %v1265
    %1334 = vmatprep.subr.mxu0 %v1268
    %1335 = vmatpush1.msra.mxu0 %v1267
    %1336 = vmatprep.subr.mxu0 %v1270
    %1337 = vmatpush1.msra.mxu0 %v1269
    %1338 = vmatprep.subr.mxu0 %v1272
    %1339 = vmatpush1.msra.mxu0 %v1271
    %1340 = vmatprep.subr.mxu0 %v1274
    %1341 = vmatpush1.msra.mxu0 %v1273
    %1342 = vmatprep.subr.mxu0 %v1276
    %1343 = vmatpush1.msra.mxu0 %v1275
    %1344 = vmatprep.subr.mxu0 %v1278
    %1345 = vmatpush1.msra.mxu0 %v1277
    %1346 = vmatprep.subr.mxu0 %v1280
    %1347 = vmatpush1.msra.mxu0 %v1279
    %1348 = vmatprep.subr.mxu0 0.0
    %1349 = vmatpush1.msra.mxu0 0.0
    %1350 = vmatprep.subr.mxu0 0.0
    %1351 = vmatpush1.msra.mxu0 0.0
    %1352 = vmatprep.subr.mxu0 0.0
    %1353 = vmatpush1.msra.mxu0 0.0
    %1354 = vmatprep.subr.mxu0 0.0
    %1355 = vmatpush1.msra.mxu0 0.0
    %1356 = vmatprep.subr.mxu0 0.0
    %1357 = vmatpush1.msra.mxu0 0.0
    %1358 = vmatprep.subr.mxu0 0.0
    %1359 = vmatpush1.msra.mxu0 0.0
    %1360 = vmatprep.subr.mxu0 0.0
    %1361 = vmatpush1.msra.mxu0 0.0
    %1362 = vmatprep.subr.mxu0 0.0
    %1363 = vmatpush1.msra.mxu0 0.0
    %1364 = vmatprep.subr.mxu0 0.0
    %1365 = vmatpush1.msra.mxu0 0.0
    %1366 = vmatprep.subr.mxu0 0.0
    %1367 = vmatpush1.msra.mxu0 0.0
    %1368 = vmatprep.subr.mxu0 0.0
    %1369 = vmatpush1.msra.mxu0 0.0
    %1370 = vmatprep.subr.mxu0 0.0
    %1371 = vmatpush1.msra.mxu0 0.0
    %1372 = vmatprep.subr.mxu0 0.0
    %1373 = vmatpush1.msra.mxu0 0.0
    %1374 = vmatprep.subr.mxu0 0.0
    %1375 = vmatpush1.msra.mxu0 0.0
    %1376 = vmatprep.subr.mxu0 0.0
    %1377 = vmatpush1.msra.mxu0 0.0
    %1378 = vmatprep.subr.mxu0 0.0
    %1379 = vmatpush1.msra.mxu0 0.0
    %1380 = vmatprep.subr.mxu0 0.0
    %1381 = vmatpush1.msra.mxu0 0.0
    %1382 = vmatprep.subr.mxu0 0.0
    %1383 = vmatpush1.msra.mxu0 0.0
    %1384 = vmatprep.subr.mxu0 0.0
    %1385 = vmatpush1.msra.mxu0 0.0
    %1386 = vmatprep.subr.mxu0 0.0
    %1387 = vmatpush1.msra.mxu0 0.0
    %1388 = vmatprep.subr.mxu0 0.0
    %1389 = vmatpush1.msra.mxu0 0.0
    %1390 = vmatprep.subr.mxu0 0.0
    %1391 = vmatpush1.msra.mxu0 0.0
    %1392 = vmatprep.subr.mxu0 0.0
    %1393 = vmatpush1.msra.mxu0 0.0
    %1394 = vmatprep.subr.mxu0 0.0
    %1395 = vmatpush1.msra.mxu0 0.0
    %1396 = vmatprep.mubr.f32.mxu0 0.0
    %1397 = vmatmul.mubr.f32.gmra.mrb[0].mxu0 %v1330
    %v1398 = vpop.f32.mrb[0].mxu0
    %v1399 = vadd.f32 %v1322, %v1398
    %v1400 = vpop.f32.mrb[0].mxu0
    %v1401 = vadd.f32 %v1326, %v1400
    %1402 = vdwg.mxu0
    %1403 = vmatprep.subr.mxu0 %v1283
    %1404 = vmatpush1.msra.mxu0 %v1282
    %1405 = vmatprep.subr.mxu0 %v1285
    %1406 = vmatpush1.msra.mxu0 %v1284
    %1407 = vmatprep.subr.mxu0 %v1287
    %1408 = vmatpush1.msra.mxu0 %v1286
    %1409 = vmatprep.subr.mxu0 %v1289
    %1410 = vmatpush1.msra.mxu0 %v1288
    %1411 = vmatprep.subr.mxu0 %v1291
    %1412 = vmatpush1.msra.mxu0 %v1290
    %1413 = vmatprep.subr.mxu0 %v1293
    %1414 = vmatpush1.msra.mxu0 %v1292
    %1415 = vmatprep.subr.mxu0 %v1295
    %1416 = vmatpush1.msra.mxu0 %v1294
    %1417 = vmatprep.subr.mxu0 %v1297
    %1418 = vmatpush1.msra.mxu0 %v1296
    %1419 = vmatprep.subr.mxu0 0.0
    %1420 = vmatpush1.msra.mxu0 0.0
    %1421 = vmatprep.subr.mxu0 0.0
    %1422 = vmatpush1.msra.mxu0 0.0
    %1423 = vmatprep.subr.mxu0 0.0
    %1424 = vmatpush1.msra.mxu0 0.0
    %1425 = vmatprep.subr.mxu0 0.0
    %1426 = vmatpush1.msra.mxu0 0.0
    %1427 = vmatprep.subr.mxu0 0.0
    %1428 = vmatpush1.msra.mxu0 0.0
    %1429 = vmatprep.subr.mxu0 0.0
    %1430 = vmatpush1.msra.mxu0 0.0
    %1431 = vmatprep.subr.mxu0 0.0
    %1432 = vmatpush1.msra.mxu0 0.0
    %1433 = vmatprep.subr.mxu0 0.0
    %1434 = vmatpush1.msra.mxu0 0.0
    %1435 = vmatprep.subr.mxu0 0.0
    %1436 = vmatpush1.msra.mxu0 0.0
    %1437 = vmatprep.subr.mxu0 0.0
    %1438 = vmatpush1.msra.mxu0 0.0
    %1439 = vmatprep.subr.mxu0 0.0
    %1440 = vmatpush1.msra.mxu0 0.0
    %1441 = vmatprep.subr.mxu0 0.0
    %1442 = vmatpush1.msra.mxu0 0.0
    %1443 = vmatprep.subr.mxu0 0.0
    %1444 = vmatpush1.msra.mxu0 0.0
    %1445 = vmatprep.subr.mxu0 0.0
    %1446 = vmatpush1.msra.mxu0 0.0
    %1447 = vmatprep.subr.mxu0 0.0
    %1448 = vmatpush1.msra.mxu0 0.0
    %1449 = vmatprep.subr.mxu0 0.0
    %1450 = vmatpush1.msra.mxu0 0.0
    %1451 = vmatprep.subr.mxu0 0.0
    %1452 = vmatpush1.msra.mxu0 0.0
    %1453 = vmatprep.subr.mxu0 0.0
    %1454 = vmatpush1.msra.mxu0 0.0
    %1455 = vmatprep.subr.mxu0 0.0
    %1456 = vmatpush1.msra.mxu0 0.0
    %1457 = vmatprep.subr.mxu0 0.0
    %1458 = vmatpush1.msra.mxu0 0.0
    %1459 = vmatprep.subr.mxu0 0.0
    %1460 = vmatpush1.msra.mxu0 0.0
    %1461 = vmatprep.subr.mxu0 0.0
    %1462 = vmatpush1.msra.mxu0 0.0
    %1463 = vmatprep.subr.mxu0 0.0
    %1464 = vmatpush1.msra.mxu0 0.0
    %1465 = vmatprep.subr.mxu0 0.0
    %1466 = vmatpush1.msra.mxu0 0.0
    %1467 = vmatprep.mubr.f32.mxu0 0.0
    %1468 = vmatmul.mubr.f32.gmra.mrb[0].mxu0 %v1330
    %v1469 = vpop.f32.mrb[0].mxu0
    %v1470 = vadd.f32 0.0, %v1469
    %v1471 = vpop.f32.mrb[0].mxu0
    %v1472 = vadd.f32 0.0, %v1471
    %1473 = vdwg.mxu0
    %1474 = vmatprep.subr.mxu0 %v1300
    %1475 = vmatpush1.msra.mxu0 %v1299
    %1476 = vmatprep.subr.mxu0 %v1302
    %1477 = vmatpush1.msra.mxu0 %v1301
    %1478 = vmatprep.subr.mxu0 %v1304
    %1479 = vmatpush1.msra.mxu0 %v1303
    %1480 = vmatprep.subr.mxu0 %v1306
    %1481 = vmatpush1.msra.mxu0 %v1305
    %1482 = vmatprep.subr.mxu0 %v1308
    %1483 = vmatpush1.msra.mxu0 %v1307
    %1484 = vmatprep.subr.mxu0 %v1310
    %1485 = vmatpush1.msra.mxu0 %v1309
    %1486 = vmatprep.subr.mxu0 %v1312
    %1487 = vmatpush1.msra.mxu0 %v1311
    %1488 = vmatprep.subr.mxu0 %v1314
    %1489 = vmatpush1.msra.mxu0 %v1313
    %1490 = vmatprep.subr.mxu0 0.0
    %1491 = vmatpush1.msra.mxu0 0.0
    %1492 = vmatprep.subr.mxu0 0.0
    %1493 = vmatpush1.msra.mxu0 0.0
    %1494 = vmatprep.subr.mxu0 0.0
    %1495 = vmatpush1.msra.mxu0 0.0
    %1496 = vmatprep.subr.mxu0 0.0
    %1497 = vmatpush1.msra.mxu0 0.0
    %1498 = vmatprep.subr.mxu0 0.0
    %1499 = vmatpush1.msra.mxu0 0.0
    %1500 = vmatprep.subr.mxu0 0.0
    %1501 = vmatpush1.msra.mxu0 0.0
    %1502 = vmatprep.subr.mxu0 0.0
    %1503 = vmatpush1.msra.mxu0 0.0
    %1504 = vmatprep.subr.mxu0 0.0
    %1505 = vmatpush1.msra.mxu0 0.0
    %1506 = vmatprep.subr.mxu0 0.0
    %1507 = vmatpush1.msra.mxu0 0.0
    %1508 = vmatprep.subr.mxu0 0.0
    %1509 = vmatpush1.msra.mxu0 0.0
    %1510 = vmatprep.subr.mxu0 0.0
    %1511 = vmatpush1.msra.mxu0 0.0
    %1512 = vmatprep.subr.mxu0 0.0
    %1513 = vmatpush1.msra.mxu0 0.0
    %1514 = vmatprep.subr.mxu0 0.0
    %1515 = vmatpush1.msra.mxu0 0.0
    %1516 = vmatprep.subr.mxu0 0.0
    %1517 = vmatpush1.msra.mxu0 0.0
    %1518 = vmatprep.subr.mxu0 0.0
    %1519 = vmatpush1.msra.mxu0 0.0
    %1520 = vmatprep.subr.mxu0 0.0
    %1521 = vmatpush1.msra.mxu0 0.0
    %1522 = vmatprep.subr.mxu0 0.0
    %1523 = vmatpush1.msra.mxu0 0.0
    %1524 = vmatprep.subr.mxu0 0.0
    %1525 = vmatpush1.msra.mxu0 0.0
    %1526 = vmatprep.subr.mxu0 0.0
    %1527 = vmatpush1.msra.mxu0 0.0
    %1528 = vmatprep.subr.mxu0 0.0
    %1529 = vmatpush1.msra.mxu0 0.0
    %1530 = vmatprep.subr.mxu0 0.0
    %1531 = vmatpush1.msra.mxu0 0.0
    %1532 = vmatprep.subr.mxu0 0.0
    %1533 = vmatpush1.msra.mxu0 0.0
    %1534 = vmatprep.subr.mxu0 0.0
    %1535 = vmatpush1.msra.mxu0 0.0
    %1536 = vmatprep.subr.mxu0 0.0
    %1537 = vmatpush1.msra.mxu0 0.0
    %1538 = vmatprep.mubr.f32.mxu0 0.0
    %1539 = vmatmul.mubr.f32.gmra.mrb[0].mxu0 %v363
    %v1540 = vpop.f32.mrb[0].mxu0
    %v1541 = vadd.f32 0.0, %v1540
    %v1542 = vpop.f32.mrb[0].mxu0
    %v1543 = vadd.f32 0.0, %v1542
    %1544 = vdwg.mxu0
    %v1547 = vrot.slane %v1470, 7
    %v1548 = vrot.slane %v1472, 7
    %v1551 = vadd.f32 %v1399, %v1547
    %v1552 = vadd.f32 %v1401, %v1548
    %v1553 = vadd.f32 %v1551, %v1541
    %v1554 = vxor.u32 %v1553, 2147483648
    %v1555 = vmul.f32 %v1554, 1.442695
    %v1556 = vpow.pop %v1555
    %v1557 = vadd.f32 %v1556, 1.0
    %v1558 = vrcp.pop %v1557
    %v1559 = vmul.f32 1.0, %v1558
    %v1560 = vadd.f32 %v1543, %v1317
    %v1561 = vmul.f32 %v1559, %v1560
    %v1562 = vadd.f32 %v1552, %v1561
    %v1563 = vtanh.pop %v1562
    %v1564 = vsub.f32 1.0, %v1559
    %1566 = vrot.lane.b32.xlu0 %v1563, 64
    %v1567 = vpop.permute.xlu0 %1566
    %v1569 = vmul.f32 %v1564, %v1567
    %v1570 = vmul.f32 %v1559, 0.0
    %v1571 = vadd.f32 %v1569, %v1570
    %1573 = vrot.lane.b32.xlu0 %v1571, 64
    %v1574 = vpop.permute.xlu0 %1573
    %1576 = vst.msk [vmem:[#allocation2 + $0x7] sm:$0x1] %vm469, %v1574
    %v1577 = vsel %vm361, %v1574, 0
    %1579 = vmatprep.subr.mxu0 %v1300
    %1580 = vmatpush1.msra.mxu0 %v1299
    %1581 = vmatprep.subr.mxu0 %v1302
    %1582 = vmatpush1.msra.mxu0 %v1301
    %1583 = vmatprep.subr.mxu0 %v1304
    %1584 = vmatpush1.msra.mxu0 %v1303
    %1585 = vmatprep.subr.mxu0 %v1306
    %1586 = vmatpush1.msra.mxu0 %v1305
    %1587 = vmatprep.subr.mxu0 %v1308
    %1588 = vmatpush1.msra.mxu0 %v1307
    %1589 = vmatprep.subr.mxu0 %v1310
    %1590 = vmatpush1.msra.mxu0 %v1309
    %1591 = vmatprep.subr.mxu0 %v1312
    %1592 = vmatpush1.msra.mxu0 %v1311
    %1593 = vmatprep.subr.mxu0 %v1314
    %1594 = vmatpush1.msra.mxu0 %v1313
    %1595 = vmatprep.subr.mxu0 0.0
    %1596 = vmatpush1.msra.mxu0 0.0
    %1597 = vmatprep.subr.mxu0 0.0
    %1598 = vmatpush1.msra.mxu0 0.0
    %1599 = vmatprep.subr.mxu0 0.0
    %1600 = vmatpush1.msra.mxu0 0.0
    %1601 = vmatprep.subr.mxu0 0.0
    %1602 = vmatpush1.msra.mxu0 0.0
    %1603 = vmatprep.subr.mxu0 0.0
    %1604 = vmatpush1.msra.mxu0 0.0
    %1605 = vmatprep.subr.mxu0 0.0
    %1606 = vmatpush1.msra.mxu0 0.0
    %1607 = vmatprep.subr.mxu0 0.0
    %1608 = vmatpush1.msra.mxu0 0.0
    %1609 = vmatprep.subr.mxu0 0.0
    %1610 = vmatpush1.msra.mxu0 0.0
    %1611 = vmatprep.subr.mxu0 0.0
    %1612 = vmatpush1.msra.mxu0 0.0
    %1613 = vmatprep.subr.mxu0 0.0
    %1614 = vmatpush1.msra.mxu0 0.0
    %1615 = vmatprep.subr.mxu0 0.0
    %1616 = vmatpush1.msra.mxu0 0.0
    %1617 = vmatprep.subr.mxu0 0.0
    %1618 = vmatpush1.msra.mxu0 0.0
    %1619 = vmatprep.subr.mxu0 0.0
    %1620 = vmatpush1.msra.mxu0 0.0
    %1621 = vmatprep.subr.mxu0 0.0
    %1622 = vmatpush1.msra.mxu0 0.0
    %1623 = vmatprep.subr.mxu0 0.0
    %1624 = vmatpush1.msra.mxu0 0.0
    %1625 = vmatprep.subr.mxu0 0.0
    %1626 = vmatpush1.msra.mxu0 0.0
    %1627 = vmatprep.subr.mxu0 0.0
    %1628 = vmatpush1.msra.mxu0 0.0
    %1629 = vmatprep.subr.mxu0 0.0
    %1630 = vmatpush1.msra.mxu0 0.0
    %1631 = vmatprep.subr.mxu0 0.0
    %1632 = vmatpush1.msra.mxu0 0.0
    %1633 = vmatprep.subr.mxu0 0.0
    %1634 = vmatpush1.msra.mxu0 0.0
    %1635 = vmatprep.subr.mxu0 0.0
    %1636 = vmatpush1.msra.mxu0 0.0
    %1637 = vmatprep.subr.mxu0 0.0
    %1638 = vmatpush1.msra.mxu0 0.0
    %1639 = vmatprep.subr.mxu0 0.0
    %1640 = vmatpush1.msra.mxu0 0.0
    %1641 = vmatprep.subr.mxu0 0.0
    %1642 = vmatpush1.msra.mxu0 0.0
    %1643 = vmatprep.mubr.f32.mxu0 0.0
    %1644 = vmatmul.mubr.f32.gmra.mrb[0].mxu0 %v1577
    %v1645 = vpop.f32.mrb[0].mxu0
    %v1646 = vadd.f32 0.0, %v1645
    %v1647 = vpop.f32.mrb[0].mxu0
    %v1648 = vadd.f32 0.0, %v1647
    %1649 = vdwg.mxu0
    %v1650 = vrot.slane %v1470, 5
    %v1651 = vrot.slane %v1472, 5
    %v1654 = vadd.f32 %v1399, %v1650
    %v1655 = vadd.f32 %v1401, %v1651
    %v1657 = vrot.slane %v1646, 7
    %v1659 = vadd.f32 %v1654, %v1657
    %v1660 = vxor.u32 %v1659, 2147483648
    %v1661 = vmul.f32 %v1660, 1.442695
    %v1662 = vpow.pop %v1661
    %v1663 = vadd.f32 %v1662, 1.0
    %v1664 = vrcp.pop %v1663
    %v1665 = vmul.f32 1.0, %v1664
    %v1666 = vadd.f32 %v1648, %v1317
    %v1668 = vrot.slane %v1666, 7
    %v1670 = vmul.f32 %v1665, %v1668
    %v1671 = vadd.f32 %v1655, %v1670
    %v1672 = vtanh.pop %v1671
    %v1673 = vsub.f32 1.0, %v1665
    %1675 = vrot.lane.b32.xlu0 %v1672, 64
    %v1676 = vpop.permute.xlu0 %1675
    %v1678 = vmul.f32 %v1673, %v1676
    %v1679 = vrot.slane %v1571, 7
    %v1681 = vmul.f32 %v1665, %v1679
    %v1682 = vadd.f32 %v1678, %v1681
    %v1684 = vrot.slane %v1682, 1
    %1685 = vrot.lane.b32.xlu0 %v1684, 64
    %v1686 = vpop.permute.xlu0 %1685
    %v1687 = vsel %vm361, %v1686, 0
    %1689 = vmatprep.subr.mxu0 %v1300
    %1690 = vmatpush1.msra.mxu0 %v1299
    %1691 = vmatprep.subr.mxu0 %v1302
    %1692 = vmatpush1.msra.mxu0 %v1301
    %1693 = vmatprep.subr.mxu0 %v1304
    %1694 = vmatpush1.msra.mxu0 %v1303
    %1695 = vmatprep.subr.mxu0 %v1306
    %1696 = vmatpush1.msra.mxu0 %v1305
    %1697 = vmatprep.subr.mxu0 %v1308
    %1698 = vmatpush1.msra.mxu0 %v1307
    %1699 = vmatprep.subr.mxu0 %v1310
    %1700 = vmatpush1.msra.mxu0 %v1309
    %1701 = vmatprep.subr.mxu0 %v1312
    %1702 = vmatpush1.msra.mxu0 %v1311
    %1703 = vmatprep.subr.mxu0 %v1314
    %1704 = vmatpush1.msra.mxu0 %v1313
    %1705 = vmatprep.subr.mxu0 0.0
    %1706 = vmatpush1.msra.mxu0 0.0
    %1707 = vmatprep.subr.mxu0 0.0
    %1708 = vmatpush1.msra.mxu0 0.0
    %1709 = vmatprep.subr.mxu0 0.0
    %1710 = vmatpush1.msra.mxu0 0.0
    %1711 = vmatprep.subr.mxu0 0.0
    %1712 = vmatpush1.msra.mxu0 0.0
    %1713 = vmatprep.subr.mxu0 0.0
    %1714 = vmatpush1.msra.mxu0 0.0
    %1715 = vmatprep.subr.mxu0 0.0
    %1716 = vmatpush1.msra.mxu0 0.0
    %1717 = vmatprep.subr.mxu0 0.0
    %1718 = vmatpush1.msra.mxu0 0.0
    %1719 = vmatprep.subr.mxu0 0.0
    %1720 = vmatpush1.msra.mxu0 0.0
    %1721 = vmatprep.subr.mxu0 0.0
    %1722 = vmatpush1.msra.mxu0 0.0
    %1723 = vmatprep.subr.mxu0 0.0
    %1724 = vmatpush1.msra.mxu0 0.0
    %1725 = vmatprep.subr.mxu0 0.0
    %1726 = vmatpush1.msra.mxu0 0.0
    %1727 = vmatprep.subr.mxu0 0.0
    %1728 = vmatpush1.msra.mxu0 0.0
    %1729 = vmatprep.subr.mxu0 0.0
    %1730 = vmatpush1.msra.mxu0 0.0
    %1731 = vmatprep.subr.mxu0 0.0
    %1732 = vmatpush1.msra.mxu0 0.0
    %1733 = vmatprep.subr.mxu0 0.0
    %1734 = vmatpush1.msra.mxu0 0.0
    %1735 = vmatprep.subr.mxu0 0.0
    %1736 = vmatpush1.msra.mxu0 0.0
    %1737 = vmatprep.subr.mxu0 0.0
    %1738 = vmatpush1.msra.mxu0 0.0
    %1739 = vmatprep.subr.mxu0 0.0
    %1740 = vmatpush1.msra.mxu0 0.0
    %1741 = vmatprep.subr.mxu0 0.0
    %1742 = vmatpush1.msra.mxu0 0.0
    %1743 = vmatprep.subr.mxu0 0.0
    %1744 = vmatpush1.msra.mxu0 0.0
    %1745 = vmatprep.subr.mxu0 0.0
    %1746 = vmatpush1.msra.mxu0 0.0
    %1747 = vmatprep.subr.mxu0 0.0
    %1748 = vmatpush1.msra.mxu0 0.0
    %1749 = vmatprep.subr.mxu0 0.0
    %1750 = vmatpush1.msra.mxu0 0.0
    %1751 = vmatprep.subr.mxu0 0.0
    %1752 = vmatpush1.msra.mxu0 0.0
    %1753 = vmatprep.mubr.f32.mxu0 0.0
    %1754 = vmatmul.mubr.f32.gmra.mrb[0].mxu0 %v1687
    %v1755 = vpop.f32.mrb[0].mxu0
    %v1756 = vadd.f32 0.0, %v1755
    %v1757 = vpop.f32.mrb[0].mxu0
    %v1758 = vadd.f32 0.0, %v1757
    %1759 = vdwg.mxu0
    %v1760 = vrot.slane %v1470, 3
    %v1761 = vrot.slane %v1472, 3
    %v1764 = vadd.f32 %v1399, %v1760
    %v1765 = vadd.f32 %v1401, %v1761
    %v1767 = vrot.slane %v1756, 6
    %v1769 = vadd.f32 %v1764, %v1767
    %v1770 = vxor.u32 %v1769, 2147483648
    %v1771 = vmul.f32 %v1770, 1.442695
    %v1772 = vpow.pop %v1771
    %v1773 = vadd.f32 %v1772, 1.0
    %v1774 = vrcp.pop %v1773
    %v1775 = vmul.f32 1.0, %v1774
    %v1776 = vadd.f32 %v1758, %v1317
    %v1778 = vrot.slane %v1776, 6
    %v1780 = vmul.f32 %v1775, %v1778
    %v1781 = vadd.f32 %v1765, %v1780
    %v1782 = vtanh.pop %v1781
    %v1783 = vsub.f32 1.0, %v1775
    %1785 = vrot.lane.b32.xlu0 %v1782, 64
    %v1786 = vpop.permute.xlu0 %1785
    %v1788 = vmul.f32 %v1783, %v1786
    %v1789 = vrot.slane %v1682, 7
    %v1791 = vmul.f32 %v1775, %v1789
    %v1792 = vadd.f32 %v1788, %v1791
    %v1794 = vrot.slane %v1792, 2
    %1795 = vrot.lane.b32.xlu0 %v1794, 64
    %v1796 = vpop.permute.xlu0 %1795
    %v1797 = vsel %vm361, %v1796, 0
    %1799 = vmatprep.subr.mxu0 %v1300
    %1800 = vmatpush1.msra.mxu0 %v1299
    %1801 = vmatprep.subr.mxu0 %v1302
    %1802 = vmatpush1.msra.mxu0 %v1301
    %1803 = vmatprep.subr.mxu0 %v1304
    %1804 = vmatpush1.msra.mxu0 %v1303
    %1805 = vmatprep.subr.mxu0 %v1306
    %1806 = vmatpush1.msra.mxu0 %v1305
    %1807 = vmatprep.subr.mxu0 %v1308
    %1808 = vmatpush1.msra.mxu0 %v1307
    %1809 = vmatprep.subr.mxu0 %v1310
    %1810 = vmatpush1.msra.mxu0 %v1309
    %1811 = vmatprep.subr.mxu0 %v1312
    %1812 = vmatpush1.msra.mxu0 %v1311
    %1813 = vmatprep.subr.mxu0 %v1314
    %1814 = vmatpush1.msra.mxu0 %v1313
    %1815 = vmatprep.subr.mxu0 0.0
    %1816 = vmatpush1.msra.mxu0 0.0
    %1817 = vmatprep.subr.mxu0 0.0
    %1818 = vmatpush1.msra.mxu0 0.0
    %1819 = vmatprep.subr.mxu0 0.0
    %1820 = vmatpush1.msra.mxu0 0.0
    %1821 = vmatprep.subr.mxu0 0.0
    %1822 = vmatpush1.msra.mxu0 0.0
    %1823 = vmatprep.subr.mxu0 0.0
    %1824 = vmatpush1.msra.mxu0 0.0
    %1825 = vmatprep.subr.mxu0 0.0
    %1826 = vmatpush1.msra.mxu0 0.0
    %1827 = vmatprep.subr.mxu0 0.0
    %1828 = vmatpush1.msra.mxu0 0.0
    %1829 = vmatprep.subr.mxu0 0.0
    %1830 = vmatpush1.msra.mxu0 0.0
    %1831 = vmatprep.subr.mxu0 0.0
    %1832 = vmatpush1.msra.mxu0 0.0
    %1833 = vmatprep.subr.mxu0 0.0
    %1834 = vmatpush1.msra.mxu0 0.0
    %1835 = vmatprep.subr.mxu0 0.0
    %1836 = vmatpush1.msra.mxu0 0.0
    %1837 = vmatprep.subr.mxu0 0.0
    %1838 = vmatpush1.msra.mxu0 0.0
    %1839 = vmatprep.subr.mxu0 0.0
    %1840 = vmatpush1.msra.mxu0 0.0
    %1841 = vmatprep.subr.mxu0 0.0
    %1842 = vmatpush1.msra.mxu0 0.0
    %1843 = vmatprep.subr.mxu0 0.0
    %1844 = vmatpush1.msra.mxu0 0.0
    %1845 = vmatprep.subr.mxu0 0.0
    %1846 = vmatpush1.msra.mxu0 0.0
    %1847 = vmatprep.subr.mxu0 0.0
    %1848 = vmatpush1.msra.mxu0 0.0
    %1849 = vmatprep.subr.mxu0 0.0
    %1850 = vmatpush1.msra.mxu0 0.0
    %1851 = vmatprep.subr.mxu0 0.0
    %1852 = vmatpush1.msra.mxu0 0.0
    %1853 = vmatprep.subr.mxu0 0.0
    %1854 = vmatpush1.msra.mxu0 0.0
    %1855 = vmatprep.subr.mxu0 0.0
    %1856 = vmatpush1.msra.mxu0 0.0
    %1857 = vmatprep.subr.mxu0 0.0
    %1858 = vmatpush1.msra.mxu0 0.0
    %1859 = vmatprep.subr.mxu0 0.0
    %1860 = vmatpush1.msra.mxu0 0.0
    %1861 = vmatprep.subr.mxu0 0.0
    %1862 = vmatpush1.msra.mxu0 0.0
    %1863 = vmatprep.mubr.f32.mxu0 0.0
    %1864 = vmatmul.mubr.f32.gmra.mrb[0].mxu0 %v1797
    %v1865 = vpop.f32.mrb[0].mxu0
    %v1866 = vadd.f32 0.0, %v1865
    %v1867 = vpop.f32.mrb[0].mxu0
    %v1868 = vadd.f32 0.0, %v1867
    %1869 = vdwg.mxu0
    %v1870 = vrot.slane %v1470, 1
    %v1871 = vrot.slane %v1472, 1
    %v1874 = vadd.f32 %v1399, %v1870
    %v1875 = vadd.f32 %v1401, %v1871
    %v1877 = vrot.slane %v1866, 5
    %v1879 = vadd.f32 %v1874, %v1877
    %v1880 = vxor.u32 %v1879, 2147483648
    %v1881 = vmul.f32 %v1880, 1.442695
    %v1882 = vpow.pop %v1881
    %v1883 = vadd.f32 %v1882, 1.0
    %v1884 = vrcp.pop %v1883
    %v1885 = vmul.f32 1.0, %v1884
    %v1886 = vadd.f32 %v1868, %v1317
    %v1888 = vrot.slane %v1886, 5
    %v1890 = vmul.f32 %v1885, %v1888
    %v1891 = vadd.f32 %v1875, %v1890
    %v1892 = vtanh.pop %v1891
    %v1893 = vsub.f32 1.0, %v1885
    %1895 = vrot.lane.b32.xlu0 %v1892, 64
    %v1896 = vpop.permute.xlu0 %1895
    %v1898 = vmul.f32 %v1893, %v1896
    %v1899 = vrot.slane %v1792, 7
    %v1901 = vmul.f32 %v1885, %v1899
    %v1902 = vadd.f32 %v1898, %v1901
    %v1904 = vrot.slane %v1902, 3
    %1905 = vrot.lane.b32.xlu0 %v1904, 64
    %v1906 = vpop.permute.xlu0 %1905
    %v1907 = vsel %vm361, %v1906, 0
    %1909 = vmatprep.subr.mxu0 %v1300
    %1910 = vmatpush1.msra.mxu0 %v1299
    %1911 = vmatprep.subr.mxu0 %v1302
    %1912 = vmatpush1.msra.mxu0 %v1301
    %1913 = vmatprep.subr.mxu0 %v1304
    %1914 = vmatpush1.msra.mxu0 %v1303
    %1915 = vmatprep.subr.mxu0 %v1306
    %1916 = vmatpush1.msra.mxu0 %v1305
    %1917 = vmatprep.subr.mxu0 %v1308
    %1918 = vmatpush1.msra.mxu0 %v1307
    %1919 = vmatprep.subr.mxu0 %v1310
    %1920 = vmatpush1.msra.mxu0 %v1309
    %1921 = vmatprep.subr.mxu0 %v1312
    %1922 = vmatpush1.msra.mxu0 %v1311
    %1923 = vmatprep.subr.mxu0 %v1314
    %1924 = vmatpush1.msra.mxu0 %v1313
    %1925 = vmatprep.subr.mxu0 0.0
    %1926 = vmatpush1.msra.mxu0 0.0
    %1927 = vmatprep.subr.mxu0 0.0
    %1928 = vmatpush1.msra.mxu0 0.0
    %1929 = vmatprep.subr.mxu0 0.0
    %1930 = vmatpush1.msra.mxu0 0.0
    %1931 = vmatprep.subr.mxu0 0.0
    %1932 = vmatpush1.msra.mxu0 0.0
    %1933 = vmatprep.subr.mxu0 0.0
    %1934 = vmatpush1.msra.mxu0 0.0
    %1935 = vmatprep.subr.mxu0 0.0
    %1936 = vmatpush1.msra.mxu0 0.0
    %1937 = vmatprep.subr.mxu0 0.0
    %1938 = vmatpush1.msra.mxu0 0.0
    %1939 = vmatprep.subr.mxu0 0.0
    %1940 = vmatpush1.msra.mxu0 0.0
    %1941 = vmatprep.subr.mxu0 0.0
    %1942 = vmatpush1.msra.mxu0 0.0
    %1943 = vmatprep.subr.mxu0 0.0
    %1944 = vmatpush1.msra.mxu0 0.0
    %1945 = vmatprep.subr.mxu0 0.0
    %1946 = vmatpush1.msra.mxu0 0.0
    %1947 = vmatprep.subr.mxu0 0.0
    %1948 = vmatpush1.msra.mxu0 0.0
    %1949 = vmatprep.subr.mxu0 0.0
    %1950 = vmatpush1.msra.mxu0 0.0
    %1951 = vmatprep.subr.mxu0 0.0
    %1952 = vmatpush1.msra.mxu0 0.0
    %1953 = vmatprep.subr.mxu0 0.0
    %1954 = vmatpush1.msra.mxu0 0.0
    %1955 = vmatprep.subr.mxu0 0.0
    %1956 = vmatpush1.msra.mxu0 0.0
    %1957 = vmatprep.subr.mxu0 0.0
    %1958 = vmatpush1.msra.mxu0 0.0
    %1959 = vmatprep.subr.mxu0 0.0
    %1960 = vmatpush1.msra.mxu0 0.0
    %1961 = vmatprep.subr.mxu0 0.0
    %1962 = vmatpush1.msra.mxu0 0.0
    %1963 = vmatprep.subr.mxu0 0.0
    %1964 = vmatpush1.msra.mxu0 0.0
    %1965 = vmatprep.subr.mxu0 0.0
    %1966 = vmatpush1.msra.mxu0 0.0
    %1967 = vmatprep.subr.mxu0 0.0
    %1968 = vmatpush1.msra.mxu0 0.0
    %1969 = vmatprep.subr.mxu0 0.0
    %1970 = vmatpush1.msra.mxu0 0.0
    %1971 = vmatprep.subr.mxu0 0.0
    %1972 = vmatpush1.msra.mxu0 0.0
    %1973 = vmatprep.mubr.f32.mxu0 0.0
    %1974 = vmatmul.mubr.f32.gmra.mrb[0].mxu0 %v1907
    %v1975 = vpop.f32.mrb[0].mxu0
    %v1976 = vadd.f32 0.0, %v1975
    %v1977 = vpop.f32.mrb[0].mxu0
    %v1978 = vadd.f32 0.0, %v1977
    %1979 = vdwg.mxu0
    %v1981 = vrot.slane %v1976, 4
    %v1983 = vadd.f32 %v1551, %v1981
    %v1984 = vxor.u32 %v1983, 2147483648
    %v1985 = vmul.f32 %v1984, 1.442695
    %v1986 = vpow.pop %v1985
    %v1987 = vadd.f32 %v1986, 1.0
    %v1988 = vrcp.pop %v1987
    %v1989 = vmul.f32 1.0, %v1988
    %v1990 = vadd.f32 %v1978, %v1317
    %v1992 = vrot.slane %v1990, 4
    %v1994 = vmul.f32 %v1989, %v1992
    %v1995 = vadd.f32 %v1552, %v1994
    %v1996 = vtanh.pop %v1995
    %v1997 = vsub.f32 1.0, %v1989
    %1999 = vrot.lane.b32.xlu0 %v1996, 64
    %v2000 = vpop.permute.xlu0 %1999
    %v2002 = vmul.f32 %v1997, %v2000
    %v2003 = vrot.slane %v1902, 7
    %v2005 = vmul.f32 %v1989, %v2003
    %v2006 = vadd.f32 %v2002, %v2005
    %v2008 = vrot.slane %v2006, 4
    %2009 = vrot.lane.b32.xlu0 %v2008, 64
    %v2010 = vpop.permute.xlu0 %2009
    %v2011 = vsel %vm361, %v2010, 0
    %2013 = vmatprep.subr.mxu0 %v1300
    %2014 = vmatpush1.msra.mxu0 %v1299
    %2015 = vmatprep.subr.mxu0 %v1302
    %2016 = vmatpush1.msra.mxu0 %v1301
    %2017 = vmatprep.subr.mxu0 %v1304
    %2018 = vmatpush1.msra.mxu0 %v1303
    %2019 = vmatprep.subr.mxu0 %v1306
    %2020 = vmatpush1.msra.mxu0 %v1305
    %2021 = vmatprep.subr.mxu0 %v1308
    %2022 = vmatpush1.msra.mxu0 %v1307
    %2023 = vmatprep.subr.mxu0 %v1310
    %2024 = vmatpush1.msra.mxu0 %v1309
    %2025 = vmatprep.subr.mxu0 %v1312
    %2026 = vmatpush1.msra.mxu0 %v1311
    %2027 = vmatprep.subr.mxu0 %v1314
    %2028 = vmatpush1.msra.mxu0 %v1313
    %2029 = vmatprep.subr.mxu0 0.0
    %2030 = vmatpush1.msra.mxu0 0.0
    %2031 = vmatprep.subr.mxu0 0.0
    %2032 = vmatpush1.msra.mxu0 0.0
    %2033 = vmatprep.subr.mxu0 0.0
    %2034 = vmatpush1.msra.mxu0 0.0
    %2035 = vmatprep.subr.mxu0 0.0
    %2036 = vmatpush1.msra.mxu0 0.0
    %2037 = vmatprep.subr.mxu0 0.0
    %2038 = vmatpush1.msra.mxu0 0.0
    %2039 = vmatprep.subr.mxu0 0.0
    %2040 = vmatpush1.msra.mxu0 0.0
    %2041 = vmatprep.subr.mxu0 0.0
    %2042 = vmatpush1.msra.mxu0 0.0
    %2043 = vmatprep.subr.mxu0 0.0
    %2044 = vmatpush1.msra.mxu0 0.0
    %2045 = vmatprep.subr.mxu0 0.0
    %2046 = vmatpush1.msra.mxu0 0.0
    %2047 = vmatprep.subr.mxu0 0.0
    %2048 = vmatpush1.msra.mxu0 0.0
    %2049 = vmatprep.subr.mxu0 0.0
    %2050 = vmatpush1.msra.mxu0 0.0
    %2051 = vmatprep.subr.mxu0 0.0
    %2052 = vmatpush1.msra.mxu0 0.0
    %2053 = vmatprep.subr.mxu0 0.0
    %2054 = vmatpush1.msra.mxu0 0.0
    %2055 = vmatprep.subr.mxu0 0.0
    %2056 = vmatpush1.msra.mxu0 0.0
    %2057 = vmatprep.subr.mxu0 0.0
    %2058 = vmatpush1.msra.mxu0 0.0
    %2059 = vmatprep.subr.mxu0 0.0
    %2060 = vmatpush1.msra.mxu0 0.0
    %2061 = vmatprep.subr.mxu0 0.0
    %2062 = vmatpush1.msra.mxu0 0.0
    %2063 = vmatprep.subr.mxu0 0.0
    %2064 = vmatpush1.msra.mxu0 0.0
    %2065 = vmatprep.subr.mxu0 0.0
    %2066 = vmatpush1.msra.mxu0 0.0
    %2067 = vmatprep.subr.mxu0 0.0
    %2068 = vmatpush1.msra.mxu0 0.0
    %2069 = vmatprep.subr.mxu0 0.0
    %2070 = vmatpush1.msra.mxu0 0.0
    %2071 = vmatprep.subr.mxu0 0.0
    %2072 = vmatpush1.msra.mxu0 0.0
    %2073 = vmatprep.subr.mxu0 0.0
    %2074 = vmatpush1.msra.mxu0 0.0
    %2075 = vmatprep.subr.mxu0 0.0
    %2076 = vmatpush1.msra.mxu0 0.0
    %2077 = vmatprep.mubr.f32.mxu0 0.0
    %2078 = vmatmul.mubr.f32.gmra.mrb[0].mxu0 %v2011
    %v2079 = vpop.f32.mrb[0].mxu0
    %v2080 = vadd.f32 0.0, %v2079
    %v2081 = vpop.f32.mrb[0].mxu0
    %v2082 = vadd.f32 0.0, %v2081
    %2083 = vdwg.mxu0
    %v2085 = vrot.slane %v2080, 3
    %v2087 = vadd.f32 %v1654, %v2085
    %v2088 = vxor.u32 %v2087, 2147483648
    %v2089 = vmul.f32 %v2088, 1.442695
    %v2090 = vpow.pop %v2089
    %v2091 = vadd.f32 %v2090, 1.0
    %v2092 = vrcp.pop %v2091
    %v2093 = vmul.f32 1.0, %v2092
    %v2094 = vadd.f32 %v2082, %v1317
    %v2096 = vrot.slane %v2094, 3
    %v2098 = vmul.f32 %v2093, %v2096
    %v2099 = vadd.f32 %v1655, %v2098
    %v2100 = vtanh.pop %v2099
    %v2101 = vsub.f32 1.0, %v2093
    %2103 = vrot.lane.b32.xlu0 %v2100, 64
    %v2104 = vpop.permute.xlu0 %2103
    %v2106 = vmul.f32 %v2101, %v2104
    %v2107 = vrot.slane %v2006, 7
    %v2109 = vmul.f32 %v2093, %v2107
    %v2110 = vadd.f32 %v2106, %v2109
    %v2112 = vrot.slane %v2110, 5
    %2113 = vrot.lane.b32.xlu0 %v2112, 64
    %v2114 = vpop.permute.xlu0 %2113
    %v2115 = vsel %vm361, %v2114, 0
    %2117 = vmatprep.subr.mxu0 %v1300
    %2118 = vmatpush1.msra.mxu0 %v1299
    %2119 = vmatprep.subr.mxu0 %v1302
    %2120 = vmatpush1.msra.mxu0 %v1301
    %2121 = vmatprep.subr.mxu0 %v1304
    %2122 = vmatpush1.msra.mxu0 %v1303
    %2123 = vmatprep.subr.mxu0 %v1306
    %2124 = vmatpush1.msra.mxu0 %v1305
    %2125 = vmatprep.subr.mxu0 %v1308
    %2126 = vmatpush1.msra.mxu0 %v1307
    %2127 = vmatprep.subr.mxu0 %v1310
    %2128 = vmatpush1.msra.mxu0 %v1309
    %2129 = vmatprep.subr.mxu0 %v1312
    %2130 = vmatpush1.msra.mxu0 %v1311
    %2131 = vmatprep.subr.mxu0 %v1314
    %2132 = vmatpush1.msra.mxu0 %v1313
    %2133 = vmatprep.subr.mxu0 0.0
    %2134 = vmatpush1.msra.mxu0 0.0
    %2135 = vmatprep.subr.mxu0 0.0
    %2136 = vmatpush1.msra.mxu0 0.0
    %2137 = vmatprep.subr.mxu0 0.0
    %2138 = vmatpush1.msra.mxu0 0.0
    %2139 = vmatprep.subr.mxu0 0.0
    %2140 = vmatpush1.msra.mxu0 0.0
    %2141 = vmatprep.subr.mxu0 0.0
    %2142 = vmatpush1.msra.mxu0 0.0
    %2143 = vmatprep.subr.mxu0 0.0
    %2144 = vmatpush1.msra.mxu0 0.0
    %2145 = vmatprep.subr.mxu0 0.0
    %2146 = vmatpush1.msra.mxu0 0.0
    %2147 = vmatprep.subr.mxu0 0.0
    %2148 = vmatpush1.msra.mxu0 0.0
    %2149 = vmatprep.subr.mxu0 0.0
    %2150 = vmatpush1.msra.mxu0 0.0
    %2151 = vmatprep.subr.mxu0 0.0
    %2152 = vmatpush1.msra.mxu0 0.0
    %2153 = vmatprep.subr.mxu0 0.0
    %2154 = vmatpush1.msra.mxu0 0.0
    %2155 = vmatprep.subr.mxu0 0.0
    %2156 = vmatpush1.msra.mxu0 0.0
    %2157 = vmatprep.subr.mxu0 0.0
    %2158 = vmatpush1.msra.mxu0 0.0
    %2159 = vmatprep.subr.mxu0 0.0
    %2160 = vmatpush1.msra.mxu0 0.0
    %2161 = vmatprep.subr.mxu0 0.0
    %2162 = vmatpush1.msra.mxu0 0.0
    %2163 = vmatprep.subr.mxu0 0.0
    %2164 = vmatpush1.msra.mxu0 0.0
    %2165 = vmatprep.subr.mxu0 0.0
    %2166 = vmatpush1.msra.mxu0 0.0
    %2167 = vmatprep.subr.mxu0 0.0
    %2168 = vmatpush1.msra.mxu0 0.0
    %2169 = vmatprep.subr.mxu0 0.0
    %2170 = vmatpush1.msra.mxu0 0.0
    %2171 = vmatprep.subr.mxu0 0.0
    %2172 = vmatpush1.msra.mxu0 0.0
    %2173 = vmatprep.subr.mxu0 0.0
    %2174 = vmatpush1.msra.mxu0 0.0
    %2175 = vmatprep.subr.mxu0 0.0
    %2176 = vmatpush1.msra.mxu0 0.0
    %2177 = vmatprep.subr.mxu0 0.0
    %2178 = vmatpush1.msra.mxu0 0.0
    %2179 = vmatprep.subr.mxu0 0.0
    %2180 = vmatpush1.msra.mxu0 0.0
    %2181 = vmatprep.mubr.f32.mxu0 0.0
    %2182 = vmatmul.mubr.f32.gmra.mrb[0].mxu0 %v2115
    %v2183 = vpop.f32.mrb[0].mxu0
    %v2184 = vadd.f32 0.0, %v2183
    %v2185 = vpop.f32.mrb[0].mxu0
    %v2186 = vadd.f32 0.0, %v2185
    %2187 = vdwg.mxu0
    %v2189 = vrot.slane %v2184, 2
    %v2191 = vadd.f32 %v1764, %v2189
    %v2192 = vxor.u32 %v2191, 2147483648
    %v2193 = vmul.f32 %v2192, 1.442695
    %v2194 = vpow.pop %v2193
    %v2195 = vadd.f32 %v2194, 1.0
    %v2196 = vrcp.pop %v2195
    %v2197 = vmul.f32 1.0, %v2196
    %v2198 = vadd.f32 %v2186, %v1317
    %v2200 = vrot.slane %v2198, 2
    %v2202 = vmul.f32 %v2197, %v2200
    %v2203 = vadd.f32 %v1765, %v2202
    %v2204 = vtanh.pop %v2203
    %v2205 = vsub.f32 1.0, %v2197
    %2207 = vrot.lane.b32.xlu0 %v2204, 64
    %v2208 = vpop.permute.xlu0 %2207
    %v2210 = vmul.f32 %v2205, %v2208
    %v2211 = vrot.slane %v2110, 7
    %v2213 = vmul.f32 %v2197, %v2211
    %v2214 = vadd.f32 %v2210, %v2213
    %v2216 = vrot.slane %v2214, 6
    %2217 = vrot.lane.b32.xlu0 %v2216, 64
    %v2218 = vpop.permute.xlu0 %2217
    %v2219 = vsel %vm361, %v2218, 0
    %2221 = vmatprep.subr.mxu0 %v1300
    %2222 = vmatpush1.msra.mxu0 %v1299
    %2223 = vmatprep.subr.mxu0 %v1302
    %2224 = vmatpush1.msra.mxu0 %v1301
    %2225 = vmatprep.subr.mxu0 %v1304
    %2226 = vmatpush1.msra.mxu0 %v1303
    %2227 = vmatprep.subr.mxu0 %v1306
    %2228 = vmatpush1.msra.mxu0 %v1305
    %2229 = vmatprep.subr.mxu0 %v1308
    %2230 = vmatpush1.msra.mxu0 %v1307
    %2231 = vmatprep.subr.mxu0 %v1310
    %2232 = vmatpush1.msra.mxu0 %v1309
    %2233 = vmatprep.subr.mxu0 %v1312
    %2234 = vmatpush1.msra.mxu0 %v1311
    %2235 = vmatprep.subr.mxu0 %v1314
    %2236 = vmatpush1.msra.mxu0 %v1313
    %2237 = vmatprep.subr.mxu0 0.0
    %2238 = vmatpush1.msra.mxu0 0.0
    %2239 = vmatprep.subr.mxu0 0.0
    %2240 = vmatpush1.msra.mxu0 0.0
    %2241 = vmatprep.subr.mxu0 0.0
    %2242 = vmatpush1.msra.mxu0 0.0
    %2243 = vmatprep.subr.mxu0 0.0
    %2244 = vmatpush1.msra.mxu0 0.0
    %2245 = vmatprep.subr.mxu0 0.0
    %2246 = vmatpush1.msra.mxu0 0.0
    %2247 = vmatprep.subr.mxu0 0.0
    %2248 = vmatpush1.msra.mxu0 0.0
    %2249 = vmatprep.subr.mxu0 0.0
    %2250 = vmatpush1.msra.mxu0 0.0
    %2251 = vmatprep.subr.mxu0 0.0
    %2252 = vmatpush1.msra.mxu0 0.0
    %2253 = vmatprep.subr.mxu0 0.0
    %2254 = vmatpush1.msra.mxu0 0.0
    %2255 = vmatprep.subr.mxu0 0.0
    %2256 = vmatpush1.msra.mxu0 0.0
    %2257 = vmatprep.subr.mxu0 0.0
    %2258 = vmatpush1.msra.mxu0 0.0
    %2259 = vmatprep.subr.mxu0 0.0
    %2260 = vmatpush1.msra.mxu0 0.0
    %2261 = vmatprep.subr.mxu0 0.0
    %2262 = vmatpush1.msra.mxu0 0.0
    %2263 = vmatprep.subr.mxu0 0.0
    %2264 = vmatpush1.msra.mxu0 0.0
    %2265 = vmatprep.subr.mxu0 0.0
    %2266 = vmatpush1.msra.mxu0 0.0
    %2267 = vmatprep.subr.mxu0 0.0
    %2268 = vmatpush1.msra.mxu0 0.0
    %2269 = vmatprep.subr.mxu0 0.0
    %2270 = vmatpush1.msra.mxu0 0.0
    %2271 = vmatprep.subr.mxu0 0.0
    %2272 = vmatpush1.msra.mxu0 0.0
    %2273 = vmatprep.subr.mxu0 0.0
    %2274 = vmatpush1.msra.mxu0 0.0
    %2275 = vmatprep.subr.mxu0 0.0
    %2276 = vmatpush1.msra.mxu0 0.0
    %2277 = vmatprep.subr.mxu0 0.0
    %2278 = vmatpush1.msra.mxu0 0.0
    %2279 = vmatprep.subr.mxu0 0.0
    %2280 = vmatpush1.msra.mxu0 0.0
    %2281 = vmatprep.subr.mxu0 0.0
    %2282 = vmatpush1.msra.mxu0 0.0
    %2283 = vmatprep.subr.mxu0 0.0
    %2284 = vmatpush1.msra.mxu0 0.0
    %2285 = vmatprep.mubr.f32.mxu0 0.0
    %2286 = vmatmul.mubr.f32.gmra.mrb[0].mxu0 %v2219
    %v2287 = vpop.f32.mrb[0].mxu0
    %v2288 = vadd.f32 0.0, %v2287
    %v2289 = vpop.f32.mrb[0].mxu0
    %v2290 = vadd.f32 0.0, %v2289
    %2291 = vdwg.mxu0
    %v2293 = vrot.slane %v2288, 1
    %v2295 = vadd.f32 %v1874, %v2293
    %v2296 = vxor.u32 %v2295, 2147483648
    %v2297 = vmul.f32 %v2296, 1.442695
    %v2298 = vpow.pop %v2297
    %v2299 = vadd.f32 %v2298, 1.0
    %v2300 = vrcp.pop %v2299
    %v2301 = vmul.f32 1.0, %v2300
    %v2302 = vadd.f32 %v2290, %v1317
    %v2304 = vrot.slane %v2302, 1
    %v2306 = vmul.f32 %v2301, %v2304
    %v2307 = vadd.f32 %v1875, %v2306
    %v2308 = vtanh.pop %v2307
    %v2309 = vsub.f32 1.0, %v2301
    %2311 = vrot.lane.b32.xlu0 %v2308, 64
    %v2312 = vpop.permute.xlu0 %2311
    %v2314 = vmul.f32 %v2309, %v2312
    %v2315 = vrot.slane %v2214, 7
    %v2317 = vmul.f32 %v2301, %v2315
    %v2318 = vadd.f32 %v2314, %v2317
    %2320 = vrot.lane.b32.xlu0 %v2318, 64
    %v2321 = vpop.permute.xlu0 %2320
    %2323 = vst.msk [vmem:[#allocation2] sm:$0x80] %vm1259, %v2321
    %v2324 = vld [vmem:[#allocation2 + $0x7] sm:$0x1]
    %s2325 = scalar_lea.vmem [#allocation5], 768
    %v2326 = vld [vmem:[%s2325] sm:$0xff]
    %v2327 = vld [vmem:[%s2325 + $0x8] sm:$0xff]
    %v2328 = vld [vmem:[%s2325 + $0x10] sm:$0xff]
    %v2329 = vld [vmem:[%s2325 + $0x18] sm:$0xff]
    %v2330 = vld [vmem:[%s2325 + $0x20] sm:$0xff]
    %v2331 = vld [vmem:[%s2325 + $0x28] sm:$0xff]
    %v2332 = vld [vmem:[%s2325 + $0x30] sm:$0xff]
    %v2333 = vld [vmem:[%s2325 + $0x38] sm:$0xff]
    %v2334 = vld [vmem:[%s2325 + $0x40] sm:$0xff]
    %v2335 = vld [vmem:[%s2325 + $0x48] sm:$0xff]
    %v2336 = vld [vmem:[%s2325 + $0x50] sm:$0xff]
    %v2337 = vld [vmem:[%s2325 + $0x58] sm:$0xff]
    %v2338 = vld [vmem:[%s2325 + $0x60] sm:$0xff]
    %v2339 = vld [vmem:[%s2325 + $0x68] sm:$0xff]
    %v2340 = vld [vmem:[%s2325 + $0x70] sm:$0xff]
    %v2341 = vld [vmem:[%s2325 + $0x78] sm:$0xff]
    %v2342 = vld [vmem:[%s3 + $0x4] ss:$0 sm:$0xff]
    %v2344 = vsel %vm361, %v2324, 0
    %2346 = vmatprep.subr.mxu0 %v2327
    %2347 = vmatpush1.msra.mxu0 %v2326
    %2348 = vmatprep.subr.mxu0 %v2329
    %2349 = vmatpush1.msra.mxu0 %v2328
    %2350 = vmatprep.subr.mxu0 %v2331
    %2351 = vmatpush1.msra.mxu0 %v2330
    %2352 = vmatprep.subr.mxu0 %v2333
    %2353 = vmatpush1.msra.mxu0 %v2332
    %2354 = vmatprep.subr.mxu0 %v2335
    %2355 = vmatpush1.msra.mxu0 %v2334
    %2356 = vmatprep.subr.mxu0 %v2337
    %2357 = vmatpush1.msra.mxu0 %v2336
    %2358 = vmatprep.subr.mxu0 %v2339
    %2359 = vmatpush1.msra.mxu0 %v2338
    %2360 = vmatprep.subr.mxu0 %v2341
    %2361 = vmatpush1.msra.mxu0 %v2340
    %2362 = vmatprep.subr.mxu0 0.0
    %2363 = vmatpush1.msra.mxu0 0.0
    %2364 = vmatprep.subr.mxu0 0.0
    %2365 = vmatpush1.msra.mxu0 0.0
    %2366 = vmatprep.subr.mxu0 0.0
    %2367 = vmatpush1.msra.mxu0 0.0
    %2368 = vmatprep.subr.mxu0 0.0
    %2369 = vmatpush1.msra.mxu0 0.0
    %2370 = vmatprep.subr.mxu0 0.0
    %2371 = vmatpush1.msra.mxu0 0.0
    %2372 = vmatprep.subr.mxu0 0.0
    %2373 = vmatpush1.msra.mxu0 0.0
    %2374 = vmatprep.subr.mxu0 0.0
    %2375 = vmatpush1.msra.mxu0 0.0
    %2376 = vmatprep.subr.mxu0 0.0
    %2377 = vmatpush1.msra.mxu0 0.0
    %2378 = vmatprep.subr.mxu0 0.0
    %2379 = vmatpush1.msra.mxu0 0.0
    %2380 = vmatprep.subr.mxu0 0.0
    %2381 = vmatpush1.msra.mxu0 0.0
    %2382 = vmatprep.subr.mxu0 0.0
    %2383 = vmatpush1.msra.mxu0 0.0
    %2384 = vmatprep.subr.mxu0 0.0
    %2385 = vmatpush1.msra.mxu0 0.0
    %2386 = vmatprep.subr.mxu0 0.0
    %2387 = vmatpush1.msra.mxu0 0.0
    %2388 = vmatprep.subr.mxu0 0.0
    %2389 = vmatpush1.msra.mxu0 0.0
    %2390 = vmatprep.subr.mxu0 0.0
    %2391 = vmatpush1.msra.mxu0 0.0
    %2392 = vmatprep.subr.mxu0 0.0
    %2393 = vmatpush1.msra.mxu0 0.0
    %2394 = vmatprep.subr.mxu0 0.0
    %2395 = vmatpush1.msra.mxu0 0.0
    %2396 = vmatprep.subr.mxu0 0.0
    %2397 = vmatpush1.msra.mxu0 0.0
    %2398 = vmatprep.subr.mxu0 0.0
    %2399 = vmatpush1.msra.mxu0 0.0
    %2400 = vmatprep.subr.mxu0 0.0
    %2401 = vmatpush1.msra.mxu0 0.0
    %2402 = vmatprep.subr.mxu0 0.0
    %2403 = vmatpush1.msra.mxu0 0.0
    %2404 = vmatprep.subr.mxu0 0.0
    %2405 = vmatpush1.msra.mxu0 0.0
    %2406 = vmatprep.subr.mxu0 0.0
    %2407 = vmatpush1.msra.mxu0 0.0
    %2408 = vmatprep.subr.mxu0 0.0
    %2409 = vmatpush1.msra.mxu0 0.0
    %2410 = vmatprep.mubr.f32.mxu0 0.0
    %2411 = vmatmul.mubr.f32.gmra.mrb[0].mxu0 %v2344
    %v2412 = vpop.f32.mrb[0].mxu0
    %v2413 = vadd.f32 0.0, %v2412
    %v2414 = vpop.f32.mrb[0].mxu0
    %2415 = vdwg.mxu0
    %v2416 = vadd.f32 %v2413, %v2342
    %v2417 = vxor.u32 %v2416, 2147483648
    %v2418 = vmul.f32 %v2417, 1.442695
    %v2419 = vpow.pop %v2418
    %v2420 = vadd.f32 %v2419, 1.0
    %v2421 = vrcp.pop %v2420
    %v2422 = vmul.f32 1.0, %v2421
    %vm2423 = vcmask 24576
    %2424 = vst.msk [vmem:[#allocation8] sm:$0x1] %vm2423, %v2422
    // Predicated region
    $region18: #{bi_gru_forward_fused.1} parent=1 // pred_check
      _
    $region19: #{bi_gru_forward_fused.1} parent=1 // pred_check_branch
      %2426 = sbr.rel (0) target = $region21
    $region20: #{bi_gru_forward_fused.1} parent=1 // pred_region
      %s2428 = ssub.s32 16, 16
      %2429 = vsyncadd [#allocation7], %s2428
      %s2431 = sshll.u32 [#allocation8], 4
      %s2432 = int_to_ptr.vmem [resolvable:$true] %s2431
      %2434 = dma.vmem_to_hbm [thread:$0]  %s2432, 16, %s4, [#allocation7]
    $region21: #{bi_gru_forward_fused.1} parent=1 // pred_fallthru
      _
    // Predicated region
    $region22: #{bi_gru_forward_fused.1} parent=1 // pred_check
      _
    $region23: #{bi_gru_forward_fused.1} parent=1 // pred_check_branch
      %2436 = sbr.rel (0) target = $region25
    $region24: #{bi_gru_forward_fused.1} parent=1 // pred_region
      %2437 = dma.done [#allocation7], 16
    $region25: #{bi_gru_forward_fused.1} parent=1 // pred_fallthru
      _
    %2438 = vsyncpa [#allocation6], 1
    %2439 = vsyncpa [#allocation7], 1

</llo_original>
